<compile_context>
chip_gen: v7x
topology: tpu7x:2x2x1
jax: 0.10.0
libtpu: 0.0.40
codegen_flags: <defaults>
</compile_context>

<pallas_src>
import functools
import math

import jax
import jax.numpy as jnp
from jax import lax
from jax.experimental import pallas as pl
from jax.experimental.pallas import tpu as pltpu

# ---- per-graph sizes (module's forward contract) ----
N_NODE = 16      # num_node
N_EDGE = 64      # num_edge
D_IN = 32        # input_dim
D_OUT = 16       # output_dim (per head)
HEADS = 4
D_EDGE = 16      # edge_dim
HC = HEADS * D_OUT            # 64

# graphs packed per grid step: BB*N = 128 fills an MXU contraction on v5e;
# use 16 on v6e/v7x to fill the 256-wide MXU.
BB_DEFAULT = 8


def gnn_layer_kernel(x_ref, ea_ref, ei_ref, wall_ref, ball_ref, we2_ref, hsum_ref,
                     out_ref, *, bb, compute_dtype):
    f32 = jnp.float32
    cdt = compute_dtype
    n_tot = bb * N_NODE
    e_tot = bb * N_EDGE

    # ---- fused projections: one 256-lane MXU push for [k|v|q|skip], BB graphs ----
    x = x_ref[...].astype(cdt)                                          # (n_tot, D_in)
    proj = jnp.dot(x, wall_ref[...], preferred_element_type=f32) + ball_ref[...]
    kv = proj[:, : 2 * HC]                                              # (n_tot, 2HC) [k|v]
    q = proj[:, 2 * HC: 3 * HC]                                         # (n_tot, HC)
    skip = proj[:, 3 * HC:]                                             # (n_tot, HC)  x Ws + bs

    # edge features projected onto [k|v] simultaneously (We duplicated in wrapper)
    e2 = jnp.dot(ea_ref[...].astype(cdt), we2_ref[...],
                 preferred_element_type=f32)                            # (e_tot, 2HC)

    # ---- block-diagonal one-hots from block-global node ids (built transposed) ----
    ei = ei_ref[...]                                                    # (2, e_tot) int32
    src = ei[0:1, :]                                                    # (1, e_tot)
    dst = ei[1:2, :]                                                    # (1, e_tot)
    node_iota = lax.broadcasted_iota(jnp.int32, (n_tot, e_tot), 0)
    s_t = (node_iota == src).astype(cdt)                                # (n_tot, e_tot)
    t_t = (node_iota == dst).astype(cdt)                                # (n_tot, e_tot)
    hsum = hsum_ref[...]                                                # (HC, H), resident

    # ---- gathers: contract over the node axis (dim 0 of both operands) ----
    dn0 = (((0,), (0,)), ((), ()))
    q_i = lax.dot_general(t_t, q.astype(cdt), dn0,
                          preferred_element_type=f32)                   # (e_tot, HC)
    kv_j = lax.dot_general(s_t, kv.astype(cdt), dn0,
                           preferred_element_type=f32) + e2             # (e_tot, 2HC)
    k_j = kv_j[:, :HC]
    v_j = kv_j[:, HC:]

    # ---- attention logits, all heads at once (per-head reduce on the MXU) ----
    inv_sqrt_c = f32(1.0 / math.sqrt(D_OUT))
    logits = jnp.dot((q_i * k_j).astype(cdt), hsum,
                     preferred_element_type=f32) * inv_sqrt_c           # (e_tot, H)

    # ---- segment softmax, stabilized with a per-head GLOBAL max (shift-invariant) ----
    m = jnp.max(logits, axis=0, keepdims=True)                          # (1, H)
    p = jnp.exp(logits - m)                                             # (e_tot, H)
    d_node = jnp.dot(t_t, p.astype(cdt),
                     preferred_element_type=f32)                        # (n_tot, H) denom/node
    d_edge = lax.dot_general(t_t, d_node.astype(cdt), dn0,
                             preferred_element_type=f32)                # (e_tot, H) denom[dst]
    r = pl.reciprocal(d_edge, approx=True)                              # EUP slot
    r = r * (2.0 - d_edge * r)                                          # one Newton step
    alpha = p * r                                                       # (e_tot, H)

    # expand (e,H) -> (e,HC) on the MXU (no lane-axis repeat / concatenate)
    alpha_hc = lax.dot_general(alpha.astype(cdt), hsum, (((1,), (1,)), ((), ())),
                               preferred_element_type=f32)              # (e_tot, HC)

    # ---- scatter-add over dst + skip + ReLU ----
    agg = jnp.dot(t_t, (alpha_hc * v_j).astype(cdt),
                  preferred_element_type=f32)                           # (n_tot, HC)
    out_ref[...] = jnp.maximum(agg + skip, 0.0)
    # TODO(synk): nn.Dropout applied as inference-mode identity (no RNG masking).


def _pad_to_multiple(a, multiple):
    pad = (-a.shape[0]) % multiple
    if pad == 0:
        return a
    return jnp.concatenate([a, jnp.zeros((pad,) + a.shape[1:], a.dtype)], axis=0)


def gnn_layer_forward_batched(x, edge_index, edge_attr, params, *,
                              graphs_per_block=BB_DEFAULT,
                              compute_dtype=jnp.bfloat16):
    """x: (B,N,D_in), edge_index: (B,2,E) int, edge_attr: (B,E,D_edge) -> (B,N,HC)."""
    B, n, _ = x.shape
    assert n == N_NODE and edge_index.shape[1:] == (2, N_EDGE)
    assert edge_attr.shape[1:] == (N_EDGE, D_EDGE)

    bb = graphs_per_block
    n_tot = bb * N_NODE
    e_tot = bb * N_EDGE
    cdt = compute_dtype

    # ---- host-side (tiny, one-time XLA ops): fuse weights, block the batch ----
    w_all = jnp.concatenate(
        [params["wk"], params["wv"], params["wq"], params["ws"]], axis=1).astype(cdt)
    b_all = jnp.concatenate(
        [params["bk"], params["bv"], params["bq"], params["bs"]],
        axis=1).astype(jnp.float32)                                     # (1, 4HC), f32 add
    we2 = jnp.concatenate([params["we"], params["we"]], axis=1).astype(cdt)  # (D_edge, 2HC)
    # head-sum / head-expand block matrix (exact in bf16), resident across steps
    hsum = (jnp.arange(HC)[:, None] // D_OUT
            == jnp.arange(HEADS)[None, :]).astype(cdt)                  # (HC, H)

    # pad batch to a multiple of bb with zero graphs (sliced off afterwards)
    xp = _pad_to_multiple(x.astype(jnp.float32), bb)
    eap = _pad_to_multiple(edge_attr.astype(jnp.float32), bb)
    eip = _pad_to_multiple(edge_index.astype(jnp.int32), bb)
    Bp = xp.shape[0]
    nb = Bp // bb

    # graphs stacked along rows -> block-global node ids for block-diagonal one-hots
    g_local = jnp.arange(Bp, dtype=jnp.int32) % bb
    ei_g = eip + (g_local * N_NODE)[:, None, None]                      # (Bp, 2, E)
    ei_blk = jnp.transpose(ei_g.reshape(nb, bb, 2, N_EDGE),
                           (0, 2, 1, 3)).reshape(nb, 2, e_tot)          # (nb, 2, bb*E)
    x_blk = xp.reshape(nb, n_tot, D_IN)                                 # (nb, bb*N, D_in)
    ea_blk = eap.reshape(nb, e_tot, D_EDGE)                             # (nb, bb*E, D_edge)

    # advisory cost estimate for the whole call
    mm_flops = 2 * (n_tot * D_IN * 4 * HC + e_tot * D_EDGE * 2 * HC
                    + e_tot * n_tot * HC + e_tot * n_tot * 2 * HC
                    + e_tot * HC * HEADS + n_tot * e_tot * HEADS
                    + e_tot * n_tot * HEADS + e_tot * HEADS * HC
                    + n_tot * e_tot * HC)
    cost = pl.CostEstimate(
        flops=nb * mm_flops,
        transcendentals=nb * 2 * e_tot * HEADS,
        bytes_accessed=(nb * 4 * (n_tot * D_IN + e_tot * D_EDGE + 2 * e_tot + n_tot * HC)
                        + 4 * (D_IN * 4 * HC + 4 * HC + D_EDGE * 2 * HC + HC * HEADS)),
    )

    kernel = functools.partial(gnn_layer_kernel, bb=bb, compute_dtype=cdt)
    out = pl.pallas_call(
        kernel,
        out_shape=jax.ShapeDtypeStruct((nb, n_tot, HC), jnp.float32),
        grid=(nb,),
        in_specs=[
            pl.BlockSpec((None, n_tot, D_IN), lambda g: (g, 0, 0)),     # x block
            pl.BlockSpec((None, e_tot, D_EDGE), lambda g: (g, 0, 0)),   # edge_attr block
            pl.BlockSpec((None, 2, e_tot), lambda g: (g, 0, 0)),        # global (src,dst) int32
            pl.BlockSpec((D_IN, 4 * HC), lambda g: (0, 0)),             # fused W (resident)
            pl.BlockSpec((1, 4 * HC), lambda g: (0, 0)),                # fused bias
            pl.BlockSpec((D_EDGE, 2 * HC), lambda g: (0, 0)),           # [We|We]
            pl.BlockSpec((HC, HEADS), lambda g: (0, 0)),                # head-sum matrix
        ],
        out_specs=pl.BlockSpec((None, n_tot, HC), lambda g: (g, 0, 0)),
        compiler_params=pltpu.CompilerParams(
            dimension_semantics=("parallel",)),   # both TCs on v7x; no-op on v5e/v6e
        cost_estimate=cost,
    )(x_blk, ea_blk, ei_blk, w_all, b_all, we2, hsum)

    return out.reshape(Bp, N_NODE, HC)[:B]


def gnn_layer_forward(x, edge_index, edge_attr, params, **kw):
    """Single-graph forward matching the PyTorch module signature (batch padded internally)."""
    return gnn_layer_forward_batched(
        x[None], edge_index[None], edge_attr[None], params, **kw)[0]


def ref_forward(x, edge_index, edge_attr, params):
    """Pure-JAX single-graph reference (TransformerConv semantics)."""
    n = x.shape[0]
    src, dst = edge_index[0], edge_index[1]
    q = x @ params["wq"] + params["bq"]
    k = x @ params["wk"] + params["bk"]
    v = x @ params["wv"] + params["bv"]
    e = edge_attr @ params["we"]
    E = src.shape[0]
    q_i = q[dst].reshape(E, HEADS, D_OUT)
    k_j = (k[src] + e).reshape(E, HEADS, D_OUT)
    v_j = (v[src] + e).reshape(E, HEADS, D_OUT)
    alpha = (q_i * k_j).sum(-1) / math.sqrt(D_OUT)                  # (E, H)
    m = jax.ops.segment_max(alpha, dst, num_segments=n)             # (N, H)
    p = jnp.exp(alpha - m[dst])
    d = jax.ops.segment_sum(p, dst, num_segments=n)
    a = p / d[dst]
    out = jax.ops.segment_sum(v_j * a[..., None], dst, num_segments=n)
    out = out.reshape(n, HC) + (x @ params["ws"] + params["bs"])
    return jax.nn.relu(out)


def init_params(key):
    keys = jax.random.split(key, 8)

    def w(k, shape, scale=0.1):
        return (scale * jax.random.normal(k, shape)).astype(jnp.float32)

    return {
        "wq": w(keys[0], (D_IN, HC)),  "bq": w(keys[1], (1, HC)),
        "wk": w(keys[2], (D_IN, HC)),  "bk": w(keys[3], (1, HC)),
        "wv": w(keys[4], (D_IN, HC)),  "bv": w(keys[5], (1, HC)),
        "we": w(keys[6], (D_EDGE, HC)),                       # lin_edge: no bias
        "ws": w(keys[7], (D_IN, HC)),  "bs": jnp.zeros((1, HC), jnp.float32),
    }


if __name__ == "__main__":
    root = jax.random.PRNGKey(0)
    k_x, k_ei, k_ea, k_p = jax.random.split(root, 4)

    B = 16   # 2 blocks of 8 graphs -> even grid, both v7x TensorCores loaded
    x = jax.random.normal(k_x, (B, N_NODE, D_IN), dtype=jnp.float32)
    edge_index = jax.random.randint(k_ei, (B, 2, N_EDGE), 0, N_NODE, dtype=jnp.int32)
    edge_attr = jax.random.normal(k_ea, (B, N_EDGE, D_EDGE), dtype=jnp.float32)
    params = init_params(k_p)

    refs = jnp.stack([ref_forward(x[b], edge_index[b], edge_attr[b], params)
                      for b in range(B)])

    # f32-MXU path: tight algorithm check (global-max softmax, block-diag batching).
    out_f32 = jax.block_until_ready(gnn_layer_forward_batched(
        x, edge_index, edge_attr, params, compute_dtype=jnp.float32))
    assert out_f32.shape == (B, N_NODE, HC)
    assert jnp.allclose(out_f32, refs, rtol=1e-4, atol=2e-4), (
        "f32 max err", float(jnp.max(jnp.abs(out_f32 - refs))))

    # default bf16-MXU path (f32 accumulate, f32 elementwise): perf path.
    # tolerance reflects bf16 input rounding at the dot sites only.
    out_bf16 = jax.block_until_ready(gnn_layer_forward_batched(
        x, edge_index, edge_attr, params))
    assert out_bf16.shape == (B, N_NODE, HC)
    assert jnp.allclose(out_bf16, refs, rtol=5e-2, atol=5e-2), (
        "bf16 max err", float(jnp.max(jnp.abs(out_bf16 - refs))))

    # single-graph path (module's exact forward signature; padded internally).
    out0 = jax.block_until_ready(
        gnn_layer_forward(x[0], edge_index[0], edge_attr[0], params))
    assert jnp.allclose(out0, refs[0], rtol=5e-2, atol=5e-2)

    print("KERNEL_OK")
</pallas_src>

<mosaic_0001>
module attributes {stable_mosaic.version = 11 : i64} {
  func.func @gnn_layer_kernel(%arg0: i32, %arg1: memref<1x128x32xf32, #tpu.memory_space<vmem>>, %arg2: memref<1x512x16xf32, #tpu.memory_space<vmem>>, %arg3: memref<1x2x512xi32, #tpu.memory_space<vmem>>, %arg4: memref<32x256xf32, #tpu.memory_space<vmem>>, %arg5: memref<1x256xf32, #tpu.memory_space<vmem>>, %arg6: memref<16x128xf32, #tpu.memory_space<vmem>>, %arg7: memref<64x4xf32, #tpu.memory_space<vmem>>, %arg8: memref<1x128x64xf32, #tpu.memory_space<vmem>>) attributes {dimension_semantics = [#tpu.dimension_semantics<parallel>], iteration_bounds = array<i64: 2>, scalar_prefetch = 0 : i64, scratch_operands = 0 : i64, tpu.core_type = #tpu.core_type<tc>, window_params = [{transform_indices = @transform_0, window_bounds = array<i64: 1, 128, 32>}, {transform_indices = @transform_1, window_bounds = array<i64: 1, 512, 16>}, {transform_indices = @transform_2, window_bounds = array<i64: 1, 2, 512>}, {pipeline_mode = #tpu.pipeline_mode<synchronous>, transform_indices = @transform_3, window_bounds = array<i64: 32, 256>}, {pipeline_mode = #tpu.pipeline_mode<synchronous>, transform_indices = @transform_4, window_bounds = array<i64: 1, 256>}, {pipeline_mode = #tpu.pipeline_mode<synchronous>, transform_indices = @transform_5, window_bounds = array<i64: 16, 128>}, {pipeline_mode = #tpu.pipeline_mode<synchronous>, transform_indices = @transform_6, window_bounds = array<i64: 64, 4>}, {transform_indices = @transform_7, window_bounds = array<i64: 1, 128, 64>}]} {
    %c0 = arith.constant 0 : index
    %c0_0 = arith.constant 0 : index
    %c0_1 = arith.constant 0 : index
    %0 = vector.load %arg1[%c0, %c0_0, %c0_1] : memref<1x128x32xf32, #tpu.memory_space<vmem>>, vector<1x128x32xf32>
    %1 = vector.shape_cast %0 : vector<1x128x32xf32> to vector<128x32xf32>
    %c0_2 = arith.constant 0 : index
    %c0_3 = arith.constant 0 : index
    %2 = vector.load %arg4[%c0_2, %c0_3] : memref<32x256xf32, #tpu.memory_space<vmem>>, vector<32x256xf32>
    %cst = arith.constant dense<0.000000e+00> : vector<128x256xf32>
    %3 = tpu.matmul %1, %2, %cst {dimension_numbers = #tpu.dot_dimension_numbers<[1], [0], [0], [1], [0, 0, 1, 1], [], []>} : vector<128x32xf32>, vector<32x256xf32>, vector<128x256xf32> -> vector<128x256xf32>
    %c0_4 = arith.constant 0 : index
    %c0_5 = arith.constant 0 : index
    %4 = vector.load %arg5[%c0_4, %c0_5] : memref<1x256xf32, #tpu.memory_space<vmem>>, vector<1x256xf32>
    %5 = vector.broadcast %4 : vector<1x256xf32> to vector<128x256xf32>
    %6 = arith.addf %3, %5 : vector<128x256xf32>
    %7 = vector.extract_strided_slice %6 {offsets = [0, 0], sizes = [128, 128], strides = [1, 1]} : vector<128x256xf32> to vector<128x128xf32>
    %8 = vector.extract_strided_slice %6 {offsets = [0, 128], sizes = [128, 64], strides = [1, 1]} : vector<128x256xf32> to vector<128x64xf32>
    %9 = vector.extract_strided_slice %6 {offsets = [0, 192], sizes = [128, 64], strides = [1, 1]} : vector<128x256xf32> to vector<128x64xf32>
    %c0_6 = arith.constant 0 : index
    %c0_7 = arith.constant 0 : index
    %c0_8 = arith.constant 0 : index
    %10 = vector.load %arg2[%c0_6, %c0_7, %c0_8] : memref<1x512x16xf32, #tpu.memory_space<vmem>>, vector<1x512x16xf32>
    %11 = vector.shape_cast %10 : vector<1x512x16xf32> to vector<512x16xf32>
    %c0_9 = arith.constant 0 : index
    %c0_10 = arith.constant 0 : index
    %12 = vector.load %arg6[%c0_9, %c0_10] : memref<16x128xf32, #tpu.memory_space<vmem>>, vector<16x128xf32>
    %cst_11 = arith.constant dense<0.000000e+00> : vector<512x128xf32>
    %13 = tpu.matmul %11, %12, %cst_11 {dimension_numbers = #tpu.dot_dimension_numbers<[1], [0], [0], [1], [0, 0, 1, 1], [], []>} : vector<512x16xf32>, vector<16x128xf32>, vector<512x128xf32> -> vector<512x128xf32>
    %c0_12 = arith.constant 0 : index
    %c0_13 = arith.constant 0 : index
    %c0_14 = arith.constant 0 : index
    %14 = vector.load %arg3[%c0_12, %c0_13, %c0_14] : memref<1x2x512xi32, #tpu.memory_space<vmem>>, vector<1x2x512xi32>
    %15 = vector.shape_cast %14 : vector<1x2x512xi32> to vector<2x512xi32>
    %16 = vector.extract_strided_slice %15 {offsets = [0, 0], sizes = [1, 512], strides = [1, 1]} : vector<2x512xi32> to vector<1x512xi32>
    %17 = vector.extract_strided_slice %15 {offsets = [1, 0], sizes = [1, 512], strides = [1, 1]} : vector<2x512xi32> to vector<1x512xi32>
    %18 = tpu.iota {dimensions = array<i32: 0>} : vector<128x512xi32>
    %19 = vector.broadcast %16 : vector<1x512xi32> to vector<128x512xi32>
    %20 = arith.cmpi eq, %18, %19 : vector<128x512xi32>
    %21 = arith.extui %20 : vector<128x512xi1> to vector<128x512xi32>
    %22 = arith.sitofp %21 : vector<128x512xi32> to vector<128x512xf32>
    %23 = vector.broadcast %17 : vector<1x512xi32> to vector<128x512xi32>
    %24 = arith.cmpi eq, %18, %23 : vector<128x512xi32>
    %25 = arith.extui %24 : vector<128x512xi1> to vector<128x512xi32>
    %26 = arith.sitofp %25 : vector<128x512xi32> to vector<128x512xf32>
    %c0_15 = arith.constant 0 : index
    %c0_16 = arith.constant 0 : index
    %27 = vector.load %arg7[%c0_15, %c0_16] : memref<64x4xf32, #tpu.memory_space<vmem>>, vector<64x4xf32>
    %cst_17 = arith.constant dense<0.000000e+00> : vector<512x64xf32>
    %28 = tpu.matmul %26, %8, %cst_17 {dimension_numbers = #tpu.dot_dimension_numbers<[0], [0], [1], [1], [0, 1, 1, 1], [], []>} : vector<128x512xf32>, vector<128x64xf32>, vector<512x64xf32> -> vector<512x64xf32>
    %cst_18 = arith.constant dense<0.000000e+00> : vector<512x128xf32>
    %29 = tpu.matmul %22, %7, %cst_18 {dimension_numbers = #tpu.dot_dimension_numbers<[0], [0], [1], [1], [0, 1, 1, 1], [], []>} : vector<128x512xf32>, vector<128x128xf32>, vector<512x128xf32> -> vector<512x128xf32>
    %30 = arith.addf %29, %13 : vector<512x128xf32>
    %31 = vector.extract_strided_slice %30 {offsets = [0, 0], sizes = [512, 64], strides = [1, 1]} : vector<512x128xf32> to vector<512x64xf32>
    %32 = vector.extract_strided_slice %30 {offsets = [0, 64], sizes = [512, 64], strides = [1, 1]} : vector<512x128xf32> to vector<512x64xf32>
    %33 = arith.mulf %28, %31 : vector<512x64xf32>
    %cst_19 = arith.constant dense<0.000000e+00> : vector<512x4xf32>
    %34 = tpu.matmul %33, %27, %cst_19 {dimension_numbers = #tpu.dot_dimension_numbers<[1], [0], [0], [1], [0, 0, 1, 1], [], []>} : vector<512x64xf32>, vector<64x4xf32>, vector<512x4xf32> -> vector<512x4xf32>
    %cst_20 = arith.constant 2.500000e-01 : f32
    %35 = vector.broadcast %cst_20 : f32 to vector<512x4xf32>
    %36 = arith.mulf %34, %35 : vector<512x4xf32>
    %cst_21 = arith.constant dense<0xFF800000> : vector<4xf32>
    %37 = vector.multi_reduction <maximumf>, %36, %cst_21 [0] : vector<512x4xf32> to vector<4xf32>
    %38 = vector.shape_cast %37 : vector<4xf32> to vector<1x4xf32>
    %39 = vector.broadcast %38 : vector<1x4xf32> to vector<512x4xf32>
    %40 = arith.subf %36, %39 : vector<512x4xf32>
    %41 = math.exp %40 : vector<512x4xf32>
    %cst_22 = arith.constant dense<0.000000e+00> : vector<128x4xf32>
    %42 = tpu.matmul %26, %41, %cst_22 {dimension_numbers = #tpu.dot_dimension_numbers<[1], [0], [0], [1], [0, 0, 1, 1], [], []>} : vector<128x512xf32>, vector<512x4xf32>, vector<128x4xf32> -> vector<128x4xf32>
    %cst_23 = arith.constant dense<0.000000e+00> : vector<512x4xf32>
    %43 = tpu.matmul %26, %42, %cst_23 {dimension_numbers = #tpu.dot_dimension_numbers<[0], [0], [1], [1], [0, 1, 1, 1], [], []>} : vector<128x512xf32>, vector<128x4xf32>, vector<512x4xf32> -> vector<512x4xf32>
    %44 = tpu.reciprocal %43 {approx = true} : vector<512x4xf32> -> vector<512x4xf32>
    %45 = arith.mulf %43, %44 : vector<512x4xf32>
    %cst_24 = arith.constant 2.000000e+00 : f32
    %46 = vector.broadcast %cst_24 : f32 to vector<512x4xf32>
    %47 = arith.subf %46, %45 : vector<512x4xf32>
    %48 = arith.mulf %44, %47 : vector<512x4xf32>
    %49 = arith.mulf %41, %48 : vector<512x4xf32>
    %cst_25 = arith.constant dense<0.000000e+00> : vector<512x64xf32>
    %50 = tpu.matmul %49, %27, %cst_25 {dimension_numbers = #tpu.dot_dimension_numbers<[1], [1], [0], [0], [0, 0, 1, 0], [], []>} : vector<512x4xf32>, vector<64x4xf32>, vector<512x64xf32> -> vector<512x64xf32>
    %51 = arith.mulf %50, %32 : vector<512x64xf32>
    %cst_26 = arith.constant dense<0.000000e+00> : vector<128x64xf32>
    %52 = tpu.matmul %26, %51, %cst_26 {dimension_numbers = #tpu.dot_dimension_numbers<[1], [0], [0], [1], [0, 0, 1, 1], [], []>} : vector<128x512xf32>, vector<512x64xf32>, vector<128x64xf32> -> vector<128x64xf32>
    %53 = arith.addf %52, %9 : vector<128x64xf32>
    %cst_27 = arith.constant 0.000000e+00 : f32
    %54 = vector.broadcast %cst_27 : f32 to vector<128x64xf32>
    %55 = arith.maximumf %53, %54 : vector<128x64xf32>
    %c0_28 = arith.constant 0 : index
    %c0_29 = arith.constant 0 : index
    %c0_30 = arith.constant 0 : index
    %56 = vector.load %arg8[%c0_28, %c0_29, %c0_30] : memref<1x128x64xf32, #tpu.memory_space<vmem>>, vector<1x128x64xf32>
    %57 = vector.shape_cast %56 : vector<1x128x64xf32> to vector<128x64xf32>
    %58 = vector.shape_cast %55 : vector<128x64xf32> to vector<1x128x64xf32>
    tpu.vector_store %arg8[%c0_28, %c0_29, %c0_30], %58 {strides = array<i32>} : memref<1x128x64xf32, #tpu.memory_space<vmem>>, vector<1x128x64xf32>,
    return
  }
  func.func @transform_0(%arg0: i32) -> (i32, i32, i32) {
    %c0_i32 = arith.constant 0 : i32
    %c0_i32_0 = arith.constant 0 : i32
    %c0_i32_1 = arith.constant 0 : i32
    return %arg0, %c0_i32, %c0_i32_0 : i32, i32, i32
  }
  func.func @transform_1(%arg0: i32) -> (i32, i32, i32) {
    %c0_i32 = arith.constant 0 : i32
    %c0_i32_0 = arith.constant 0 : i32
    %c0_i32_1 = arith.constant 0 : i32
    return %arg0, %c0_i32, %c0_i32_0 : i32, i32, i32
  }
  func.func @transform_2(%arg0: i32) -> (i32, i32, i32) {
    %c0_i32 = arith.constant 0 : i32
    %c0_i32_0 = arith.constant 0 : i32
    %c0_i32_1 = arith.constant 0 : i32
    return %arg0, %c0_i32, %c0_i32_0 : i32, i32, i32
  }
  func.func @transform_3(%arg0: i32) -> (i32, i32) {
    %c0_i32 = arith.constant 0 : i32
    %c0_i32_0 = arith.constant 0 : i32
    %c0_i32_1 = arith.constant 0 : i32
    return %c0_i32, %c0_i32_0 : i32, i32
  }
  func.func @transform_4(%arg0: i32) -> (i32, i32) {
    %c0_i32 = arith.constant 0 : i32
    %c0_i32_0 = arith.constant 0 : i32
    %c0_i32_1 = arith.constant 0 : i32
    return %c0_i32, %c0_i32_0 : i32, i32
  }
  func.func @transform_5(%arg0: i32) -> (i32, i32) {
    %c0_i32 = arith.constant 0 : i32
    %c0_i32_0 = arith.constant 0 : i32
    %c0_i32_1 = arith.constant 0 : i32
    return %c0_i32, %c0_i32_0 : i32, i32
  }
  func.func @transform_6(%arg0: i32) -> (i32, i32) {
    %c0_i32 = arith.constant 0 : i32
    %c0_i32_0 = arith.constant 0 : i32
    %c0_i32_1 = arith.constant 0 : i32
    return %c0_i32, %c0_i32_0 : i32, i32
  }
  func.func @transform_7(%arg0: i32) -> (i32, i32, i32) {
    %c0_i32 = arith.constant 0 : i32
    %c0_i32_0 = arith.constant 0 : i32
    %c0_i32_1 = arith.constant 0 : i32
    return %arg0, %c0_i32, %c0_i32_0 : i32, i32, i32
  }
}

</mosaic_0001>

<llo_original>
// kernel: tpu_custom_call.1
$region0: #{tpu_custom_call.1}
  #allocation0 [shape = 'u32[]', space=smem, size = 0x4, offset = 0x4, fixed_abs, tag = 'smem constant byte address 0x4 - core index']
  #allocation1 [shape = 'u32[144,128]{1,0:T(1,128)}', space=vmem, size = 0x12000, scoped, tag = 'internal scratch']
  %s0 = inlined_call_operand.vmem [shape: f32[2,128,32], index: 0, kind: input, shape index: {}]
  %s1 = inlined_call_operand.vmem [shape: f32[2,512,16], index: 1, kind: input, shape index: {}]
  %s2 = inlined_call_operand.vmem [shape: s32[2,2,512], index: 2, kind: input, shape index: {}]
  %s3 = inlined_call_operand.vmem [shape: f32[32,256], index: 3, kind: input, shape index: {}]
  %s4 = inlined_call_operand.vmem [shape: f32[1,256], index: 4, kind: input, shape index: {}]
  %s5 = inlined_call_operand.vmem [shape: f32[16,128], index: 5, kind: input, shape index: {}]
  %s6 = inlined_call_operand.vmem [shape: f32[64,4], index: 6, kind: input, shape index: {}]
  %s7 = inlined_call_operand.vmem [shape: f32[2,128,64], index: 7, kind: output, shape index: {}]
  %s8 = sld [smem:[#allocation0]]
  $region61: #{tpu_custom_call.1} parent=0
    _
  %s10 = ssub.s32 1, %s8
  %s11 = scalar_select 0, %s10, %s8
  loop: start=0, step=1, limit=4
  $region2: #{tpu_custom_call.1} parent=0 // loop_pre_header
    _
  $region3: #{tpu_custom_call.1} parent=0 // loop_header
    %s13 = sphi 0, %s17
    %p14 = scmp.ge.s32.totalorder %s13, 4
    %s23 = sphi 0, %s25
    %s26 = sphi 0, %s23
    %s27 = sphi 0, %s26
    %s43 = sphi 0, %s27
    %s49 = sphi 0, %s51
    %s52 = sphi 0, %s49
    %s53 = sphi 0, %s52
    %s69 = sphi 0, %s53
    %s75 = sphi 0, %s77
    %s78 = sphi 0, %s75
    %s79 = sphi 0, %s78
    %s95 = sphi 0, %s79
    %s99 = sphi 0, %s99
    %s101 = sphi 0, %s99
    %s102 = sphi 0, %s101
    %s116 = sphi 0, %s102
    %s120 = sphi 0, %s120
    %s122 = sphi 0, %s120
    %s123 = sphi 0, %s122
    %s137 = sphi 0, %s123
    %s141 = sphi 0, %s141
    %s143 = sphi 0, %s141
    %s144 = sphi 0, %s143
    %s158 = sphi 0, %s144
    %s162 = sphi 0, %s162
    %s164 = sphi 0, %s162
    %s165 = sphi 0, %s164
    %s179 = sphi 0, %s165
    %s185 = sphi 0, %s187
    %s188 = sphi 0, %s185
    %s189 = sphi 0, %s188
    %s205 = sphi 0, %s189
  $region4: #{tpu_custom_call.1} parent=0 // loop_header_branch
    %16 = sbr.rel (%p14) target = $region8
  $region5: #{tpu_custom_call.1} parent=0 // loop_body
    %s18 = ssub.s32 %s13, 1
    %s19 = ssub.s32 %s13, 2
    %s20 = sadd.s32 %s13, 1
    %s21 = ssub.s32 %s13, %s20
    %p22 = scmp.eq.s32.totalorder %s21, 0
    %s24 = sadd.s32 %s23, 1
    %s25 = scalar_select %p22, %s23, %s24
    %p28 = pneg %p22
    %p29 = scmp.eq.s32.totalorder %s13, 1
    %p30 = por %p28, %p29
    %p31 = scmp.ne.s32.totalorder %s23, %s26
    %p32 = scmp.eq.s32.totalorder %s13, 0
    %p33 = por %p31, %p32
    %p34 = scmp.ne.s32.totalorder %s23, %s26
    %p35 = scmp.eq.s32.totalorder %s18, 1
    %p36 = por %p34, %p35
    %p37 = scmp.ne.s32.totalorder %s26, %s27
    %p38 = scmp.eq.s32.totalorder %s18, 0
    %p39 = por %p37, %p38
    %p40 = scmp.ne.s32.totalorder %s26, %s27
    %p41 = scmp.eq.s32.totalorder %s19, 1
    %p42 = por %p40, %p41
    %p44 = scmp.ne.s32.totalorder %s27, %s43
    %p45 = scmp.eq.s32.totalorder %s19, 0
    %p46 = por %p44, %p45
    %s47 = ssub.s32 %s13, %s20
    %p48 = scmp.eq.s32.totalorder %s47, 0
    %s50 = sadd.s32 %s49, 1
    %s51 = scalar_select %p48, %s49, %s50
    %p54 = pneg %p48
    %p55 = scmp.eq.s32.totalorder %s13, 1
    %p56 = por %p54, %p55
    %p57 = scmp.ne.s32.totalorder %s49, %s52
    %p58 = scmp.eq.s32.totalorder %s13, 0
    %p59 = por %p57, %p58
    %p60 = scmp.ne.s32.totalorder %s49, %s52
    %p61 = scmp.eq.s32.totalorder %s18, 1
    %p62 = por %p60, %p61
    %p63 = scmp.ne.s32.totalorder %s52, %s53
    %p64 = scmp.eq.s32.totalorder %s18, 0
    %p65 = por %p63, %p64
    %p66 = scmp.ne.s32.totalorder %s52, %s53
    %p67 = scmp.eq.s32.totalorder %s19, 1
    %p68 = por %p66, %p67
    %p70 = scmp.ne.s32.totalorder %s53, %s69
    %p71 = scmp.eq.s32.totalorder %s19, 0
    %p72 = por %p70, %p71
    %s73 = ssub.s32 %s13, %s20
    %p74 = scmp.eq.s32.totalorder %s73, 0
    %s76 = sadd.s32 %s75, 1
    %s77 = scalar_select %p74, %s75, %s76
    %p80 = pneg %p74
    %p81 = scmp.eq.s32.totalorder %s13, 1
    %p82 = por %p80, %p81
    %p83 = scmp.ne.s32.totalorder %s75, %s78
    %p84 = scmp.eq.s32.totalorder %s13, 0
    %p85 = por %p83, %p84
    %p86 = scmp.ne.s32.totalorder %s75, %s78
    %p87 = scmp.eq.s32.totalorder %s18, 1
    %p88 = por %p86, %p87
    %p89 = scmp.ne.s32.totalorder %s78, %s79
    %p90 = scmp.eq.s32.totalorder %s18, 0
    %p91 = por %p89, %p90
    %p92 = scmp.ne.s32.totalorder %s78, %s79
    %p93 = scmp.eq.s32.totalorder %s19, 1
    %p94 = por %p92, %p93
    %p96 = scmp.ne.s32.totalorder %s79, %s95
    %p97 = scmp.eq.s32.totalorder %s19, 0
    %p98 = por %p96, %p97
    %s100 = sadd.s32 %s99, 1
    %p103 = scmp.eq.s32.totalorder %s13, 1
    %p104 = scmp.ne.s32.totalorder %s99, %s101
    %p105 = scmp.eq.s32.totalorder %s13, 0
    %p106 = por %p104, %p105
    %p107 = scmp.ne.s32.totalorder %s99, %s101
    %p108 = scmp.eq.s32.totalorder %s18, 1
    %p109 = por %p107, %p108
    %p110 = scmp.ne.s32.totalorder %s101, %s102
    %p111 = scmp.eq.s32.totalorder %s18, 0
    %p112 = por %p110, %p111
    %p113 = scmp.ne.s32.totalorder %s101, %s102
    %p114 = scmp.eq.s32.totalorder %s19, 1
    %p115 = por %p113, %p114
    %p117 = scmp.ne.s32.totalorder %s102, %s116
    %p118 = scmp.eq.s32.totalorder %s19, 0
    %p119 = por %p117, %p118
    %s121 = sadd.s32 %s120, 1
    %p124 = scmp.eq.s32.totalorder %s13, 1
    %p125 = scmp.ne.s32.totalorder %s120, %s122
    %p126 = scmp.eq.s32.totalorder %s13, 0
    %p127 = por %p125, %p126
    %p128 = scmp.ne.s32.totalorder %s120, %s122
    %p129 = scmp.eq.s32.totalorder %s18, 1
    %p130 = por %p128, %p129
    %p131 = scmp.ne.s32.totalorder %s122, %s123
    %p132 = scmp.eq.s32.totalorder %s18, 0
    %p133 = por %p131, %p132
    %p134 = scmp.ne.s32.totalorder %s122, %s123
    %p135 = scmp.eq.s32.totalorder %s19, 1
    %p136 = por %p134, %p135
    %p138 = scmp.ne.s32.totalorder %s123, %s137
    %p139 = scmp.eq.s32.totalorder %s19, 0
    %p140 = por %p138, %p139
    %s142 = sadd.s32 %s141, 1
    %p145 = scmp.eq.s32.totalorder %s13, 1
    %p146 = scmp.ne.s32.totalorder %s141, %s143
    %p147 = scmp.eq.s32.totalorder %s13, 0
    %p148 = por %p146, %p147
    %p149 = scmp.ne.s32.totalorder %s141, %s143
    %p150 = scmp.eq.s32.totalorder %s18, 1
    %p151 = por %p149, %p150
    %p152 = scmp.ne.s32.totalorder %s143, %s144
    %p153 = scmp.eq.s32.totalorder %s18, 0
    %p154 = por %p152, %p153
    %p155 = scmp.ne.s32.totalorder %s143, %s144
    %p156 = scmp.eq.s32.totalorder %s19, 1
    %p157 = por %p155, %p156
    %p159 = scmp.ne.s32.totalorder %s144, %s158
    %p160 = scmp.eq.s32.totalorder %s19, 0
    %p161 = por %p159, %p160
    %s163 = sadd.s32 %s162, 1
    %p166 = scmp.eq.s32.totalorder %s13, 1
    %p167 = scmp.ne.s32.totalorder %s162, %s164
    %p168 = scmp.eq.s32.totalorder %s13, 0
    %p169 = por %p167, %p168
    %p170 = scmp.ne.s32.totalorder %s162, %s164
    %p171 = scmp.eq.s32.totalorder %s18, 1
    %p172 = por %p170, %p171
    %p173 = scmp.ne.s32.totalorder %s164, %s165
    %p174 = scmp.eq.s32.totalorder %s18, 0
    %p175 = por %p173, %p174
    %p176 = scmp.ne.s32.totalorder %s164, %s165
    %p177 = scmp.eq.s32.totalorder %s19, 1
    %p178 = por %p176, %p177
    %p180 = scmp.ne.s32.totalorder %s165, %s179
    %p181 = scmp.eq.s32.totalorder %s19, 0
    %p182 = por %p180, %p181
    %s183 = ssub.s32 %s13, %s20
    %p184 = scmp.eq.s32.totalorder %s183, 0
    %s186 = sadd.s32 %s185, 1
    %s187 = scalar_select %p184, %s185, %s186
    %p190 = pneg %p184
    %p191 = scmp.eq.s32.totalorder %s13, 1
    %p192 = por %p190, %p191
    %p193 = scmp.ne.s32.totalorder %s185, %s188
    %p194 = scmp.eq.s32.totalorder %s13, 0
    %p195 = por %p193, %p194
    %p196 = scmp.ne.s32.totalorder %s185, %s188
    %p197 = scmp.eq.s32.totalorder %s18, 1
    %p198 = por %p196, %p197
    %p199 = scmp.ne.s32.totalorder %s188, %s189
    %p200 = scmp.eq.s32.totalorder %s18, 0
    %p201 = por %p199, %p200
    %p202 = scmp.ne.s32.totalorder %s188, %s189
    %p203 = scmp.eq.s32.totalorder %s19, 1
    %p204 = por %p202, %p203
    %p206 = scmp.ne.s32.totalorder %s189, %s205
    %p207 = scmp.eq.s32.totalorder %s19, 0
    %p208 = por %p206, %p207
    %p209 = scmp.le.s32.totalorder 1, %s13
    %p210 = scmp.lt.s32.totalorder %s13, 3
    %p211 = pnand %p209, %p210
    %p212 = pneg %p211
    // Predicated region
    $region9: #{tpu_custom_call.1} parent=5 // pred_check
      _
    $region10: #{tpu_custom_call.1} parent=5 // pred_check_branch
      %214 = sbr.rel (%p211) target = $region12
    $region11: #{tpu_custom_call.1} parent=5 // pred_region
      %s215 = ssub.s32 %s13, 1
      // Predicated region
      $region13: #{tpu_custom_call.1} parent=11 // pred_check
        %p216 = pneg %p112
      $region14: #{tpu_custom_call.1} parent=11 // pred_check_branch
        %218 = sbr.rel (%p216) target = $region16
      $region15: #{tpu_custom_call.1} parent=11 // pred_region
        _
      $region16: #{tpu_custom_call.1} parent=11 // pred_fallthru
        _
      // Predicated region
      $region17: #{tpu_custom_call.1} parent=11 // pred_check
        %p219 = pneg %p133
      $region18: #{tpu_custom_call.1} parent=11 // pred_check_branch
        %221 = sbr.rel (%p219) target = $region20
      $region19: #{tpu_custom_call.1} parent=11 // pred_region
        _
      $region20: #{tpu_custom_call.1} parent=11 // pred_fallthru
        _
      // Predicated region
      $region21: #{tpu_custom_call.1} parent=11 // pred_check
        %p222 = pneg %p154
      $region22: #{tpu_custom_call.1} parent=11 // pred_check_branch
        %224 = sbr.rel (%p222) target = $region24
      $region23: #{tpu_custom_call.1} parent=11 // pred_region
        _
      $region24: #{tpu_custom_call.1} parent=11 // pred_fallthru
        _
      // Predicated region
      $region25: #{tpu_custom_call.1} parent=11 // pred_check
        %p225 = pneg %p175
      $region26: #{tpu_custom_call.1} parent=11 // pred_check_branch
        %227 = sbr.rel (%p225) target = $region28
      $region27: #{tpu_custom_call.1} parent=11 // pred_region
        _
      $region28: #{tpu_custom_call.1} parent=11 // pred_fallthru
        _
    $region12: #{tpu_custom_call.1} parent=5 // pred_fallthru
      _
    %p228 = scmp.lt.s32.totalorder %s13, 2
    // Predicated region
    $region29: #{tpu_custom_call.1} parent=5 // pred_check
      %p229 = pneg %p228
    $region30: #{tpu_custom_call.1} parent=5 // pred_check_branch
      %231 = sbr.rel (%p229) target = $region32
    $region31: #{tpu_custom_call.1} parent=5 // pred_region
      // Predicated region
      $region33: #{tpu_custom_call.1} parent=31 // pred_check
        %p232 = pneg %p33
      $region34: #{tpu_custom_call.1} parent=31 // pred_check_branch
        %234 = sbr.rel (%p232) target = $region36
      $region35: #{tpu_custom_call.1} parent=31 // pred_region
        %p235 = scmp.lt.s32.totalorder %s13, 1
        %s236 = scalar_select %p235, %s13, 1
        %s237 = smul.addr %s236, 16
        %s238 = smul.addr %s237, 8
        %s239 = scalar_lea.vmem %s0, %s238
      $region36: #{tpu_custom_call.1} parent=31 // pred_fallthru
        _
      // Predicated region
      $region37: #{tpu_custom_call.1} parent=31 // pred_check
        %p240 = pneg %p59
      $region38: #{tpu_custom_call.1} parent=31 // pred_check_branch
        %242 = sbr.rel (%p240) target = $region40
      $region39: #{tpu_custom_call.1} parent=31 // pred_region
        %p243 = scmp.lt.s32.totalorder %s13, 1
        %s244 = scalar_select %p243, %s13, 1
        %s245 = smul.addr %s244, 64
        %s246 = smul.addr %s245, 8
        %s247 = scalar_lea.vmem %s1, %s246
      $region40: #{tpu_custom_call.1} parent=31 // pred_fallthru
        _
      // Predicated region
      $region41: #{tpu_custom_call.1} parent=31 // pred_check
        %p248 = pneg %p85
      $region42: #{tpu_custom_call.1} parent=31 // pred_check_branch
        %250 = sbr.rel (%p248) target = $region44
      $region43: #{tpu_custom_call.1} parent=31 // pred_region
        %p251 = scmp.lt.s32.totalorder %s13, 1
        %s252 = scalar_select %p251, %s13, 1
        %s253 = smul.addr %s252, 4
        %s254 = smul.addr %s253, 2
        %s255 = scalar_lea.vmem %s2, %s254
      $region44: #{tpu_custom_call.1} parent=31 // pred_fallthru
        _
    $region32: #{tpu_custom_call.1} parent=5 // pred_fallthru
      _
    %p256 = scmp.le.s32.totalorder 1, %s13
    %p257 = scmp.lt.s32.totalorder %s13, 3
    %p258 = pnand %p256, %p257
    %p259 = pneg %p258
    // Predicated region
    $region45: #{tpu_custom_call.1} parent=5 // pred_check
      _
    $region46: #{tpu_custom_call.1} parent=5 // pred_check_branch
      %261 = sbr.rel (%p258) target = $region48
    $region47: #{tpu_custom_call.1} parent=5 // pred_region
      %s262 = ssub.s32 %s13, 1
      %p263 = scmp.lt.s32.totalorder %s18, 1
      %s264 = scalar_select %p263, %s18, 1
      %s265 = smul.addr %s264, 16
      %s266 = smul.addr %s265, 8
      %s267 = scalar_lea.vmem %s0, %s266
      %p268 = pneg %p39
      %p269 = pneg %p36
      %p270 = scmp.lt.s32.totalorder %s18, 1
      %s271 = scalar_select %p270, %s18, 1
      %s272 = smul.addr %s271, 64
      %s273 = smul.addr %s272, 8
      %s274 = scalar_lea.vmem %s1, %s273
      %p275 = pneg %p65
      %p276 = pneg %p62
      %p277 = scmp.lt.s32.totalorder %s18, 1
      %s278 = scalar_select %p277, %s18, 1
      %s279 = smul.addr %s278, 4
      %s280 = smul.addr %s279, 2
      %s281 = scalar_lea.vmem %s2, %s280
      %p282 = pneg %p91
      %p283 = pneg %p88
      %p284 = pneg %p112
      %p285 = pneg %p109
      %p286 = pneg %p133
      %p287 = pneg %p130
      %p288 = pneg %p154
      %p289 = pneg %p151
      %p290 = pneg %p175
      %p291 = pneg %p172
      %p292 = pneg %p201
      %p293 = pneg %p198
      %p294 = scmp.lt.s32.totalorder %s18, 1
      %s295 = scalar_select %p294, %s18, 1
      %s296 = smul.addr %s295, 16
      %s297 = smul.addr %s296, 8
      %s298 = scalar_lea.vmem %s7, %s297
      %p299 = scmp.lt.s32.totalorder %s18, 1
      %s300 = scalar_select %p299, %s18, 1
      %s301 = smul.addr %s300, 16
      %s302 = smul.addr %s301, 8
      %s303 = scalar_lea.vmem %s0, %s302
      %p304 = scmp.lt.s32.totalorder %s18, 1
      %s305 = scalar_select %p304, %s18, 1
      %s306 = smul.addr %s305, 64
      %s307 = smul.addr %s306, 8
      %s308 = scalar_lea.vmem %s1, %s307
      %p309 = scmp.lt.s32.totalorder %s18, 1
      %s310 = scalar_select %p309, %s18, 1
      %s311 = smul.addr %s310, 4
      %s312 = smul.addr %s311, 2
      %s313 = scalar_lea.vmem %s2, %s312
      %p314 = scmp.lt.s32.totalorder %s18, 1
      %s315 = scalar_select %p314, %s18, 1
      %s316 = smul.addr %s315, 16
      %s317 = smul.addr %s316, 8
      %s318 = scalar_lea.vmem %s7, %s317
      %v319 = vld [vmem:[%s303] sm:$0xff]
      %v320 = vld [vmem:[%s303 + $0x8] sm:$0xff]
      %v321 = vld [vmem:[%s303 + $0x10] sm:$0xff]
      %v322 = vld [vmem:[%s303 + $0x18] sm:$0xff]
      %v323 = vld [vmem:[%s303 + $0x20] sm:$0xff]
      %v324 = vld [vmem:[%s303 + $0x28] sm:$0xff]
      %v325 = vld [vmem:[%s303 + $0x30] sm:$0xff]
      %v326 = vld [vmem:[%s303 + $0x38] sm:$0xff]
      %v327 = vld [vmem:[%s303 + $0x40] sm:$0xff]
      %v328 = vld [vmem:[%s303 + $0x48] sm:$0xff]
      %v329 = vld [vmem:[%s303 + $0x50] sm:$0xff]
      %v330 = vld [vmem:[%s303 + $0x58] sm:$0xff]
      %v331 = vld [vmem:[%s303 + $0x60] sm:$0xff]
      %v332 = vld [vmem:[%s303 + $0x68] sm:$0xff]
      %v333 = vld [vmem:[%s303 + $0x70] sm:$0xff]
      %v334 = vld [vmem:[%s303 + $0x78] sm:$0xff]
      %v335 = vld [vmem:[%s3] sm:$0xff]
      %v336 = vld [vmem:[%s3 + $0x8] sm:$0xff]
      %v337 = vld [vmem:[%s3 + $0x10] sm:$0xff]
      %v338 = vld [vmem:[%s3 + $0x18] sm:$0xff]
      %v339 = vld [vmem:[%s3 + $0x20] sm:$0xff]
      %v340 = vld [vmem:[%s3 + $0x28] sm:$0xff]
      %v341 = vld [vmem:[%s3 + $0x30] sm:$0xff]
      %v342 = vld [vmem:[%s3 + $0x38] sm:$0xff]
      %v343 = vld [vmem:[%s4] sm:$0x3]
      %v345 = vlaneseq
      %v346 = vshrl.u32 %v345, 7
      %v347 = vsub.s32 0, %v346
      %v348 = vrot.slane %v343, %v347
      %v349 = vlaneseq
      %v350 = vshrl.u32 %v349, 7
      %v351 = vsub.s32 1, %v350
      %v352 = vrot.slane %v343, %v351
      %vm355 = vcmask 261120
      %v357 = vsel %vm355, %v319, 0
      %v360 = vsel %vm355, %v320, 0
      %v363 = vsel %vm355, %v321, 0
      %v366 = vsel %vm355, %v322, 0
      %v369 = vsel %vm355, %v323, 0
      %v372 = vsel %vm355, %v324, 0
      %v375 = vsel %vm355, %v325, 0
      %v378 = vsel %vm355, %v326, 0
      %v381 = vsel %vm355, %v327, 0
      %v384 = vsel %vm355, %v328, 0
      %v387 = vsel %vm355, %v329, 0
      %v390 = vsel %vm355, %v330, 0
      %v393 = vsel %vm355, %v331, 0
      %v396 = vsel %vm355, %v332, 0
      %v399 = vsel %vm355, %v333, 0
      %v402 = vsel %vm355, %v334, 0
      %404 = vmatprep.subr.mxu0 %v336
      %405 = vmatpush1.msra.mxu0 %v335
      %406 = vmatprep.subr.mxu0 %v338
      %407 = vmatpush1.msra.mxu0 %v337
      %408 = vmatprep.subr.mxu0 %v340
      %409 = vmatpush1.msra.mxu0 %v339
      %410 = vmatprep.subr.mxu0 %v342
      %411 = vmatpush1.msra.mxu0 %v341
      %412 = vmatprep.subr.mxu0 0.0
      %413 = vmatpush1.msra.mxu0 0.0
      %414 = vmatprep.subr.mxu0 0.0
      %415 = vmatpush1.msra.mxu0 0.0
      %416 = vmatprep.subr.mxu0 0.0
      %417 = vmatpush1.msra.mxu0 0.0
      %418 = vmatprep.subr.mxu0 0.0
      %419 = vmatpush1.msra.mxu0 0.0
      %420 = vmatprep.subr.mxu0 0.0
      %421 = vmatpush1.msra.mxu0 0.0
      %422 = vmatprep.subr.mxu0 0.0
      %423 = vmatpush1.msra.mxu0 0.0
      %424 = vmatprep.subr.mxu0 0.0
      %425 = vmatpush1.msra.mxu0 0.0
      %426 = vmatprep.subr.mxu0 0.0
      %427 = vmatpush1.msra.mxu0 0.0
      %428 = vmatprep.subr.mxu0 0.0
      %429 = vmatpush1.msra.mxu0 0.0
      %430 = vmatprep.subr.mxu0 0.0
      %431 = vmatpush1.msra.mxu0 0.0
      %432 = vmatprep.subr.mxu0 0.0
      %433 = vmatpush1.msra.mxu0 0.0
      %434 = vmatprep.subr.mxu0 0.0
      %435 = vmatpush1.msra.mxu0 0.0
      %436 = vmatprep.subr.mxu0 0.0
      %437 = vmatpush1.msra.mxu0 0.0
      %438 = vmatprep.subr.mxu0 0.0
      %439 = vmatpush1.msra.mxu0 0.0
      %440 = vmatprep.subr.mxu0 0.0
      %441 = vmatpush1.msra.mxu0 0.0
      %442 = vmatprep.subr.mxu0 0.0
      %443 = vmatpush1.msra.mxu0 0.0
      %444 = vmatprep.subr.mxu0 0.0
      %445 = vmatpush1.msra.mxu0 0.0
      %446 = vmatprep.subr.mxu0 0.0
      %447 = vmatpush1.msra.mxu0 0.0
      %448 = vmatprep.subr.mxu0 0.0
      %449 = vmatpush1.msra.mxu0 0.0
      %450 = vmatprep.subr.mxu0 0.0
      %451 = vmatpush1.msra.mxu0 0.0
      %452 = vmatprep.subr.mxu0 0.0
      %453 = vmatpush1.msra.mxu0 0.0
      %454 = vmatprep.subr.mxu0 0.0
      %455 = vmatpush1.msra.mxu0 0.0
      %456 = vmatprep.subr.mxu0 0.0
      %457 = vmatpush1.msra.mxu0 0.0
      %458 = vmatprep.subr.mxu0 0.0
      %459 = vmatpush1.msra.mxu0 0.0
      %460 = vmatprep.subr.mxu0 0.0
      %461 = vmatpush1.msra.mxu0 0.0
      %462 = vmatprep.subr.mxu0 0.0
      %463 = vmatpush1.msra.mxu0 0.0
      %464 = vmatprep.subr.mxu0 0.0
      %465 = vmatpush1.msra.mxu0 0.0
      %466 = vmatprep.subr.mxu0 0.0
      %467 = vmatpush1.msra.mxu0 0.0
      %468 = vmatprep.mubr.f32.mxu0 0.0
      %469 = vmatmul.mubr.f32.gmra.mrb[0].mxu0 %v357
      %v470 = vpop.f32.mrb[0].mxu0
      %v471 = vadd.f32 %v348, %v470
      %v472 = vpop.f32.mrb[0].mxu0
      %v473 = vadd.f32 %v352, %v472
      %474 = vmatprep.mubr.f32.mxu0 0.0
      %475 = vmatmul.mubr.f32.gmra.mrb[0].mxu0 %v360
      %v476 = vpop.f32.mrb[0].mxu0
      %v477 = vadd.f32 %v348, %v476
      %v478 = vpop.f32.mrb[0].mxu0
      %v479 = vadd.f32 %v352, %v478
      %480 = vmatprep.mubr.f32.mxu0 0.0
      %481 = vmatmul.mubr.f32.gmra.mrb[0].mxu0 %v363
      %v482 = vpop.f32.mrb[0].mxu0
      %v483 = vadd.f32 %v348, %v482
      %v484 = vpop.f32.mrb[0].mxu0
      %v485 = vadd.f32 %v352, %v484
      %486 = vmatprep.mubr.f32.mxu0 0.0
      %487 = vmatmul.mubr.f32.gmra.mrb[0].mxu0 %v366
      %v488 = vpop.f32.mrb[0].mxu0
      %v489 = vadd.f32 %v348, %v488
      %v490 = vpop.f32.mrb[0].mxu0
      %v491 = vadd.f32 %v352, %v490
      %492 = vmatprep.mubr.f32.mxu0 0.0
      %493 = vmatmul.mubr.f32.gmra.mrb[0].mxu0 %v369
      %v494 = vpop.f32.mrb[0].mxu0
      %v495 = vadd.f32 %v348, %v494
      %v496 = vpop.f32.mrb[0].mxu0
      %v497 = vadd.f32 %v352, %v496
      %498 = vmatprep.mubr.f32.mxu0 0.0
      %499 = vmatmul.mubr.f32.gmra.mrb[0].mxu0 %v372
      %v500 = vpop.f32.mrb[0].mxu0
      %v501 = vadd.f32 %v348, %v500
      %v502 = vpop.f32.mrb[0].mxu0
      %v503 = vadd.f32 %v352, %v502
      %504 = vmatprep.mubr.f32.mxu0 0.0
      %505 = vmatmul.mubr.f32.gmra.mrb[0].mxu0 %v375
      %v506 = vpop.f32.mrb[0].mxu0
      %v507 = vadd.f32 %v348, %v506
      %v508 = vpop.f32.mrb[0].mxu0
      %v509 = vadd.f32 %v352, %v508
      %510 = vmatprep.mubr.f32.mxu0 0.0
      %511 = vmatmul.mubr.f32.gmra.mrb[0].mxu0 %v378
      %v512 = vpop.f32.mrb[0].mxu0
      %v513 = vadd.f32 %v348, %v512
      %v514 = vpop.f32.mrb[0].mxu0
      %v515 = vadd.f32 %v352, %v514
      %516 = vmatprep.mubr.f32.mxu0 0.0
      %517 = vmatmul.mubr.f32.gmra.mrb[0].mxu0 %v381
      %v518 = vpop.f32.mrb[0].mxu0
      %v519 = vadd.f32 %v348, %v518
      %v520 = vpop.f32.mrb[0].mxu0
      %v521 = vadd.f32 %v352, %v520
      %522 = vmatprep.mubr.f32.mxu0 0.0
      %523 = vmatmul.mubr.f32.gmra.mrb[0].mxu0 %v384
      %v524 = vpop.f32.mrb[0].mxu0
      %v525 = vadd.f32 %v348, %v524
      %v526 = vpop.f32.mrb[0].mxu0
      %v527 = vadd.f32 %v352, %v526
      %528 = vmatprep.mubr.f32.mxu0 0.0
      %529 = vmatmul.mubr.f32.gmra.mrb[0].mxu0 %v387
      %v530 = vpop.f32.mrb[0].mxu0
      %v531 = vadd.f32 %v348, %v530
      %v532 = vpop.f32.mrb[0].mxu0
      %v533 = vadd.f32 %v352, %v532
      %534 = vmatprep.mubr.f32.mxu0 0.0
      %535 = vmatmul.mubr.f32.gmra.mrb[0].mxu0 %v390
      %v536 = vpop.f32.mrb[0].mxu0
      %v537 = vadd.f32 %v348, %v536
      %v538 = vpop.f32.mrb[0].mxu0
      %v539 = vadd.f32 %v352, %v538
      %540 = vmatprep.mubr.f32.mxu0 0.0
      %541 = vmatmul.mubr.f32.gmra.mrb[0].mxu0 %v393
      %v542 = vpop.f32.mrb[0].mxu0
      %v543 = vadd.f32 %v348, %v542
      %v544 = vpop.f32.mrb[0].mxu0
      %v545 = vadd.f32 %v352, %v544
      %546 = vmatprep.mubr.f32.mxu0 0.0
      %547 = vmatmul.mubr.f32.gmra.mrb[0].mxu0 %v396
      %v548 = vpop.f32.mrb[0].mxu0
      %v549 = vadd.f32 %v348, %v548
      %v550 = vpop.f32.mrb[0].mxu0
      %v551 = vadd.f32 %v352, %v550
      %552 = vmatprep.mubr.f32.mxu0 0.0
      %553 = vmatmul.mubr.f32.gmra.mrb[0].mxu0 %v399
      %v554 = vpop.f32.mrb[0].mxu0
      %v555 = vadd.f32 %v348, %v554
      %v556 = vpop.f32.mrb[0].mxu0
      %v557 = vadd.f32 %v352, %v556
      %558 = vmatprep.mubr.f32.mxu0 0.0
      %559 = vmatmul.mubr.f32.gmra.mrb[0].mxu0 %v402
      %v560 = vpop.f32.mrb[0].mxu0
      %v561 = vadd.f32 %v348, %v560
      %v562 = vpop.f32.mrb[0].mxu0
      %v563 = vadd.f32 %v352, %v562
      %564 = vdwg.mxu0
      %v565 = vld [vmem:[%s308] sm:$0xff]
      %v566 = vld [vmem:[%s308 + $0x8] sm:$0xff]
      %v567 = vld [vmem:[%s308 + $0x10] sm:$0xff]
      %v568 = vld [vmem:[%s308 + $0x18] sm:$0xff]
      %v569 = vld [vmem:[%s308 + $0x20] sm:$0xff]
      %v570 = vld [vmem:[%s308 + $0x28] sm:$0xff]
      %v571 = vld [vmem:[%s308 + $0x30] sm:$0xff]
      %v572 = vld [vmem:[%s308 + $0x38] sm:$0xff]
      %v573 = vld [vmem:[%s308 + $0x40] sm:$0xff]
      %v574 = vld [vmem:[%s308 + $0x48] sm:$0xff]
      %v575 = vld [vmem:[%s308 + $0x50] sm:$0xff]
      %v576 = vld [vmem:[%s308 + $0x58] sm:$0xff]
      %v577 = vld [vmem:[%s308 + $0x60] sm:$0xff]
      %v578 = vld [vmem:[%s308 + $0x68] sm:$0xff]
      %v579 = vld [vmem:[%s308 + $0x70] sm:$0xff]
      %v580 = vld [vmem:[%s308 + $0x78] sm:$0xff]
      %v581 = vld [vmem:[%s308 + $0x80] sm:$0xff]
      %v582 = vld [vmem:[%s308 + $0x88] sm:$0xff]
      %v583 = vld [vmem:[%s308 + $0x90] sm:$0xff]
      %v584 = vld [vmem:[%s308 + $0x98] sm:$0xff]
      %v585 = vld [vmem:[%s308 + $0xa0] sm:$0xff]
      %v586 = vld [vmem:[%s308 + $0xa8] sm:$0xff]
      %v587 = vld [vmem:[%s308 + $0xb0] sm:$0xff]
      %v588 = vld [vmem:[%s308 + $0xb8] sm:$0xff]
      %v589 = vld [vmem:[%s308 + $0xc0] sm:$0xff]
      %v590 = vld [vmem:[%s308 + $0xc8] sm:$0xff]
      %v591 = vld [vmem:[%s308 + $0xd0] sm:$0xff]
      %v592 = vld [vmem:[%s308 + $0xd8] sm:$0xff]
      %v593 = vld [vmem:[%s308 + $0xe0] sm:$0xff]
      %v594 = vld [vmem:[%s308 + $0xe8] sm:$0xff]
      %v595 = vld [vmem:[%s308 + $0xf0] sm:$0xff]
      %v596 = vld [vmem:[%s308 + $0xf8] sm:$0xff]
      %v597 = vld [vmem:[%s308 + $0x100] sm:$0xff]
      %v598 = vld [vmem:[%s308 + $0x108] sm:$0xff]
      %v599 = vld [vmem:[%s308 + $0x110] sm:$0xff]
      %v600 = vld [vmem:[%s308 + $0x118] sm:$0xff]
      %v601 = vld [vmem:[%s308 + $0x120] sm:$0xff]
      %v602 = vld [vmem:[%s308 + $0x128] sm:$0xff]
      %v603 = vld [vmem:[%s308 + $0x130] sm:$0xff]
      %v604 = vld [vmem:[%s308 + $0x138] sm:$0xff]
      %v605 = vld [vmem:[%s308 + $0x140] sm:$0xff]
      %v606 = vld [vmem:[%s308 + $0x148] sm:$0xff]
      %v607 = vld [vmem:[%s308 + $0x150] sm:$0xff]
      %v608 = vld [vmem:[%s308 + $0x158] sm:$0xff]
      %v609 = vld [vmem:[%s308 + $0x160] sm:$0xff]
      %v610 = vld [vmem:[%s308 + $0x168] sm:$0xff]
      %v611 = vld [vmem:[%s308 + $0x170] sm:$0xff]
      %v612 = vld [vmem:[%s308 + $0x178] sm:$0xff]
      %v613 = vld [vmem:[%s308 + $0x180] sm:$0xff]
      %v614 = vld [vmem:[%s308 + $0x188] sm:$0xff]
      %v615 = vld [vmem:[%s308 + $0x190] sm:$0xff]
      %v616 = vld [vmem:[%s308 + $0x198] sm:$0xff]
      %v617 = vld [vmem:[%s308 + $0x1a0] sm:$0xff]
      %v618 = vld [vmem:[%s308 + $0x1a8] sm:$0xff]
      %v619 = vld [vmem:[%s308 + $0x1b0] sm:$0xff]
      %v620 = vld [vmem:[%s308 + $0x1b8] sm:$0xff]
      %v621 = vld [vmem:[%s308 + $0x1c0] sm:$0xff]
      %v622 = vld [vmem:[%s308 + $0x1c8] sm:$0xff]
      %v623 = vld [vmem:[%s308 + $0x1d0] sm:$0xff]
      %v624 = vld [vmem:[%s308 + $0x1d8] sm:$0xff]
      %v625 = vld [vmem:[%s308 + $0x1e0] sm:$0xff]
      %v626 = vld [vmem:[%s308 + $0x1e8] sm:$0xff]
      %v627 = vld [vmem:[%s308 + $0x1f0] sm:$0xff]
      %v628 = vld [vmem:[%s308 + $0x1f8] sm:$0xff]
      %v629 = vld [vmem:[%s5] sm:$0xff]
      %v630 = vld [vmem:[%s5 + $0x8] sm:$0xff]
      %vm631 = vcmask 130048
      %v633 = vsel %vm631, %v565, 0
      %v636 = vsel %vm631, %v566, 0
      %v639 = vsel %vm631, %v567, 0
      %v642 = vsel %vm631, %v568, 0
      %v645 = vsel %vm631, %v569, 0
      %v648 = vsel %vm631, %v570, 0
      %v651 = vsel %vm631, %v571, 0
      %v654 = vsel %vm631, %v572, 0
      %v657 = vsel %vm631, %v573, 0
      %v660 = vsel %vm631, %v574, 0
      %v663 = vsel %vm631, %v575, 0
      %v666 = vsel %vm631, %v576, 0
      %v669 = vsel %vm631, %v577, 0
      %v672 = vsel %vm631, %v578, 0
      %v675 = vsel %vm631, %v579, 0
      %v678 = vsel %vm631, %v580, 0
      %v681 = vsel %vm631, %v581, 0
      %v684 = vsel %vm631, %v582, 0
      %v687 = vsel %vm631, %v583, 0
      %v690 = vsel %vm631, %v584, 0
      %v693 = vsel %vm631, %v585, 0
      %v696 = vsel %vm631, %v586, 0
      %v699 = vsel %vm631, %v587, 0
      %v702 = vsel %vm631, %v588, 0
      %v705 = vsel %vm631, %v589, 0
      %v708 = vsel %vm631, %v590, 0
      %v711 = vsel %vm631, %v591, 0
      %v714 = vsel %vm631, %v592, 0
      %v717 = vsel %vm631, %v593, 0
      %v720 = vsel %vm631, %v594, 0
      %v723 = vsel %vm631, %v595, 0
      %v726 = vsel %vm631, %v596, 0
      %v729 = vsel %vm631, %v597, 0
      %v732 = vsel %vm631, %v598, 0
      %v735 = vsel %vm631, %v599, 0
      %v738 = vsel %vm631, %v600, 0
      %v741 = vsel %vm631, %v601, 0
      %v744 = vsel %vm631, %v602, 0
      %v747 = vsel %vm631, %v603, 0
      %v750 = vsel %vm631, %v604, 0
      %v753 = vsel %vm631, %v605, 0
      %v756 = vsel %vm631, %v606, 0
      %v759 = vsel %vm631, %v607, 0
      %v762 = vsel %vm631, %v608, 0
      %v765 = vsel %vm631, %v609, 0
      %v768 = vsel %vm631, %v610, 0
      %v771 = vsel %vm631, %v611, 0
      %v774 = vsel %vm631, %v612, 0
      %v777 = vsel %vm631, %v613, 0
      %v780 = vsel %vm631, %v614, 0
      %v783 = vsel %vm631, %v615, 0
      %v786 = vsel %vm631, %v616, 0
      %v789 = vsel %vm631, %v617, 0
      %v792 = vsel %vm631, %v618, 0
      %v795 = vsel %vm631, %v619, 0
      %v798 = vsel %vm631, %v620, 0
      %v801 = vsel %vm631, %v621, 0
      %v804 = vsel %vm631, %v622, 0
      %v807 = vsel %vm631, %v623, 0
      %v810 = vsel %vm631, %v624, 0
      %v813 = vsel %vm631, %v625, 0
      %v816 = vsel %vm631, %v626, 0
      %v819 = vsel %vm631, %v627, 0
      %v822 = vsel %vm631, %v628, 0
      %824 = vmatprep.subr.mxu0 0.0
      %825 = vmatpush1.msra.mxu0 %v629
      %826 = vmatprep.subr.mxu0 0.0
      %827 = vmatpush1.msra.mxu0 %v630
      %828 = vmatprep.subr.mxu0 0.0
      %829 = vmatpush1.msra.mxu0 0.0
      %830 = vmatprep.subr.mxu0 0.0
      %831 = vmatpush1.msra.mxu0 0.0
      %832 = vmatprep.subr.mxu0 0.0
      %833 = vmatpush1.msra.mxu0 0.0
      %834 = vmatprep.subr.mxu0 0.0
      %835 = vmatpush1.msra.mxu0 0.0
      %836 = vmatprep.subr.mxu0 0.0
      %837 = vmatpush1.msra.mxu0 0.0
      %838 = vmatprep.subr.mxu0 0.0
      %839 = vmatpush1.msra.mxu0 0.0
      %840 = vmatprep.subr.mxu0 0.0
      %841 = vmatpush1.msra.mxu0 0.0
      %842 = vmatprep.subr.mxu0 0.0
      %843 = vmatpush1.msra.mxu0 0.0
      %844 = vmatprep.subr.mxu0 0.0
      %845 = vmatpush1.msra.mxu0 0.0
      %846 = vmatprep.subr.mxu0 0.0
      %847 = vmatpush1.msra.mxu0 0.0
      %848 = vmatprep.subr.mxu0 0.0
      %849 = vmatpush1.msra.mxu0 0.0
      %850 = vmatprep.subr.mxu0 0.0
      %851 = vmatpush1.msra.mxu0 0.0
      %852 = vmatprep.subr.mxu0 0.0
      %853 = vmatpush1.msra.mxu0 0.0
      %854 = vmatprep.subr.mxu0 0.0
      %855 = vmatpush1.msra.mxu0 0.0
      %856 = vmatprep.subr.mxu0 0.0
      %857 = vmatpush1.msra.mxu0 0.0
      %858 = vmatprep.subr.mxu0 0.0
      %859 = vmatpush1.msra.mxu0 0.0
      %860 = vmatprep.subr.mxu0 0.0
      %861 = vmatpush1.msra.mxu0 0.0
      %862 = vmatprep.subr.mxu0 0.0
      %863 = vmatpush1.msra.mxu0 0.0
      %864 = vmatprep.subr.mxu0 0.0
      %865 = vmatpush1.msra.mxu0 0.0
      %866 = vmatprep.subr.mxu0 0.0
      %867 = vmatpush1.msra.mxu0 0.0
      %868 = vmatprep.subr.mxu0 0.0
      %869 = vmatpush1.msra.mxu0 0.0
      %870 = vmatprep.subr.mxu0 0.0
      %871 = vmatpush1.msra.mxu0 0.0
      %872 = vmatprep.subr.mxu0 0.0
      %873 = vmatpush1.msra.mxu0 0.0
      %874 = vmatprep.subr.mxu0 0.0
      %875 = vmatpush1.msra.mxu0 0.0
      %876 = vmatprep.subr.mxu0 0.0
      %877 = vmatpush1.msra.mxu0 0.0
      %878 = vmatprep.subr.mxu0 0.0
      %879 = vmatpush1.msra.mxu0 0.0
      %880 = vmatprep.subr.mxu0 0.0
      %881 = vmatpush1.msra.mxu0 0.0
      %882 = vmatprep.subr.mxu0 0.0
      %883 = vmatpush1.msra.mxu0 0.0
      %884 = vmatprep.subr.mxu0 0.0
      %885 = vmatpush1.msra.mxu0 0.0
      %886 = vmatprep.subr.mxu0 0.0
      %887 = vmatpush1.msra.mxu0 0.0
      %888 = vmatprep.mubr.f32.mxu0 0.0
      %889 = vmatmul.mubr.f32.gmra.mrb[0].mxu0 %v633
      %v890 = vpop.f32.mrb[0].mxu0
      %v891 = vadd.f32 0.0, %v890
      %v892 = vpop.f32.mrb[0].mxu0
      %893 = vmatprep.mubr.f32.mxu0 0.0
      %894 = vmatmul.mubr.f32.gmra.mrb[0].mxu0 %v636
      %v895 = vpop.f32.mrb[0].mxu0
      %v896 = vadd.f32 0.0, %v895
      %v897 = vpop.f32.mrb[0].mxu0
      %898 = vmatprep.mubr.f32.mxu0 0.0
      %899 = vmatmul.mubr.f32.gmra.mrb[0].mxu0 %v639
      %v900 = vpop.f32.mrb[0].mxu0
      %v901 = vadd.f32 0.0, %v900
      %v902 = vpop.f32.mrb[0].mxu0
      %903 = vmatprep.mubr.f32.mxu0 0.0
      %904 = vmatmul.mubr.f32.gmra.mrb[0].mxu0 %v642
      %v905 = vpop.f32.mrb[0].mxu0
      %v906 = vadd.f32 0.0, %v905
      %v907 = vpop.f32.mrb[0].mxu0
      %908 = vmatprep.mubr.f32.mxu0 0.0
      %909 = vmatmul.mubr.f32.gmra.mrb[0].mxu0 %v645
      %v910 = vpop.f32.mrb[0].mxu0
      %v911 = vadd.f32 0.0, %v910
      %v912 = vpop.f32.mrb[0].mxu0
      %913 = vmatprep.mubr.f32.mxu0 0.0
      %914 = vmatmul.mubr.f32.gmra.mrb[0].mxu0 %v648
      %v915 = vpop.f32.mrb[0].mxu0
      %v916 = vadd.f32 0.0, %v915
      %v917 = vpop.f32.mrb[0].mxu0
      %918 = vmatprep.mubr.f32.mxu0 0.0
      %919 = vmatmul.mubr.f32.gmra.mrb[0].mxu0 %v651
      %v920 = vpop.f32.mrb[0].mxu0
      %v921 = vadd.f32 0.0, %v920
      %v922 = vpop.f32.mrb[0].mxu0
      %923 = vmatprep.mubr.f32.mxu0 0.0
      %924 = vmatmul.mubr.f32.gmra.mrb[0].mxu0 %v654
      %v925 = vpop.f32.mrb[0].mxu0
      %v926 = vadd.f32 0.0, %v925
      %v927 = vpop.f32.mrb[0].mxu0
      %928 = vmatprep.mubr.f32.mxu0 0.0
      %929 = vmatmul.mubr.f32.gmra.mrb[0].mxu0 %v657
      %v930 = vpop.f32.mrb[0].mxu0
      %v931 = vadd.f32 0.0, %v930
      %v932 = vpop.f32.mrb[0].mxu0
      %933 = vmatprep.mubr.f32.mxu0 0.0
      %934 = vmatmul.mubr.f32.gmra.mrb[0].mxu0 %v660
      %v935 = vpop.f32.mrb[0].mxu0
      %v936 = vadd.f32 0.0, %v935
      %v937 = vpop.f32.mrb[0].mxu0
      %938 = vmatprep.mubr.f32.mxu0 0.0
      %939 = vmatmul.mubr.f32.gmra.mrb[0].mxu0 %v663
      %v940 = vpop.f32.mrb[0].mxu0
      %v941 = vadd.f32 0.0, %v940
      %v942 = vpop.f32.mrb[0].mxu0
      %943 = vmatprep.mubr.f32.mxu0 0.0
      %944 = vmatmul.mubr.f32.gmra.mrb[0].mxu0 %v666
      %v945 = vpop.f32.mrb[0].mxu0
      %v946 = vadd.f32 0.0, %v945
      %v947 = vpop.f32.mrb[0].mxu0
      %948 = vmatprep.mubr.f32.mxu0 0.0
      %949 = vmatmul.mubr.f32.gmra.mrb[0].mxu0 %v669
      %v950 = vpop.f32.mrb[0].mxu0
      %v951 = vadd.f32 0.0, %v950
      %v952 = vpop.f32.mrb[0].mxu0
      %953 = vmatprep.mubr.f32.mxu0 0.0
      %954 = vmatmul.mubr.f32.gmra.mrb[0].mxu0 %v672
      %v955 = vpop.f32.mrb[0].mxu0
      %v956 = vadd.f32 0.0, %v955
      %v957 = vpop.f32.mrb[0].mxu0
      %958 = vmatprep.mubr.f32.mxu0 0.0
      %959 = vmatmul.mubr.f32.gmra.mrb[0].mxu0 %v675
      %v960 = vpop.f32.mrb[0].mxu0
      %v961 = vadd.f32 0.0, %v960
      %v962 = vpop.f32.mrb[0].mxu0
      %963 = vmatprep.mubr.f32.mxu0 0.0
      %964 = vmatmul.mubr.f32.gmra.mrb[0].mxu0 %v678
      %v965 = vpop.f32.mrb[0].mxu0
      %v966 = vadd.f32 0.0, %v965
      %v967 = vpop.f32.mrb[0].mxu0
      %968 = vmatprep.mubr.f32.mxu0 0.0
      %969 = vmatmul.mubr.f32.gmra.mrb[0].mxu0 %v681
      %v970 = vpop.f32.mrb[0].mxu0
      %v971 = vadd.f32 0.0, %v970
      %v972 = vpop.f32.mrb[0].mxu0
      %973 = vmatprep.mubr.f32.mxu0 0.0
      %974 = vmatmul.mubr.f32.gmra.mrb[0].mxu0 %v684
      %v975 = vpop.f32.mrb[0].mxu0
      %v976 = vadd.f32 0.0, %v975
      %v977 = vpop.f32.mrb[0].mxu0
      %978 = vmatprep.mubr.f32.mxu0 0.0
      %979 = vmatmul.mubr.f32.gmra.mrb[0].mxu0 %v687
      %v980 = vpop.f32.mrb[0].mxu0
      %v981 = vadd.f32 0.0, %v980
      %v982 = vpop.f32.mrb[0].mxu0
      %983 = vmatprep.mubr.f32.mxu0 0.0
      %984 = vmatmul.mubr.f32.gmra.mrb[0].mxu0 %v690
      %v985 = vpop.f32.mrb[0].mxu0
      %v986 = vadd.f32 0.0, %v985
      %v987 = vpop.f32.mrb[0].mxu0
      %988 = vmatprep.mubr.f32.mxu0 0.0
      %989 = vmatmul.mubr.f32.gmra.mrb[0].mxu0 %v693
      %v990 = vpop.f32.mrb[0].mxu0
      %v991 = vadd.f32 0.0, %v990
      %v992 = vpop.f32.mrb[0].mxu0
      %993 = vmatprep.mubr.f32.mxu0 0.0
      %994 = vmatmul.mubr.f32.gmra.mrb[0].mxu0 %v696
      %v995 = vpop.f32.mrb[0].mxu0
      %v996 = vadd.f32 0.0, %v995
      %v997 = vpop.f32.mrb[0].mxu0
      %998 = vmatprep.mubr.f32.mxu0 0.0
      %999 = vmatmul.mubr.f32.gmra.mrb[0].mxu0 %v699
      %v1000 = vpop.f32.mrb[0].mxu0
      %v1001 = vadd.f32 0.0, %v1000
      %v1002 = vpop.f32.mrb[0].mxu0
      %1003 = vmatprep.mubr.f32.mxu0 0.0
      %1004 = vmatmul.mubr.f32.gmra.mrb[0].mxu0 %v702
      %v1005 = vpop.f32.mrb[0].mxu0
      %v1006 = vadd.f32 0.0, %v1005
      %v1007 = vpop.f32.mrb[0].mxu0
      %1008 = vmatprep.mubr.f32.mxu0 0.0
      %1009 = vmatmul.mubr.f32.gmra.mrb[0].mxu0 %v705
      %v1010 = vpop.f32.mrb[0].mxu0
      %v1011 = vadd.f32 0.0, %v1010
      %v1012 = vpop.f32.mrb[0].mxu0
      %1013 = vmatprep.mubr.f32.mxu0 0.0
      %1014 = vmatmul.mubr.f32.gmra.mrb[0].mxu0 %v708
      %v1015 = vpop.f32.mrb[0].mxu0
      %v1016 = vadd.f32 0.0, %v1015
      %v1017 = vpop.f32.mrb[0].mxu0
      %1018 = vmatprep.mubr.f32.mxu0 0.0
      %1019 = vmatmul.mubr.f32.gmra.mrb[0].mxu0 %v711
      %v1020 = vpop.f32.mrb[0].mxu0
      %v1021 = vadd.f32 0.0, %v1020
      %v1022 = vpop.f32.mrb[0].mxu0
      %1023 = vmatprep.mubr.f32.mxu0 0.0
      %1024 = vmatmul.mubr.f32.gmra.mrb[0].mxu0 %v714
      %v1025 = vpop.f32.mrb[0].mxu0
      %v1026 = vadd.f32 0.0, %v1025
      %v1027 = vpop.f32.mrb[0].mxu0
      %1028 = vmatprep.mubr.f32.mxu0 0.0
      %1029 = vmatmul.mubr.f32.gmra.mrb[0].mxu0 %v717
      %v1030 = vpop.f32.mrb[0].mxu0
      %v1031 = vadd.f32 0.0, %v1030
      %v1032 = vpop.f32.mrb[0].mxu0
      %1033 = vmatprep.mubr.f32.mxu0 0.0
      %1034 = vmatmul.mubr.f32.gmra.mrb[0].mxu0 %v720
      %v1035 = vpop.f32.mrb[0].mxu0
      %v1036 = vadd.f32 0.0, %v1035
      %v1037 = vpop.f32.mrb[0].mxu0
      %1038 = vmatprep.mubr.f32.mxu0 0.0
      %1039 = vmatmul.mubr.f32.gmra.mrb[0].mxu0 %v723
      %v1040 = vpop.f32.mrb[0].mxu0
      %v1041 = vadd.f32 0.0, %v1040
      %v1042 = vpop.f32.mrb[0].mxu0
      %1043 = vmatprep.mubr.f32.mxu0 0.0
      %1044 = vmatmul.mubr.f32.gmra.mrb[0].mxu0 %v726
      %v1045 = vpop.f32.mrb[0].mxu0
      %v1046 = vadd.f32 0.0, %v1045
      %v1047 = vpop.f32.mrb[0].mxu0
      %1048 = vmatprep.mubr.f32.mxu0 0.0
      %1049 = vmatmul.mubr.f32.gmra.mrb[0].mxu0 %v729
      %v1050 = vpop.f32.mrb[0].mxu0
      %v1051 = vadd.f32 0.0, %v1050
      %v1052 = vpop.f32.mrb[0].mxu0
      %1053 = vmatprep.mubr.f32.mxu0 0.0
      %1054 = vmatmul.mubr.f32.gmra.mrb[0].mxu0 %v732
      %v1055 = vpop.f32.mrb[0].mxu0
      %v1056 = vadd.f32 0.0, %v1055
      %v1057 = vpop.f32.mrb[0].mxu0
      %1058 = vmatprep.mubr.f32.mxu0 0.0
      %1059 = vmatmul.mubr.f32.gmra.mrb[0].mxu0 %v735
      %v1060 = vpop.f32.mrb[0].mxu0
      %v1061 = vadd.f32 0.0, %v1060
      %v1062 = vpop.f32.mrb[0].mxu0
      %1063 = vmatprep.mubr.f32.mxu0 0.0
      %1064 = vmatmul.mubr.f32.gmra.mrb[0].mxu0 %v738
      %v1065 = vpop.f32.mrb[0].mxu0
      %v1066 = vadd.f32 0.0, %v1065
      %v1067 = vpop.f32.mrb[0].mxu0
      %1068 = vmatprep.mubr.f32.mxu0 0.0
      %1069 = vmatmul.mubr.f32.gmra.mrb[0].mxu0 %v741
      %v1070 = vpop.f32.mrb[0].mxu0
      %v1071 = vadd.f32 0.0, %v1070
      %v1072 = vpop.f32.mrb[0].mxu0
      %1073 = vmatprep.mubr.f32.mxu0 0.0
      %1074 = vmatmul.mubr.f32.gmra.mrb[0].mxu0 %v744
      %v1075 = vpop.f32.mrb[0].mxu0
      %v1076 = vadd.f32 0.0, %v1075
      %v1077 = vpop.f32.mrb[0].mxu0
      %1078 = vmatprep.mubr.f32.mxu0 0.0
      %1079 = vmatmul.mubr.f32.gmra.mrb[0].mxu0 %v747
      %v1080 = vpop.f32.mrb[0].mxu0
      %v1081 = vadd.f32 0.0, %v1080
      %v1082 = vpop.f32.mrb[0].mxu0
      %1083 = vmatprep.mubr.f32.mxu0 0.0
      %1084 = vmatmul.mubr.f32.gmra.mrb[0].mxu0 %v750
      %v1085 = vpop.f32.mrb[0].mxu0
      %v1086 = vadd.f32 0.0, %v1085
      %v1087 = vpop.f32.mrb[0].mxu0
      %1088 = vmatprep.mubr.f32.mxu0 0.0
      %1089 = vmatmul.mubr.f32.gmra.mrb[0].mxu0 %v753
      %v1090 = vpop.f32.mrb[0].mxu0
      %v1091 = vadd.f32 0.0, %v1090
      %v1092 = vpop.f32.mrb[0].mxu0
      %1093 = vmatprep.mubr.f32.mxu0 0.0
      %1094 = vmatmul.mubr.f32.gmra.mrb[0].mxu0 %v756
      %v1095 = vpop.f32.mrb[0].mxu0
      %v1096 = vadd.f32 0.0, %v1095
      %v1097 = vpop.f32.mrb[0].mxu0
      %1098 = vmatprep.mubr.f32.mxu0 0.0
      %1099 = vmatmul.mubr.f32.gmra.mrb[0].mxu0 %v759
      %v1100 = vpop.f32.mrb[0].mxu0
      %v1101 = vadd.f32 0.0, %v1100
      %v1102 = vpop.f32.mrb[0].mxu0
      %1103 = vmatprep.mubr.f32.mxu0 0.0
      %1104 = vmatmul.mubr.f32.gmra.mrb[0].mxu0 %v762
      %v1105 = vpop.f32.mrb[0].mxu0
      %v1106 = vadd.f32 0.0, %v1105
      %v1107 = vpop.f32.mrb[0].mxu0
      %1108 = vmatprep.mubr.f32.mxu0 0.0
      %1109 = vmatmul.mubr.f32.gmra.mrb[0].mxu0 %v765
      %v1110 = vpop.f32.mrb[0].mxu0
      %v1111 = vadd.f32 0.0, %v1110
      %v1112 = vpop.f32.mrb[0].mxu0
      %1113 = vmatprep.mubr.f32.mxu0 0.0
      %1114 = vmatmul.mubr.f32.gmra.mrb[0].mxu0 %v768
      %v1115 = vpop.f32.mrb[0].mxu0
      %v1116 = vadd.f32 0.0, %v1115
      %v1117 = vpop.f32.mrb[0].mxu0
      %1118 = vmatprep.mubr.f32.mxu0 0.0
      %1119 = vmatmul.mubr.f32.gmra.mrb[0].mxu0 %v771
      %v1120 = vpop.f32.mrb[0].mxu0
      %v1121 = vadd.f32 0.0, %v1120
      %v1122 = vpop.f32.mrb[0].mxu0
      %1123 = vmatprep.mubr.f32.mxu0 0.0
      %1124 = vmatmul.mubr.f32.gmra.mrb[0].mxu0 %v774
      %v1125 = vpop.f32.mrb[0].mxu0
      %v1126 = vadd.f32 0.0, %v1125
      %v1127 = vpop.f32.mrb[0].mxu0
      %1128 = vmatprep.mubr.f32.mxu0 0.0
      %1129 = vmatmul.mubr.f32.gmra.mrb[0].mxu0 %v777
      %v1130 = vpop.f32.mrb[0].mxu0
      %v1131 = vadd.f32 0.0, %v1130
      %v1132 = vpop.f32.mrb[0].mxu0
      %1133 = vmatprep.mubr.f32.mxu0 0.0
      %1134 = vmatmul.mubr.f32.gmra.mrb[0].mxu0 %v780
      %v1135 = vpop.f32.mrb[0].mxu0
      %v1136 = vadd.f32 0.0, %v1135
      %v1137 = vpop.f32.mrb[0].mxu0
      %1138 = vmatprep.mubr.f32.mxu0 0.0
      %1139 = vmatmul.mubr.f32.gmra.mrb[0].mxu0 %v783
      %v1140 = vpop.f32.mrb[0].mxu0
      %v1141 = vadd.f32 0.0, %v1140
      %v1142 = vpop.f32.mrb[0].mxu0
      %1143 = vmatprep.mubr.f32.mxu0 0.0
      %1144 = vmatmul.mubr.f32.gmra.mrb[0].mxu0 %v786
      %v1145 = vpop.f32.mrb[0].mxu0
      %v1146 = vadd.f32 0.0, %v1145
      %v1147 = vpop.f32.mrb[0].mxu0
      %1148 = vmatprep.mubr.f32.mxu0 0.0
      %1149 = vmatmul.mubr.f32.gmra.mrb[0].mxu0 %v789
      %v1150 = vpop.f32.mrb[0].mxu0
      %v1151 = vadd.f32 0.0, %v1150
      %v1152 = vpop.f32.mrb[0].mxu0
      %1153 = vmatprep.mubr.f32.mxu0 0.0
      %1154 = vmatmul.mubr.f32.gmra.mrb[0].mxu0 %v792
      %v1155 = vpop.f32.mrb[0].mxu0
      %v1156 = vadd.f32 0.0, %v1155
      %v1157 = vpop.f32.mrb[0].mxu0
      %1158 = vmatprep.mubr.f32.mxu0 0.0
      %1159 = vmatmul.mubr.f32.gmra.mrb[0].mxu0 %v795
      %v1160 = vpop.f32.mrb[0].mxu0
      %v1161 = vadd.f32 0.0, %v1160
      %v1162 = vpop.f32.mrb[0].mxu0
      %1163 = vmatprep.mubr.f32.mxu0 0.0
      %1164 = vmatmul.mubr.f32.gmra.mrb[0].mxu0 %v798
      %v1165 = vpop.f32.mrb[0].mxu0
      %v1166 = vadd.f32 0.0, %v1165
      %v1167 = vpop.f32.mrb[0].mxu0
      %1168 = vmatprep.mubr.f32.mxu0 0.0
      %1169 = vmatmul.mubr.f32.gmra.mrb[0].mxu0 %v801
      %v1170 = vpop.f32.mrb[0].mxu0
      %v1171 = vadd.f32 0.0, %v1170
      %v1172 = vpop.f32.mrb[0].mxu0
      %1173 = vmatprep.mubr.f32.mxu0 0.0
      %1174 = vmatmul.mubr.f32.gmra.mrb[0].mxu0 %v804
      %v1175 = vpop.f32.mrb[0].mxu0
      %v1176 = vadd.f32 0.0, %v1175
      %v1177 = vpop.f32.mrb[0].mxu0
      %1178 = vmatprep.mubr.f32.mxu0 0.0
      %1179 = vmatmul.mubr.f32.gmra.mrb[0].mxu0 %v807
      %v1180 = vpop.f32.mrb[0].mxu0
      %v1181 = vadd.f32 0.0, %v1180
      %v1182 = vpop.f32.mrb[0].mxu0
      %1183 = vmatprep.mubr.f32.mxu0 0.0
      %1184 = vmatmul.mubr.f32.gmra.mrb[0].mxu0 %v810
      %v1185 = vpop.f32.mrb[0].mxu0
      %v1186 = vadd.f32 0.0, %v1185
      %v1187 = vpop.f32.mrb[0].mxu0
      %1188 = vmatprep.mubr.f32.mxu0 0.0
      %1189 = vmatmul.mubr.f32.gmra.mrb[0].mxu0 %v813
      %v1190 = vpop.f32.mrb[0].mxu0
      %v1191 = vadd.f32 0.0, %v1190
      %v1192 = vpop.f32.mrb[0].mxu0
      %1193 = vmatprep.mubr.f32.mxu0 0.0
      %1194 = vmatmul.mubr.f32.gmra.mrb[0].mxu0 %v816
      %v1195 = vpop.f32.mrb[0].mxu0
      %v1196 = vadd.f32 0.0, %v1195
      %v1197 = vpop.f32.mrb[0].mxu0
      %1198 = vmatprep.mubr.f32.mxu0 0.0
      %1199 = vmatmul.mubr.f32.gmra.mrb[0].mxu0 %v819
      %v1200 = vpop.f32.mrb[0].mxu0
      %v1201 = vadd.f32 0.0, %v1200
      %v1202 = vpop.f32.mrb[0].mxu0
      %1203 = vmatprep.mubr.f32.mxu0 0.0
      %1204 = vmatmul.mubr.f32.gmra.mrb[0].mxu0 %v822
      %v1205 = vpop.f32.mrb[0].mxu0
      %v1206 = vadd.f32 0.0, %v1205
      %v1207 = vpop.f32.mrb[0].mxu0
      %1208 = vdwg.mxu0
      %v1209 = vld [vmem:[%s313] sm:$0xff]
      %v1210 = vlaneseq
      %v1211 = vshrl.u32 %v1210, 7
      %v1212 = vadd.s32 %v1211, 8
      %v1213 = vadd.s32 %v1211, 16
      %v1214 = vadd.s32 %v1211, 24
      %v1215 = vadd.s32 %v1211, 32
      %v1216 = vadd.s32 %v1211, 40
      %v1217 = vadd.s32 %v1211, 48
      %v1218 = vadd.s32 %v1211, 56
      %v1219 = vadd.s32 %v1211, 64
      %v1220 = vadd.s32 %v1211, 72
      %v1221 = vadd.s32 %v1211, 80
      %v1222 = vadd.s32 %v1211, 88
      %v1223 = vadd.s32 %v1211, 96
      %v1224 = vadd.s32 %v1211, 104
      %v1225 = vadd.s32 %v1211, 112
      %v1226 = vadd.s32 %v1211, 120
      %v1227 = vlaneseq
      %v1228 = vshrl.u32 %v1227, 7
      %v1229 = vsub.s32 0, %v1228
      %v1230 = vrot.slane %v1209, %v1229
      %v1231 = vlaneseq
      %v1232 = vshrl.u32 %v1231, 7
      %v1233 = vsub.s32 2, %v1232
      %v1234 = vrot.slane %v1209, %v1233
      %v1235 = vlaneseq
      %v1236 = vshrl.u32 %v1235, 7
      %v1237 = vsub.s32 4, %v1236
      %v1238 = vrot.slane %v1209, %v1237
      %v1239 = vlaneseq
      %v1240 = vshrl.u32 %v1239, 7
      %v1241 = vsub.s32 6, %v1240
      %v1242 = vrot.slane %v1209, %v1241
      %v1243 = vlaneseq
      %v1244 = vshrl.u32 %v1243, 7
      %v1245 = vsub.s32 0, %v1244
      %v1246 = vrot.slane %v1230, %v1245
      %v1247 = vlaneseq
      %v1248 = vshrl.u32 %v1247, 7
      %v1249 = vsub.s32 0, %v1248
      %v1250 = vrot.slane %v1234, %v1249
      %v1251 = vlaneseq
      %v1252 = vshrl.u32 %v1251, 7
      %v1253 = vsub.s32 0, %v1252
      %v1254 = vrot.slane %v1238, %v1253
      %v1255 = vlaneseq
      %v1256 = vshrl.u32 %v1255, 7
      %v1257 = vsub.s32 0, %v1256
      %v1258 = vrot.slane %v1242, %v1257
      %vm1259 = vcmp.eq.s32.totalorder %v1211, %v1246
      %vm1260 = vcmp.eq.s32.totalorder %v1211, %v1250
      %vm1261 = vcmp.eq.s32.totalorder %v1211, %v1254
      %vm1262 = vcmp.eq.s32.totalorder %v1211, %v1258
      %vm1263 = vcmp.eq.s32.totalorder %v1212, %v1246
      %vm1264 = vcmp.eq.s32.totalorder %v1212, %v1250
      %vm1265 = vcmp.eq.s32.totalorder %v1212, %v1254
      %vm1266 = vcmp.eq.s32.totalorder %v1212, %v1258
      %vm1267 = vcmp.eq.s32.totalorder %v1213, %v1246
      %vm1268 = vcmp.eq.s32.totalorder %v1213, %v1250
      %vm1269 = vcmp.eq.s32.totalorder %v1213, %v1254
      %vm1270 = vcmp.eq.s32.totalorder %v1213, %v1258
      %vm1271 = vcmp.eq.s32.totalorder %v1214, %v1246
      %vm1272 = vcmp.eq.s32.totalorder %v1214, %v1250
      %vm1273 = vcmp.eq.s32.totalorder %v1214, %v1254
      %vm1274 = vcmp.eq.s32.totalorder %v1214, %v1258
      %vm1275 = vcmp.eq.s32.totalorder %v1215, %v1246
      %vm1276 = vcmp.eq.s32.totalorder %v1215, %v1250
      %vm1277 = vcmp.eq.s32.totalorder %v1215, %v1254
      %vm1278 = vcmp.eq.s32.totalorder %v1215, %v1258
      %vm1279 = vcmp.eq.s32.totalorder %v1216, %v1246
      %vm1280 = vcmp.eq.s32.totalorder %v1216, %v1250
      %vm1281 = vcmp.eq.s32.totalorder %v1216, %v1254
      %vm1282 = vcmp.eq.s32.totalorder %v1216, %v1258
      %vm1283 = vcmp.eq.s32.totalorder %v1217, %v1246
      %vm1284 = vcmp.eq.s32.totalorder %v1217, %v1250
      %vm1285 = vcmp.eq.s32.totalorder %v1217, %v1254
      %vm1286 = vcmp.eq.s32.totalorder %v1217, %v1258
      %vm1287 = vcmp.eq.s32.totalorder %v1218, %v1246
      %vm1288 = vcmp.eq.s32.totalorder %v1218, %v1250
      %vm1289 = vcmp.eq.s32.totalorder %v1218, %v1254
      %vm1290 = vcmp.eq.s32.totalorder %v1218, %v1258
      %vm1291 = vcmp.eq.s32.totalorder %v1219, %v1246
      %vm1292 = vcmp.eq.s32.totalorder %v1219, %v1250
      %vm1293 = vcmp.eq.s32.totalorder %v1219, %v1254
      %vm1294 = vcmp.eq.s32.totalorder %v1219, %v1258
      %vm1295 = vcmp.eq.s32.totalorder %v1220, %v1246
      %vm1296 = vcmp.eq.s32.totalorder %v1220, %v1250
      %vm1297 = vcmp.eq.s32.totalorder %v1220, %v1254
      %vm1298 = vcmp.eq.s32.totalorder %v1220, %v1258
      %vm1299 = vcmp.eq.s32.totalorder %v1221, %v1246
      %vm1300 = vcmp.eq.s32.totalorder %v1221, %v1250
      %vm1301 = vcmp.eq.s32.totalorder %v1221, %v1254
      %vm1302 = vcmp.eq.s32.totalorder %v1221, %v1258
      %vm1303 = vcmp.eq.s32.totalorder %v1222, %v1246
      %vm1304 = vcmp.eq.s32.totalorder %v1222, %v1250
      %vm1305 = vcmp.eq.s32.totalorder %v1222, %v1254
      %vm1306 = vcmp.eq.s32.totalorder %v1222, %v1258
      %vm1307 = vcmp.eq.s32.totalorder %v1223, %v1246
      %vm1308 = vcmp.eq.s32.totalorder %v1223, %v1250
      %vm1309 = vcmp.eq.s32.totalorder %v1223, %v1254
      %vm1310 = vcmp.eq.s32.totalorder %v1223, %v1258
      %vm1311 = vcmp.eq.s32.totalorder %v1224, %v1246
      %vm1312 = vcmp.eq.s32.totalorder %v1224, %v1250
      %vm1313 = vcmp.eq.s32.totalorder %v1224, %v1254
      %vm1314 = vcmp.eq.s32.totalorder %v1224, %v1258
      %vm1315 = vcmp.eq.s32.totalorder %v1225, %v1246
      %vm1316 = vcmp.eq.s32.totalorder %v1225, %v1250
      %vm1317 = vcmp.eq.s32.totalorder %v1225, %v1254
      %vm1318 = vcmp.eq.s32.totalorder %v1225, %v1258
      %vm1319 = vcmp.eq.s32.totalorder %v1226, %v1246
      %vm1320 = vcmp.eq.s32.totalorder %v1226, %v1250
      %vm1321 = vcmp.eq.s32.totalorder %v1226, %v1254
      %vm1322 = vcmp.eq.s32.totalorder %v1226, %v1258
      %v1323 = vsel %vm1259, 1, 0
      %v1324 = vsel %vm1260, 1, 0
      %v1325 = vsel %vm1261, 1, 0
      %v1326 = vsel %vm1262, 1, 0
      %v1327 = vsel %vm1263, 1, 0
      %v1328 = vsel %vm1264, 1, 0
      %v1329 = vsel %vm1265, 1, 0
      %v1330 = vsel %vm1266, 1, 0
      %v1331 = vsel %vm1267, 1, 0
      %v1332 = vsel %vm1268, 1, 0
      %v1333 = vsel %vm1269, 1, 0
      %v1334 = vsel %vm1270, 1, 0
      %v1335 = vsel %vm1271, 1, 0
      %v1336 = vsel %vm1272, 1, 0
      %v1337 = vsel %vm1273, 1, 0
      %v1338 = vsel %vm1274, 1, 0
      %v1339 = vsel %vm1275, 1, 0
      %v1340 = vsel %vm1276, 1, 0
      %v1341 = vsel %vm1277, 1, 0
      %v1342 = vsel %vm1278, 1, 0
      %v1343 = vsel %vm1279, 1, 0
      %v1344 = vsel %vm1280, 1, 0
      %v1345 = vsel %vm1281, 1, 0
      %v1346 = vsel %vm1282, 1, 0
      %v1347 = vsel %vm1283, 1, 0
      %v1348 = vsel %vm1284, 1, 0
      %v1349 = vsel %vm1285, 1, 0
      %v1350 = vsel %vm1286, 1, 0
      %v1351 = vsel %vm1287, 1, 0
      %v1352 = vsel %vm1288, 1, 0
      %v1353 = vsel %vm1289, 1, 0
      %v1354 = vsel %vm1290, 1, 0
      %v1355 = vsel %vm1291, 1, 0
      %v1356 = vsel %vm1292, 1, 0
      %v1357 = vsel %vm1293, 1, 0
      %v1358 = vsel %vm1294, 1, 0
      %v1359 = vsel %vm1295, 1, 0
      %v1360 = vsel %vm1296, 1, 0
      %v1361 = vsel %vm1297, 1, 0
      %v1362 = vsel %vm1298, 1, 0
      %v1363 = vsel %vm1299, 1, 0
      %v1364 = vsel %vm1300, 1, 0
      %v1365 = vsel %vm1301, 1, 0
      %v1366 = vsel %vm1302, 1, 0
      %v1367 = vsel %vm1303, 1, 0
      %v1368 = vsel %vm1304, 1, 0
      %v1369 = vsel %vm1305, 1, 0
      %v1370 = vsel %vm1306, 1, 0
      %v1371 = vsel %vm1307, 1, 0
      %v1372 = vsel %vm1308, 1, 0
      %v1373 = vsel %vm1309, 1, 0
      %v1374 = vsel %vm1310, 1, 0
      %v1375 = vsel %vm1311, 1, 0
      %v1376 = vsel %vm1312, 1, 0
      %v1377 = vsel %vm1313, 1, 0
      %v1378 = vsel %vm1314, 1, 0
      %v1379 = vsel %vm1315, 1, 0
      %v1380 = vsel %vm1316, 1, 0
      %v1381 = vsel %vm1317, 1, 0
      %v1382 = vsel %vm1318, 1, 0
      %v1383 = vsel %vm1319, 1, 0
      %v1384 = vsel %vm1320, 1, 0
      %v1385 = vsel %vm1321, 1, 0
      %v1386 = vsel %vm1322, 1, 0
      %v1387 = vcvt.s32.f32 %v1323
      %v1388 = vcvt.s32.f32 %v1324
      %v1389 = vcvt.s32.f32 %v1325
      %v1390 = vcvt.s32.f32 %v1326
      %v1391 = vcvt.s32.f32 %v1327
      %v1392 = vcvt.s32.f32 %v1328
      %v1393 = vcvt.s32.f32 %v1329
      %v1394 = vcvt.s32.f32 %v1330
      %v1395 = vcvt.s32.f32 %v1331
      %v1396 = vcvt.s32.f32 %v1332
      %v1397 = vcvt.s32.f32 %v1333
      %v1398 = vcvt.s32.f32 %v1334
      %v1399 = vcvt.s32.f32 %v1335
      %v1400 = vcvt.s32.f32 %v1336
      %v1401 = vcvt.s32.f32 %v1337
      %v1402 = vcvt.s32.f32 %v1338
      %v1403 = vcvt.s32.f32 %v1339
      %v1404 = vcvt.s32.f32 %v1340
      %v1405 = vcvt.s32.f32 %v1341
      %v1406 = vcvt.s32.f32 %v1342
      %v1407 = vcvt.s32.f32 %v1343
      %v1408 = vcvt.s32.f32 %v1344
      %v1409 = vcvt.s32.f32 %v1345
      %v1410 = vcvt.s32.f32 %v1346
      %v1411 = vcvt.s32.f32 %v1347
      %v1412 = vcvt.s32.f32 %v1348
      %v1413 = vcvt.s32.f32 %v1349
      %v1414 = vcvt.s32.f32 %v1350
      %v1415 = vcvt.s32.f32 %v1351
      %v1416 = vcvt.s32.f32 %v1352
      %v1417 = vcvt.s32.f32 %v1353
      %v1418 = vcvt.s32.f32 %v1354
      %v1419 = vcvt.s32.f32 %v1355
      %v1420 = vcvt.s32.f32 %v1356
      %v1421 = vcvt.s32.f32 %v1357
      %v1422 = vcvt.s32.f32 %v1358
      %v1423 = vcvt.s32.f32 %v1359
      %v1424 = vcvt.s32.f32 %v1360
      %v1425 = vcvt.s32.f32 %v1361
      %v1426 = vcvt.s32.f32 %v1362
      %v1427 = vcvt.s32.f32 %v1363
      %v1428 = vcvt.s32.f32 %v1364
      %v1429 = vcvt.s32.f32 %v1365
      %v1430 = vcvt.s32.f32 %v1366
      %v1431 = vcvt.s32.f32 %v1367
      %v1432 = vcvt.s32.f32 %v1368
      %v1433 = vcvt.s32.f32 %v1369
      %v1434 = vcvt.s32.f32 %v1370
      %v1435 = vcvt.s32.f32 %v1371
      %v1436 = vcvt.s32.f32 %v1372
      %v1437 = vcvt.s32.f32 %v1373
      %v1438 = vcvt.s32.f32 %v1374
      %v1439 = vcvt.s32.f32 %v1375
      %v1440 = vcvt.s32.f32 %v1376
      %v1441 = vcvt.s32.f32 %v1377
      %v1442 = vcvt.s32.f32 %v1378
      %v1443 = vcvt.s32.f32 %v1379
      %v1444 = vcvt.s32.f32 %v1380
      %v1445 = vcvt.s32.f32 %v1381
      %v1446 = vcvt.s32.f32 %v1382
      %v1447 = vcvt.s32.f32 %v1383
      %v1448 = vcvt.s32.f32 %v1384
      %v1449 = vcvt.s32.f32 %v1385
      %v1450 = vcvt.s32.f32 %v1386
      %v1451 = vlaneseq
      %v1452 = vshrl.u32 %v1451, 7
      %v1453 = vsub.s32 1, %v1452
      %v1454 = vrot.slane %v1209, %v1453
      %v1455 = vlaneseq
      %v1456 = vshrl.u32 %v1455, 7
      %v1457 = vsub.s32 3, %v1456
      %v1458 = vrot.slane %v1209, %v1457
      %v1459 = vlaneseq
      %v1460 = vshrl.u32 %v1459, 7
      %v1461 = vsub.s32 5, %v1460
      %v1462 = vrot.slane %v1209, %v1461
      %v1463 = vlaneseq
      %v1464 = vshrl.u32 %v1463, 7
      %v1465 = vsub.s32 7, %v1464
      %v1466 = vrot.slane %v1209, %v1465
      %v1467 = vlaneseq
      %v1468 = vshrl.u32 %v1467, 7
      %v1469 = vsub.s32 1, %v1468
      %v1470 = vrot.slane %v1454, %v1469
      %v1471 = vlaneseq
      %v1472 = vshrl.u32 %v1471, 7
      %v1473 = vsub.s32 1, %v1472
      %v1474 = vrot.slane %v1458, %v1473
      %v1475 = vlaneseq
      %v1476 = vshrl.u32 %v1475, 7
      %v1477 = vsub.s32 1, %v1476
      %v1478 = vrot.slane %v1462, %v1477
      %v1479 = vlaneseq
      %v1480 = vshrl.u32 %v1479, 7
      %v1481 = vsub.s32 1, %v1480
      %v1482 = vrot.slane %v1466, %v1481
      %vm1483 = vcmp.eq.s32.totalorder %v1211, %v1470
      %vm1484 = vcmp.eq.s32.totalorder %v1211, %v1474
      %vm1485 = vcmp.eq.s32.totalorder %v1211, %v1478
      %vm1486 = vcmp.eq.s32.totalorder %v1211, %v1482
      %vm1487 = vcmp.eq.s32.totalorder %v1212, %v1470
      %vm1488 = vcmp.eq.s32.totalorder %v1212, %v1474
      %vm1489 = vcmp.eq.s32.totalorder %v1212, %v1478
      %vm1490 = vcmp.eq.s32.totalorder %v1212, %v1482
      %vm1491 = vcmp.eq.s32.totalorder %v1213, %v1470
      %vm1492 = vcmp.eq.s32.totalorder %v1213, %v1474
      %vm1493 = vcmp.eq.s32.totalorder %v1213, %v1478
      %vm1494 = vcmp.eq.s32.totalorder %v1213, %v1482
      %vm1495 = vcmp.eq.s32.totalorder %v1214, %v1470
      %vm1496 = vcmp.eq.s32.totalorder %v1214, %v1474
      %vm1497 = vcmp.eq.s32.totalorder %v1214, %v1478
      %vm1498 = vcmp.eq.s32.totalorder %v1214, %v1482
      %vm1499 = vcmp.eq.s32.totalorder %v1215, %v1470
      %vm1500 = vcmp.eq.s32.totalorder %v1215, %v1474
      %vm1501 = vcmp.eq.s32.totalorder %v1215, %v1478
      %vm1502 = vcmp.eq.s32.totalorder %v1215, %v1482
      %vm1503 = vcmp.eq.s32.totalorder %v1216, %v1470
      %vm1504 = vcmp.eq.s32.totalorder %v1216, %v1474
      %vm1505 = vcmp.eq.s32.totalorder %v1216, %v1478
      %vm1506 = vcmp.eq.s32.totalorder %v1216, %v1482
      %vm1507 = vcmp.eq.s32.totalorder %v1217, %v1470
      %vm1508 = vcmp.eq.s32.totalorder %v1217, %v1474
      %vm1509 = vcmp.eq.s32.totalorder %v1217, %v1478
      %vm1510 = vcmp.eq.s32.totalorder %v1217, %v1482
      %vm1511 = vcmp.eq.s32.totalorder %v1218, %v1470
      %vm1512 = vcmp.eq.s32.totalorder %v1218, %v1474
      %vm1513 = vcmp.eq.s32.totalorder %v1218, %v1478
      %vm1514 = vcmp.eq.s32.totalorder %v1218, %v1482
      %vm1515 = vcmp.eq.s32.totalorder %v1219, %v1470
      %vm1516 = vcmp.eq.s32.totalorder %v1219, %v1474
      %vm1517 = vcmp.eq.s32.totalorder %v1219, %v1478
      %vm1518 = vcmp.eq.s32.totalorder %v1219, %v1482
      %vm1519 = vcmp.eq.s32.totalorder %v1220, %v1470
      %vm1520 = vcmp.eq.s32.totalorder %v1220, %v1474
      %vm1521 = vcmp.eq.s32.totalorder %v1220, %v1478
      %vm1522 = vcmp.eq.s32.totalorder %v1220, %v1482
      %vm1523 = vcmp.eq.s32.totalorder %v1221, %v1470
      %vm1524 = vcmp.eq.s32.totalorder %v1221, %v1474
      %vm1525 = vcmp.eq.s32.totalorder %v1221, %v1478
      %vm1526 = vcmp.eq.s32.totalorder %v1221, %v1482
      %vm1527 = vcmp.eq.s32.totalorder %v1222, %v1470
      %vm1528 = vcmp.eq.s32.totalorder %v1222, %v1474
      %vm1529 = vcmp.eq.s32.totalorder %v1222, %v1478
      %vm1530 = vcmp.eq.s32.totalorder %v1222, %v1482
      %vm1531 = vcmp.eq.s32.totalorder %v1223, %v1470
      %vm1532 = vcmp.eq.s32.totalorder %v1223, %v1474
      %vm1533 = vcmp.eq.s32.totalorder %v1223, %v1478
      %vm1534 = vcmp.eq.s32.totalorder %v1223, %v1482
      %vm1535 = vcmp.eq.s32.totalorder %v1224, %v1470
      %vm1536 = vcmp.eq.s32.totalorder %v1224, %v1474
      %vm1537 = vcmp.eq.s32.totalorder %v1224, %v1478
      %vm1538 = vcmp.eq.s32.totalorder %v1224, %v1482
      %vm1539 = vcmp.eq.s32.totalorder %v1225, %v1470
      %vm1540 = vcmp.eq.s32.totalorder %v1225, %v1474
      %vm1541 = vcmp.eq.s32.totalorder %v1225, %v1478
      %vm1542 = vcmp.eq.s32.totalorder %v1225, %v1482
      %vm1543 = vcmp.eq.s32.totalorder %v1226, %v1470
      %vm1544 = vcmp.eq.s32.totalorder %v1226, %v1474
      %vm1545 = vcmp.eq.s32.totalorder %v1226, %v1478
      %vm1546 = vcmp.eq.s32.totalorder %v1226, %v1482
      %v1547 = vsel %vm1483, 1, 0
      %v1548 = vsel %vm1484, 1, 0
      %v1549 = vsel %vm1485, 1, 0
      %v1550 = vsel %vm1486, 1, 0
      %v1551 = vsel %vm1487, 1, 0
      %v1552 = vsel %vm1488, 1, 0
      %v1553 = vsel %vm1489, 1, 0
      %v1554 = vsel %vm1490, 1, 0
      %v1555 = vsel %vm1491, 1, 0
      %v1556 = vsel %vm1492, 1, 0
      %v1557 = vsel %vm1493, 1, 0
      %v1558 = vsel %vm1494, 1, 0
      %v1559 = vsel %vm1495, 1, 0
      %v1560 = vsel %vm1496, 1, 0
      %v1561 = vsel %vm1497, 1, 0
      %v1562 = vsel %vm1498, 1, 0
      %v1563 = vsel %vm1499, 1, 0
      %v1564 = vsel %vm1500, 1, 0
      %v1565 = vsel %vm1501, 1, 0
      %v1566 = vsel %vm1502, 1, 0
      %v1567 = vsel %vm1503, 1, 0
      %v1568 = vsel %vm1504, 1, 0
      %v1569 = vsel %vm1505, 1, 0
      %v1570 = vsel %vm1506, 1, 0
      %v1571 = vsel %vm1507, 1, 0
      %v1572 = vsel %vm1508, 1, 0
      %v1573 = vsel %vm1509, 1, 0
      %v1574 = vsel %vm1510, 1, 0
      %v1575 = vsel %vm1511, 1, 0
      %v1576 = vsel %vm1512, 1, 0
      %v1577 = vsel %vm1513, 1, 0
      %v1578 = vsel %vm1514, 1, 0
      %v1579 = vsel %vm1515, 1, 0
      %v1580 = vsel %vm1516, 1, 0
      %v1581 = vsel %vm1517, 1, 0
      %v1582 = vsel %vm1518, 1, 0
      %v1583 = vsel %vm1519, 1, 0
      %v1584 = vsel %vm1520, 1, 0
      %v1585 = vsel %vm1521, 1, 0
      %v1586 = vsel %vm1522, 1, 0
      %v1587 = vsel %vm1523, 1, 0
      %v1588 = vsel %vm1524, 1, 0
      %v1589 = vsel %vm1525, 1, 0
      %v1590 = vsel %vm1526, 1, 0
      %v1591 = vsel %vm1527, 1, 0
      %v1592 = vsel %vm1528, 1, 0
      %v1593 = vsel %vm1529, 1, 0
      %v1594 = vsel %vm1530, 1, 0
      %v1595 = vsel %vm1531, 1, 0
      %v1596 = vsel %vm1532, 1, 0
      %v1597 = vsel %vm1533, 1, 0
      %v1598 = vsel %vm1534, 1, 0
      %v1599 = vsel %vm1535, 1, 0
      %v1600 = vsel %vm1536, 1, 0
      %v1601 = vsel %vm1537, 1, 0
      %v1602 = vsel %vm1538, 1, 0
      %v1603 = vsel %vm1539, 1, 0
      %v1604 = vsel %vm1540, 1, 0
      %v1605 = vsel %vm1541, 1, 0
      %v1606 = vsel %vm1542, 1, 0
      %v1607 = vsel %vm1543, 1, 0
      %v1608 = vsel %vm1544, 1, 0
      %v1609 = vsel %vm1545, 1, 0
      %v1610 = vsel %vm1546, 1, 0
      %v1611 = vcvt.s32.f32 %v1547
      %v1612 = vcvt.s32.f32 %v1548
      %v1613 = vcvt.s32.f32 %v1549
      %v1614 = vcvt.s32.f32 %v1550
      %v1615 = vcvt.s32.f32 %v1551
      %v1616 = vcvt.s32.f32 %v1552
      %v1617 = vcvt.s32.f32 %v1553
      %v1618 = vcvt.s32.f32 %v1554
      %v1619 = vcvt.s32.f32 %v1555
      %v1620 = vcvt.s32.f32 %v1556
      %v1621 = vcvt.s32.f32 %v1557
      %v1622 = vcvt.s32.f32 %v1558
      %v1623 = vcvt.s32.f32 %v1559
      %v1624 = vcvt.s32.f32 %v1560
      %v1625 = vcvt.s32.f32 %v1561
      %v1626 = vcvt.s32.f32 %v1562
      %v1627 = vcvt.s32.f32 %v1563
      %v1628 = vcvt.s32.f32 %v1564
      %v1629 = vcvt.s32.f32 %v1565
      %v1630 = vcvt.s32.f32 %v1566
      %v1631 = vcvt.s32.f32 %v1567
      %v1632 = vcvt.s32.f32 %v1568
      %v1633 = vcvt.s32.f32 %v1569
      %v1634 = vcvt.s32.f32 %v1570
      %v1635 = vcvt.s32.f32 %v1571
      %v1636 = vcvt.s32.f32 %v1572
      %v1637 = vcvt.s32.f32 %v1573
      %v1638 = vcvt.s32.f32 %v1574
      %v1639 = vcvt.s32.f32 %v1575
      %v1640 = vcvt.s32.f32 %v1576
      %v1641 = vcvt.s32.f32 %v1577
      %v1642 = vcvt.s32.f32 %v1578
      %v1643 = vcvt.s32.f32 %v1579
      %v1644 = vcvt.s32.f32 %v1580
      %v1645 = vcvt.s32.f32 %v1581
      %v1646 = vcvt.s32.f32 %v1582
      %v1647 = vcvt.s32.f32 %v1583
      %v1648 = vcvt.s32.f32 %v1584
      %v1649 = vcvt.s32.f32 %v1585
      %v1650 = vcvt.s32.f32 %v1586
      %v1651 = vcvt.s32.f32 %v1587
      %v1652 = vcvt.s32.f32 %v1588
      %v1653 = vcvt.s32.f32 %v1589
      %v1654 = vcvt.s32.f32 %v1590
      %v1655 = vcvt.s32.f32 %v1591
      %v1656 = vcvt.s32.f32 %v1592
      %v1657 = vcvt.s32.f32 %v1593
      %v1658 = vcvt.s32.f32 %v1594
      %v1659 = vcvt.s32.f32 %v1595
      %v1660 = vcvt.s32.f32 %v1596
      %v1661 = vcvt.s32.f32 %v1597
      %v1662 = vcvt.s32.f32 %v1598
      %v1663 = vcvt.s32.f32 %v1599
      %v1664 = vcvt.s32.f32 %v1600
      %v1665 = vcvt.s32.f32 %v1601
      %v1666 = vcvt.s32.f32 %v1602
      %v1667 = vcvt.s32.f32 %v1603
      %v1668 = vcvt.s32.f32 %v1604
      %v1669 = vcvt.s32.f32 %v1605
      %v1670 = vcvt.s32.f32 %v1606
      %v1671 = vcvt.s32.f32 %v1607
      %v1672 = vcvt.s32.f32 %v1608
      %v1673 = vcvt.s32.f32 %v1609
      %v1674 = vcvt.s32.f32 %v1610
      %v1675 = vld [vmem:[%s6] sm:$0xff]
      %v1676 = vld [vmem:[%s6 + $0x8] sm:$0xff]
      %v1677 = vld [vmem:[%s6 + $0x10] sm:$0xff]
      %v1678 = vld [vmem:[%s6 + $0x18] sm:$0xff]
      %v1679 = vld [vmem:[%s6 + $0x20] sm:$0xff]
      %v1680 = vld [vmem:[%s6 + $0x28] sm:$0xff]
      %v1681 = vld [vmem:[%s6 + $0x30] sm:$0xff]
      %v1682 = vld [vmem:[%s6 + $0x38] sm:$0xff]
      %1683 = vxpose.xlu0.b32.start [1/16] %v1611, 128
      %1684 = vxpose.xlu0.b32.cont [2/16] %v1615, 128
      %1685 = vxpose.xlu0.b32.cont [3/16] %v1619, 128
      %1686 = vxpose.xlu0.b32.cont [4/16] %v1623, 128
      %1687 = vxpose.xlu0.b32.cont [5/16] %v1627, 128
      %1688 = vxpose.xlu0.b32.cont [6/16] %v1631, 128
      %1689 = vxpose.xlu0.b32.cont [7/16] %v1635, 128
      %1690 = vxpose.xlu0.b32.cont [8/16] %v1639, 128
      %1691 = vxpose.xlu0.b32.cont [9/16] %v1643, 128
      %1692 = vxpose.xlu0.b32.cont [10/16] %v1647, 128
      %1693 = vxpose.xlu0.b32.cont [11/16] %v1651, 128
      %1694 = vxpose.xlu0.b32.cont [12/16] %v1655, 128
      %1695 = vxpose.xlu0.b32.cont [13/16] %v1659, 128
      %1696 = vxpose.xlu0.b32.cont [14/16] %v1663, 128
      %1697 = vxpose.xlu0.b32.cont [15/16] %v1667, 128
      %1698 = vxpose.xlu0.b32.end [16/16] %v1671, 128
      %v1699 = vpop.trf.xlu0
      %v1700 = vpop.trf.xlu0
      %v1701 = vpop.trf.xlu0
      %v1702 = vpop.trf.xlu0
      %v1703 = vpop.trf.xlu0
      %v1704 = vpop.trf.xlu0
      %v1705 = vpop.trf.xlu0
      %v1706 = vpop.trf.xlu0
      %v1707 = vpop.trf.xlu0
      %v1708 = vpop.trf.xlu0
      %v1709 = vpop.trf.xlu0
      %v1710 = vpop.trf.xlu0
      %v1711 = vpop.trf.xlu0
      %v1712 = vpop.trf.xlu0
      %v1713 = vpop.trf.xlu0
      %v1714 = vpop.trf.xlu0
      %1715 = vxpose.xlu0.b32.start [1/16] %v1612, 128
      %1716 = vxpose.xlu0.b32.cont [2/16] %v1616, 128
      %1717 = vxpose.xlu0.b32.cont [3/16] %v1620, 128
      %1718 = vxpose.xlu0.b32.cont [4/16] %v1624, 128
      %1719 = vxpose.xlu0.b32.cont [5/16] %v1628, 128
      %1720 = vxpose.xlu0.b32.cont [6/16] %v1632, 128
      %1721 = vxpose.xlu0.b32.cont [7/16] %v1636, 128
      %1722 = vxpose.xlu0.b32.cont [8/16] %v1640, 128
      %1723 = vxpose.xlu0.b32.cont [9/16] %v1644, 128
      %1724 = vxpose.xlu0.b32.cont [10/16] %v1648, 128
      %1725 = vxpose.xlu0.b32.cont [11/16] %v1652, 128
      %1726 = vxpose.xlu0.b32.cont [12/16] %v1656, 128
      %1727 = vxpose.xlu0.b32.cont [13/16] %v1660, 128
      %1728 = vxpose.xlu0.b32.cont [14/16] %v1664, 128
      %1729 = vxpose.xlu0.b32.cont [15/16] %v1668, 128
      %1730 = vxpose.xlu0.b32.end [16/16] %v1672, 128
      %v1731 = vpop.trf.xlu0
      %v1732 = vpop.trf.xlu0
      %v1733 = vpop.trf.xlu0
      %v1734 = vpop.trf.xlu0
      %v1735 = vpop.trf.xlu0
      %v1736 = vpop.trf.xlu0
      %v1737 = vpop.trf.xlu0
      %v1738 = vpop.trf.xlu0
      %v1739 = vpop.trf.xlu0
      %v1740 = vpop.trf.xlu0
      %v1741 = vpop.trf.xlu0
      %v1742 = vpop.trf.xlu0
      %v1743 = vpop.trf.xlu0
      %v1744 = vpop.trf.xlu0
      %v1745 = vpop.trf.xlu0
      %v1746 = vpop.trf.xlu0
      %1747 = vxpose.xlu0.b32.start [1/16] %v1613, 128
      %1748 = vxpose.xlu0.b32.cont [2/16] %v1617, 128
      %1749 = vxpose.xlu0.b32.cont [3/16] %v1621, 128
      %1750 = vxpose.xlu0.b32.cont [4/16] %v1625, 128
      %1751 = vxpose.xlu0.b32.cont [5/16] %v1629, 128
      %1752 = vxpose.xlu0.b32.cont [6/16] %v1633, 128
      %1753 = vxpose.xlu0.b32.cont [7/16] %v1637, 128
      %1754 = vxpose.xlu0.b32.cont [8/16] %v1641, 128
      %1755 = vxpose.xlu0.b32.cont [9/16] %v1645, 128
      %1756 = vxpose.xlu0.b32.cont [10/16] %v1649, 128
      %1757 = vxpose.xlu0.b32.cont [11/16] %v1653, 128
      %1758 = vxpose.xlu0.b32.cont [12/16] %v1657, 128
      %1759 = vxpose.xlu0.b32.cont [13/16] %v1661, 128
      %1760 = vxpose.xlu0.b32.cont [14/16] %v1665, 128
      %1761 = vxpose.xlu0.b32.cont [15/16] %v1669, 128
      %1762 = vxpose.xlu0.b32.end [16/16] %v1673, 128
      %v1763 = vpop.trf.xlu0
      %v1764 = vpop.trf.xlu0
      %v1765 = vpop.trf.xlu0
      %v1766 = vpop.trf.xlu0
      %v1767 = vpop.trf.xlu0
      %v1768 = vpop.trf.xlu0
      %v1769 = vpop.trf.xlu0
      %v1770 = vpop.trf.xlu0
      %v1771 = vpop.trf.xlu0
      %v1772 = vpop.trf.xlu0
      %v1773 = vpop.trf.xlu0
      %v1774 = vpop.trf.xlu0
      %v1775 = vpop.trf.xlu0
      %v1776 = vpop.trf.xlu0
      %v1777 = vpop.trf.xlu0
      %v1778 = vpop.trf.xlu0
      %1779 = vxpose.xlu0.b32.start [1/16] %v1614, 128
      %1780 = vxpose.xlu0.b32.cont [2/16] %v1618, 128
      %1781 = vxpose.xlu0.b32.cont [3/16] %v1622, 128
      %1782 = vxpose.xlu0.b32.cont [4/16] %v1626, 128
      %1783 = vxpose.xlu0.b32.cont [5/16] %v1630, 128
      %1784 = vxpose.xlu0.b32.cont [6/16] %v1634, 128
      %1785 = vxpose.xlu0.b32.cont [7/16] %v1638, 128
      %1786 = vxpose.xlu0.b32.cont [8/16] %v1642, 128
      %1787 = vxpose.xlu0.b32.cont [9/16] %v1646, 128
      %1788 = vxpose.xlu0.b32.cont [10/16] %v1650, 128
      %1789 = vxpose.xlu0.b32.cont [11/16] %v1654, 128
      %1790 = vxpose.xlu0.b32.cont [12/16] %v1658, 128
      %1791 = vxpose.xlu0.b32.cont [13/16] %v1662, 128
      %1792 = vxpose.xlu0.b32.cont [14/16] %v1666, 128
      %1793 = vxpose.xlu0.b32.cont [15/16] %v1670, 128
      %1794 = vxpose.xlu0.b32.end [16/16] %v1674, 128
      %v1795 = vpop.trf.xlu0
      %v1796 = vpop.trf.xlu0
      %v1797 = vpop.trf.xlu0
      %v1798 = vpop.trf.xlu0
      %v1799 = vpop.trf.xlu0
      %v1800 = vpop.trf.xlu0
      %v1801 = vpop.trf.xlu0
      %v1802 = vpop.trf.xlu0
      %v1803 = vpop.trf.xlu0
      %v1804 = vpop.trf.xlu0
      %v1805 = vpop.trf.xlu0
      %v1806 = vpop.trf.xlu0
      %v1807 = vpop.trf.xlu0
      %v1808 = vpop.trf.xlu0
      %v1809 = vpop.trf.xlu0
      %v1810 = vpop.trf.xlu0
      %1811 = vmatprep.subr.mxu0 0.0
      %1812 = vmatpush1.msra.mxu0 %v473
      %1813 = vmatprep.subr.mxu0 0.0
      %1814 = vmatpush1.msra.mxu0 %v479
      %1815 = vmatprep.subr.mxu0 0.0
      %1816 = vmatpush1.msra.mxu0 %v485
      %1817 = vmatprep.subr.mxu0 0.0
      %1818 = vmatpush1.msra.mxu0 %v491
      %1819 = vmatprep.subr.mxu0 0.0
      %1820 = vmatpush1.msra.mxu0 %v497
      %1821 = vmatprep.subr.mxu0 0.0
      %1822 = vmatpush1.msra.mxu0 %v503
      %1823 = vmatprep.subr.mxu0 0.0
      %1824 = vmatpush1.msra.mxu0 %v509
      %1825 = vmatprep.subr.mxu0 0.0
      %1826 = vmatpush1.msra.mxu0 %v515
      %1827 = vmatprep.subr.mxu0 0.0
      %1828 = vmatpush1.msra.mxu0 %v521
      %1829 = vmatprep.subr.mxu0 0.0
      %1830 = vmatpush1.msra.mxu0 %v527
      %1831 = vmatprep.subr.mxu0 0.0
      %1832 = vmatpush1.msra.mxu0 %v533
      %1833 = vmatprep.subr.mxu0 0.0
      %1834 = vmatpush1.msra.mxu0 %v539
      %1835 = vmatprep.subr.mxu0 0.0
      %1836 = vmatpush1.msra.mxu0 %v545
      %1837 = vmatprep.subr.mxu0 0.0
      %1838 = vmatpush1.msra.mxu0 %v551
      %1839 = vmatprep.subr.mxu0 0.0
      %1840 = vmatpush1.msra.mxu0 %v557
      %1841 = vmatprep.subr.mxu0 0.0
      %1842 = vmatpush1.msra.mxu0 %v563
      %1843 = vmatprep.subr.mxu0 0.0
      %1844 = vmatpush1.msra.mxu0 0.0
      %1845 = vmatprep.subr.mxu0 0.0
      %1846 = vmatpush1.msra.mxu0 0.0
      %1847 = vmatprep.subr.mxu0 0.0
      %1848 = vmatpush1.msra.mxu0 0.0
      %1849 = vmatprep.subr.mxu0 0.0
      %1850 = vmatpush1.msra.mxu0 0.0
      %1851 = vmatprep.subr.mxu0 0.0
      %1852 = vmatpush1.msra.mxu0 0.0
      %1853 = vmatprep.subr.mxu0 0.0
      %1854 = vmatpush1.msra.mxu0 0.0
      %1855 = vmatprep.subr.mxu0 0.0
      %1856 = vmatpush1.msra.mxu0 0.0
      %1857 = vmatprep.subr.mxu0 0.0
      %1858 = vmatpush1.msra.mxu0 0.0
      %1859 = vmatprep.subr.mxu0 0.0
      %1860 = vmatpush1.msra.mxu0 0.0
      %1861 = vmatprep.subr.mxu0 0.0
      %1862 = vmatpush1.msra.mxu0 0.0
      %1863 = vmatprep.subr.mxu0 0.0
      %1864 = vmatpush1.msra.mxu0 0.0
      %1865 = vmatprep.subr.mxu0 0.0
      %1866 = vmatpush1.msra.mxu0 0.0
      %1867 = vmatprep.subr.mxu0 0.0
      %1868 = vmatpush1.msra.mxu0 0.0
      %1869 = vmatprep.subr.mxu0 0.0
      %1870 = vmatpush1.msra.mxu0 0.0
      %1871 = vmatprep.subr.mxu0 0.0
      %1872 = vmatpush1.msra.mxu0 0.0
      %1873 = vmatprep.subr.mxu0 0.0
      %1874 = vmatpush1.msra.mxu0 0.0
      %1875 = vmatprep.mubr.f32.mxu0 0.0
      %1876 = vmatmul.mubr.f32.gmra.mrb[0].mxu0 %v1699
      %v1877 = vpop.f32.mrb[0].mxu0
      %v1878 = vadd.f32 0.0, %v1877
      %v1879 = vpop.f32.mrb[0].mxu0
      %1880 = vmatprep.mubr.f32.mxu0 0.0
      %1881 = vmatmul.mubr.f32.gmra.mrb[0].mxu0 %v1700
      %v1882 = vpop.f32.mrb[0].mxu0
      %v1883 = vadd.f32 0.0, %v1882
      %v1884 = vpop.f32.mrb[0].mxu0
      %1885 = vmatprep.mubr.f32.mxu0 0.0
      %1886 = vmatmul.mubr.f32.gmra.mrb[0].mxu0 %v1701
      %v1887 = vpop.f32.mrb[0].mxu0
      %v1888 = vadd.f32 0.0, %v1887
      %v1889 = vpop.f32.mrb[0].mxu0
      %1890 = vmatprep.mubr.f32.mxu0 0.0
      %1891 = vmatmul.mubr.f32.gmra.mrb[0].mxu0 %v1702
      %v1892 = vpop.f32.mrb[0].mxu0
      %v1893 = vadd.f32 0.0, %v1892
      %v1894 = vpop.f32.mrb[0].mxu0
      %1895 = vmatprep.mubr.f32.mxu0 0.0
      %1896 = vmatmul.mubr.f32.gmra.mrb[0].mxu0 %v1703
      %v1897 = vpop.f32.mrb[0].mxu0
      %v1898 = vadd.f32 0.0, %v1897
      %v1899 = vpop.f32.mrb[0].mxu0
      %1900 = vmatprep.mubr.f32.mxu0 0.0
      %1901 = vmatmul.mubr.f32.gmra.mrb[0].mxu0 %v1704
      %v1902 = vpop.f32.mrb[0].mxu0
      %v1903 = vadd.f32 0.0, %v1902
      %v1904 = vpop.f32.mrb[0].mxu0
      %1905 = vmatprep.mubr.f32.mxu0 0.0
      %1906 = vmatmul.mubr.f32.gmra.mrb[0].mxu0 %v1705
      %v1907 = vpop.f32.mrb[0].mxu0
      %v1908 = vadd.f32 0.0, %v1907
      %v1909 = vpop.f32.mrb[0].mxu0
      %1910 = vmatprep.mubr.f32.mxu0 0.0
      %1911 = vmatmul.mubr.f32.gmra.mrb[0].mxu0 %v1706
      %v1912 = vpop.f32.mrb[0].mxu0
      %v1913 = vadd.f32 0.0, %v1912
      %v1914 = vpop.f32.mrb[0].mxu0
      %1915 = vmatprep.mubr.f32.mxu0 0.0
      %1916 = vmatmul.mubr.f32.gmra.mrb[0].mxu0 %v1707
      %v1917 = vpop.f32.mrb[0].mxu0
      %v1918 = vadd.f32 0.0, %v1917
      %v1919 = vpop.f32.mrb[0].mxu0
      %1920 = vmatprep.mubr.f32.mxu0 0.0
      %1921 = vmatmul.mubr.f32.gmra.mrb[0].mxu0 %v1708
      %v1922 = vpop.f32.mrb[0].mxu0
      %v1923 = vadd.f32 0.0, %v1922
      %v1924 = vpop.f32.mrb[0].mxu0
      %1925 = vmatprep.mubr.f32.mxu0 0.0
      %1926 = vmatmul.mubr.f32.gmra.mrb[0].mxu0 %v1709
      %v1927 = vpop.f32.mrb[0].mxu0
      %v1928 = vadd.f32 0.0, %v1927
      %v1929 = vpop.f32.mrb[0].mxu0
      %1930 = vmatprep.mubr.f32.mxu0 0.0
      %1931 = vmatmul.mubr.f32.gmra.mrb[0].mxu0 %v1710
      %v1932 = vpop.f32.mrb[0].mxu0
      %v1933 = vadd.f32 0.0, %v1932
      %v1934 = vpop.f32.mrb[0].mxu0
      %1935 = vmatprep.mubr.f32.mxu0 0.0
      %1936 = vmatmul.mubr.f32.gmra.mrb[0].mxu0 %v1711
      %v1937 = vpop.f32.mrb[0].mxu0
      %v1938 = vadd.f32 0.0, %v1937
      %v1939 = vpop.f32.mrb[0].mxu0
      %1940 = vmatprep.mubr.f32.mxu0 0.0
      %1941 = vmatmul.mubr.f32.gmra.mrb[0].mxu0 %v1712
      %v1942 = vpop.f32.mrb[0].mxu0
      %v1943 = vadd.f32 0.0, %v1942
      %v1944 = vpop.f32.mrb[0].mxu0
      %1945 = vmatprep.mubr.f32.mxu0 0.0
      %1946 = vmatmul.mubr.f32.gmra.mrb[0].mxu0 %v1713
      %v1947 = vpop.f32.mrb[0].mxu0
      %v1948 = vadd.f32 0.0, %v1947
      %v1949 = vpop.f32.mrb[0].mxu0
      %1950 = vmatprep.mubr.f32.mxu0 0.0
      %1951 = vmatmul.mubr.f32.gmra.mrb[0].mxu0 %v1714
      %v1952 = vpop.f32.mrb[0].mxu0
      %v1953 = vadd.f32 0.0, %v1952
      %v1954 = vpop.f32.mrb[0].mxu0
      %1955 = vmatprep.mubr.f32.mxu0 0.0
      %1956 = vmatmul.mubr.f32.gmra.mrb[0].mxu0 %v1731
      %v1957 = vpop.f32.mrb[0].mxu0
      %v1958 = vadd.f32 0.0, %v1957
      %v1959 = vpop.f32.mrb[0].mxu0
      %1960 = vmatprep.mubr.f32.mxu0 0.0
      %1961 = vmatmul.mubr.f32.gmra.mrb[0].mxu0 %v1732
      %v1962 = vpop.f32.mrb[0].mxu0
      %v1963 = vadd.f32 0.0, %v1962
      %v1964 = vpop.f32.mrb[0].mxu0
      %1965 = vmatprep.mubr.f32.mxu0 0.0
      %1966 = vmatmul.mubr.f32.gmra.mrb[0].mxu0 %v1733
      %v1967 = vpop.f32.mrb[0].mxu0
      %v1968 = vadd.f32 0.0, %v1967
      %v1969 = vpop.f32.mrb[0].mxu0
      %1970 = vmatprep.mubr.f32.mxu0 0.0
      %1971 = vmatmul.mubr.f32.gmra.mrb[0].mxu0 %v1734
      %v1972 = vpop.f32.mrb[0].mxu0
      %v1973 = vadd.f32 0.0, %v1972
      %v1974 = vpop.f32.mrb[0].mxu0
      %1975 = vmatprep.mubr.f32.mxu0 0.0
      %1976 = vmatmul.mubr.f32.gmra.mrb[0].mxu0 %v1735
      %v1977 = vpop.f32.mrb[0].mxu0
      %v1978 = vadd.f32 0.0, %v1977
      %v1979 = vpop.f32.mrb[0].mxu0
      %1980 = vmatprep.mubr.f32.mxu0 0.0
      %1981 = vmatmul.mubr.f32.gmra.mrb[0].mxu0 %v1736
      %v1982 = vpop.f32.mrb[0].mxu0
      %v1983 = vadd.f32 0.0, %v1982
      %v1984 = vpop.f32.mrb[0].mxu0
      %1985 = vmatprep.mubr.f32.mxu0 0.0
      %1986 = vmatmul.mubr.f32.gmra.mrb[0].mxu0 %v1737
      %v1987 = vpop.f32.mrb[0].mxu0
      %v1988 = vadd.f32 0.0, %v1987
      %v1989 = vpop.f32.mrb[0].mxu0
      %1990 = vmatprep.mubr.f32.mxu0 0.0
      %1991 = vmatmul.mubr.f32.gmra.mrb[0].mxu0 %v1738
      %v1992 = vpop.f32.mrb[0].mxu0
      %v1993 = vadd.f32 0.0, %v1992
      %v1994 = vpop.f32.mrb[0].mxu0
      %1995 = vmatprep.mubr.f32.mxu0 0.0
      %1996 = vmatmul.mubr.f32.gmra.mrb[0].mxu0 %v1739
      %v1997 = vpop.f32.mrb[0].mxu0
      %v1998 = vadd.f32 0.0, %v1997
      %v1999 = vpop.f32.mrb[0].mxu0
      %2000 = vmatprep.mubr.f32.mxu0 0.0
      %2001 = vmatmul.mubr.f32.gmra.mrb[0].mxu0 %v1740
      %v2002 = vpop.f32.mrb[0].mxu0
      %v2003 = vadd.f32 0.0, %v2002
      %v2004 = vpop.f32.mrb[0].mxu0
      %2005 = vmatprep.mubr.f32.mxu0 0.0
      %2006 = vmatmul.mubr.f32.gmra.mrb[0].mxu0 %v1741
      %v2007 = vpop.f32.mrb[0].mxu0
      %v2008 = vadd.f32 0.0, %v2007
      %v2009 = vpop.f32.mrb[0].mxu0
      %2010 = vmatprep.mubr.f32.mxu0 0.0
      %2011 = vmatmul.mubr.f32.gmra.mrb[0].mxu0 %v1742
      %v2012 = vpop.f32.mrb[0].mxu0
      %v2013 = vadd.f32 0.0, %v2012
      %v2014 = vpop.f32.mrb[0].mxu0
      %2015 = vmatprep.mubr.f32.mxu0 0.0
      %2016 = vmatmul.mubr.f32.gmra.mrb[0].mxu0 %v1743
      %v2017 = vpop.f32.mrb[0].mxu0
      %v2018 = vadd.f32 0.0, %v2017
      %v2019 = vpop.f32.mrb[0].mxu0
      %2020 = vmatprep.mubr.f32.mxu0 0.0
      %2021 = vmatmul.mubr.f32.gmra.mrb[0].mxu0 %v1744
      %v2022 = vpop.f32.mrb[0].mxu0
      %v2023 = vadd.f32 0.0, %v2022
      %v2024 = vpop.f32.mrb[0].mxu0
      %2025 = vmatprep.mubr.f32.mxu0 0.0
      %2026 = vmatmul.mubr.f32.gmra.mrb[0].mxu0 %v1745
      %v2027 = vpop.f32.mrb[0].mxu0
      %v2028 = vadd.f32 0.0, %v2027
      %v2029 = vpop.f32.mrb[0].mxu0
      %2030 = vmatprep.mubr.f32.mxu0 0.0
      %2031 = vmatmul.mubr.f32.gmra.mrb[0].mxu0 %v1746
      %v2032 = vpop.f32.mrb[0].mxu0
      %v2033 = vadd.f32 0.0, %v2032
      %v2034 = vpop.f32.mrb[0].mxu0
      %2035 = vmatprep.mubr.f32.mxu0 0.0
      %2036 = vmatmul.mubr.f32.gmra.mrb[0].mxu0 %v1763
      %v2037 = vpop.f32.mrb[0].mxu0
      %v2038 = vadd.f32 0.0, %v2037
      %v2039 = vpop.f32.mrb[0].mxu0
      %2040 = vmatprep.mubr.f32.mxu0 0.0
      %2041 = vmatmul.mubr.f32.gmra.mrb[0].mxu0 %v1764
      %v2042 = vpop.f32.mrb[0].mxu0
      %v2043 = vadd.f32 0.0, %v2042
      %v2044 = vpop.f32.mrb[0].mxu0
      %2045 = vmatprep.mubr.f32.mxu0 0.0
      %2046 = vmatmul.mubr.f32.gmra.mrb[0].mxu0 %v1765
      %v2047 = vpop.f32.mrb[0].mxu0
      %v2048 = vadd.f32 0.0, %v2047
      %v2049 = vpop.f32.mrb[0].mxu0
      %2050 = vmatprep.mubr.f32.mxu0 0.0
      %2051 = vmatmul.mubr.f32.gmra.mrb[0].mxu0 %v1766
      %v2052 = vpop.f32.mrb[0].mxu0
      %v2053 = vadd.f32 0.0, %v2052
      %v2054 = vpop.f32.mrb[0].mxu0
      %2055 = vmatprep.mubr.f32.mxu0 0.0
      %2056 = vmatmul.mubr.f32.gmra.mrb[0].mxu0 %v1767
      %v2057 = vpop.f32.mrb[0].mxu0
      %v2058 = vadd.f32 0.0, %v2057
      %v2059 = vpop.f32.mrb[0].mxu0
      %2060 = vmatprep.mubr.f32.mxu0 0.0
      %2061 = vmatmul.mubr.f32.gmra.mrb[0].mxu0 %v1768
      %v2062 = vpop.f32.mrb[0].mxu0
      %v2063 = vadd.f32 0.0, %v2062
      %v2064 = vpop.f32.mrb[0].mxu0
      %2065 = vmatprep.mubr.f32.mxu0 0.0
      %2066 = vmatmul.mubr.f32.gmra.mrb[0].mxu0 %v1769
      %v2067 = vpop.f32.mrb[0].mxu0
      %v2068 = vadd.f32 0.0, %v2067
      %v2069 = vpop.f32.mrb[0].mxu0
      %2070 = vmatprep.mubr.f32.mxu0 0.0
      %2071 = vmatmul.mubr.f32.gmra.mrb[0].mxu0 %v1770
      %v2072 = vpop.f32.mrb[0].mxu0
      %v2073 = vadd.f32 0.0, %v2072
      %v2074 = vpop.f32.mrb[0].mxu0
      %2075 = vmatprep.mubr.f32.mxu0 0.0
      %2076 = vmatmul.mubr.f32.gmra.mrb[0].mxu0 %v1771
      %v2077 = vpop.f32.mrb[0].mxu0
      %v2078 = vadd.f32 0.0, %v2077
      %v2079 = vpop.f32.mrb[0].mxu0
      %2080 = vmatprep.mubr.f32.mxu0 0.0
      %2081 = vmatmul.mubr.f32.gmra.mrb[0].mxu0 %v1772
      %v2082 = vpop.f32.mrb[0].mxu0
      %v2083 = vadd.f32 0.0, %v2082
      %v2084 = vpop.f32.mrb[0].mxu0
      %2085 = vmatprep.mubr.f32.mxu0 0.0
      %2086 = vmatmul.mubr.f32.gmra.mrb[0].mxu0 %v1773
      %v2087 = vpop.f32.mrb[0].mxu0
      %v2088 = vadd.f32 0.0, %v2087
      %v2089 = vpop.f32.mrb[0].mxu0
      %2090 = vmatprep.mubr.f32.mxu0 0.0
      %2091 = vmatmul.mubr.f32.gmra.mrb[0].mxu0 %v1774
      %v2092 = vpop.f32.mrb[0].mxu0
      %v2093 = vadd.f32 0.0, %v2092
      %v2094 = vpop.f32.mrb[0].mxu0
      %2095 = vmatprep.mubr.f32.mxu0 0.0
      %2096 = vmatmul.mubr.f32.gmra.mrb[0].mxu0 %v1775
      %v2097 = vpop.f32.mrb[0].mxu0
      %v2098 = vadd.f32 0.0, %v2097
      %v2099 = vpop.f32.mrb[0].mxu0
      %2100 = vmatprep.mubr.f32.mxu0 0.0
      %2101 = vmatmul.mubr.f32.gmra.mrb[0].mxu0 %v1776
      %v2102 = vpop.f32.mrb[0].mxu0
      %v2103 = vadd.f32 0.0, %v2102
      %v2104 = vpop.f32.mrb[0].mxu0
      %2105 = vmatprep.mubr.f32.mxu0 0.0
      %2106 = vmatmul.mubr.f32.gmra.mrb[0].mxu0 %v1777
      %v2107 = vpop.f32.mrb[0].mxu0
      %v2108 = vadd.f32 0.0, %v2107
      %v2109 = vpop.f32.mrb[0].mxu0
      %2110 = vmatprep.mubr.f32.mxu0 0.0
      %2111 = vmatmul.mubr.f32.gmra.mrb[0].mxu0 %v1778
      %v2112 = vpop.f32.mrb[0].mxu0
      %v2113 = vadd.f32 0.0, %v2112
      %v2114 = vpop.f32.mrb[0].mxu0
      %2115 = vmatprep.mubr.f32.mxu0 0.0
      %2116 = vmatmul.mubr.f32.gmra.mrb[0].mxu0 %v1795
      %v2117 = vpop.f32.mrb[0].mxu0
      %v2118 = vadd.f32 0.0, %v2117
      %v2119 = vpop.f32.mrb[0].mxu0
      %2120 = vmatprep.mubr.f32.mxu0 0.0
      %2121 = vmatmul.mubr.f32.gmra.mrb[0].mxu0 %v1796
      %v2122 = vpop.f32.mrb[0].mxu0
      %v2123 = vadd.f32 0.0, %v2122
      %v2124 = vpop.f32.mrb[0].mxu0
      %2125 = vmatprep.mubr.f32.mxu0 0.0
      %2126 = vmatmul.mubr.f32.gmra.mrb[0].mxu0 %v1797
      %v2127 = vpop.f32.mrb[0].mxu0
      %v2128 = vadd.f32 0.0, %v2127
      %v2129 = vpop.f32.mrb[0].mxu0
      %2130 = vmatprep.mubr.f32.mxu0 0.0
      %2131 = vmatmul.mubr.f32.gmra.mrb[0].mxu0 %v1798
      %v2132 = vpop.f32.mrb[0].mxu0
      %v2133 = vadd.f32 0.0, %v2132
      %v2134 = vpop.f32.mrb[0].mxu0
      %2135 = vmatprep.mubr.f32.mxu0 0.0
      %2136 = vmatmul.mubr.f32.gmra.mrb[0].mxu0 %v1799
      %v2137 = vpop.f32.mrb[0].mxu0
      %v2138 = vadd.f32 0.0, %v2137
      %v2139 = vpop.f32.mrb[0].mxu0
      %2140 = vmatprep.mubr.f32.mxu0 0.0
      %2141 = vmatmul.mubr.f32.gmra.mrb[0].mxu0 %v1800
      %v2142 = vpop.f32.mrb[0].mxu0
      %v2143 = vadd.f32 0.0, %v2142
      %v2144 = vpop.f32.mrb[0].mxu0
      %2145 = vmatprep.mubr.f32.mxu0 0.0
      %2146 = vmatmul.mubr.f32.gmra.mrb[0].mxu0 %v1801
      %v2147 = vpop.f32.mrb[0].mxu0
      %v2148 = vadd.f32 0.0, %v2147
      %v2149 = vpop.f32.mrb[0].mxu0
      %2150 = vmatprep.mubr.f32.mxu0 0.0
      %2151 = vmatmul.mubr.f32.gmra.mrb[0].mxu0 %v1802
      %v2152 = vpop.f32.mrb[0].mxu0
      %v2153 = vadd.f32 0.0, %v2152
      %v2154 = vpop.f32.mrb[0].mxu0
      %2155 = vmatprep.mubr.f32.mxu0 0.0
      %2156 = vmatmul.mubr.f32.gmra.mrb[0].mxu0 %v1803
      %v2157 = vpop.f32.mrb[0].mxu0
      %v2158 = vadd.f32 0.0, %v2157
      %v2159 = vpop.f32.mrb[0].mxu0
      %2160 = vmatprep.mubr.f32.mxu0 0.0
      %2161 = vmatmul.mubr.f32.gmra.mrb[0].mxu0 %v1804
      %v2162 = vpop.f32.mrb[0].mxu0
      %v2163 = vadd.f32 0.0, %v2162
      %v2164 = vpop.f32.mrb[0].mxu0
      %2165 = vmatprep.mubr.f32.mxu0 0.0
      %2166 = vmatmul.mubr.f32.gmra.mrb[0].mxu0 %v1805
      %v2167 = vpop.f32.mrb[0].mxu0
      %v2168 = vadd.f32 0.0, %v2167
      %v2169 = vpop.f32.mrb[0].mxu0
      %2170 = vmatprep.mubr.f32.mxu0 0.0
      %2171 = vmatmul.mubr.f32.gmra.mrb[0].mxu0 %v1806
      %v2172 = vpop.f32.mrb[0].mxu0
      %v2173 = vadd.f32 0.0, %v2172
      %v2174 = vpop.f32.mrb[0].mxu0
      %2175 = vmatprep.mubr.f32.mxu0 0.0
      %2176 = vmatmul.mubr.f32.gmra.mrb[0].mxu0 %v1807
      %v2177 = vpop.f32.mrb[0].mxu0
      %v2178 = vadd.f32 0.0, %v2177
      %v2179 = vpop.f32.mrb[0].mxu0
      %2180 = vmatprep.mubr.f32.mxu0 0.0
      %2181 = vmatmul.mubr.f32.gmra.mrb[0].mxu0 %v1808
      %v2182 = vpop.f32.mrb[0].mxu0
      %v2183 = vadd.f32 0.0, %v2182
      %v2184 = vpop.f32.mrb[0].mxu0
      %2185 = vmatprep.mubr.f32.mxu0 0.0
      %2186 = vmatmul.mubr.f32.gmra.mrb[0].mxu0 %v1809
      %v2187 = vpop.f32.mrb[0].mxu0
      %v2188 = vadd.f32 0.0, %v2187
      %v2189 = vpop.f32.mrb[0].mxu0
      %2190 = vmatprep.mubr.f32.mxu0 0.0
      %2191 = vmatmul.mubr.f32.gmra.mrb[0].mxu0 %v1810
      %v2192 = vpop.f32.mrb[0].mxu0
      %v2193 = vadd.f32 0.0, %v2192
      %v2194 = vpop.f32.mrb[0].mxu0
      %2195 = vdwg.mxu0
      %2196 = vxpose.xlu0.b32.start [1/16] %v1387, 128
      %2197 = vxpose.xlu0.b32.cont [2/16] %v1391, 128
      %2198 = vxpose.xlu0.b32.cont [3/16] %v1395, 128
      %2199 = vxpose.xlu0.b32.cont [4/16] %v1399, 128
      %2200 = vxpose.xlu0.b32.cont [5/16] %v1403, 128
      %2201 = vxpose.xlu0.b32.cont [6/16] %v1407, 128
      %2202 = vxpose.xlu0.b32.cont [7/16] %v1411, 128
      %2203 = vxpose.xlu0.b32.cont [8/16] %v1415, 128
      %2204 = vxpose.xlu0.b32.cont [9/16] %v1419, 128
      %2205 = vxpose.xlu0.b32.cont [10/16] %v1423, 128
      %2206 = vxpose.xlu0.b32.cont [11/16] %v1427, 128
      %2207 = vxpose.xlu0.b32.cont [12/16] %v1431, 128
      %2208 = vxpose.xlu0.b32.cont [13/16] %v1435, 128
      %2209 = vxpose.xlu0.b32.cont [14/16] %v1439, 128
      %2210 = vxpose.xlu0.b32.cont [15/16] %v1443, 128
      %2211 = vxpose.xlu0.b32.end [16/16] %v1447, 128
      %v2212 = vpop.trf.xlu0
      %v2213 = vpop.trf.xlu0
      %v2214 = vpop.trf.xlu0
      %v2215 = vpop.trf.xlu0
      %v2216 = vpop.trf.xlu0
      %v2217 = vpop.trf.xlu0
      %v2218 = vpop.trf.xlu0
      %v2219 = vpop.trf.xlu0
      %v2220 = vpop.trf.xlu0
      %v2221 = vpop.trf.xlu0
      %v2222 = vpop.trf.xlu0
      %v2223 = vpop.trf.xlu0
      %v2224 = vpop.trf.xlu0
      %v2225 = vpop.trf.xlu0
      %v2226 = vpop.trf.xlu0
      %v2227 = vpop.trf.xlu0
      %2228 = vxpose.xlu0.b32.start [1/16] %v1388, 128
      %2229 = vxpose.xlu0.b32.cont [2/16] %v1392, 128
      %2230 = vxpose.xlu0.b32.cont [3/16] %v1396, 128
      %2231 = vxpose.xlu0.b32.cont [4/16] %v1400, 128
      %2232 = vxpose.xlu0.b32.cont [5/16] %v1404, 128
      %2233 = vxpose.xlu0.b32.cont [6/16] %v1408, 128
      %2234 = vxpose.xlu0.b32.cont [7/16] %v1412, 128
      %2235 = vxpose.xlu0.b32.cont [8/16] %v1416, 128
      %2236 = vxpose.xlu0.b32.cont [9/16] %v1420, 128
      %2237 = vxpose.xlu0.b32.cont [10/16] %v1424, 128
      %2238 = vxpose.xlu0.b32.cont [11/16] %v1428, 128
      %2239 = vxpose.xlu0.b32.cont [12/16] %v1432, 128
      %2240 = vxpose.xlu0.b32.cont [13/16] %v1436, 128
      %2241 = vxpose.xlu0.b32.cont [14/16] %v1440, 128
      %2242 = vxpose.xlu0.b32.cont [15/16] %v1444, 128
      %2243 = vxpose.xlu0.b32.end [16/16] %v1448, 128
      %v2244 = vpop.trf.xlu0
      %v2245 = vpop.trf.xlu0
      %v2246 = vpop.trf.xlu0
      %v2247 = vpop.trf.xlu0
      %v2248 = vpop.trf.xlu0
      %v2249 = vpop.trf.xlu0
      %v2250 = vpop.trf.xlu0
      %v2251 = vpop.trf.xlu0
      %v2252 = vpop.trf.xlu0
      %v2253 = vpop.trf.xlu0
      %v2254 = vpop.trf.xlu0
      %v2255 = vpop.trf.xlu0
      %v2256 = vpop.trf.xlu0
      %v2257 = vpop.trf.xlu0
      %v2258 = vpop.trf.xlu0
      %v2259 = vpop.trf.xlu0
      %2260 = vxpose.xlu0.b32.start [1/16] %v1389, 128
      %2261 = vxpose.xlu0.b32.cont [2/16] %v1393, 128
      %2262 = vxpose.xlu0.b32.cont [3/16] %v1397, 128
      %2263 = vxpose.xlu0.b32.cont [4/16] %v1401, 128
      %2264 = vxpose.xlu0.b32.cont [5/16] %v1405, 128
      %2265 = vxpose.xlu0.b32.cont [6/16] %v1409, 128
      %2266 = vxpose.xlu0.b32.cont [7/16] %v1413, 128
      %2267 = vxpose.xlu0.b32.cont [8/16] %v1417, 128
      %2268 = vxpose.xlu0.b32.cont [9/16] %v1421, 128
      %2269 = vxpose.xlu0.b32.cont [10/16] %v1425, 128
      %2270 = vxpose.xlu0.b32.cont [11/16] %v1429, 128
      %2271 = vxpose.xlu0.b32.cont [12/16] %v1433, 128
      %2272 = vxpose.xlu0.b32.cont [13/16] %v1437, 128
      %2273 = vxpose.xlu0.b32.cont [14/16] %v1441, 128
      %2274 = vxpose.xlu0.b32.cont [15/16] %v1445, 128
      %2275 = vxpose.xlu0.b32.end [16/16] %v1449, 128
      %v2276 = vpop.trf.xlu0
      %v2277 = vpop.trf.xlu0
      %v2278 = vpop.trf.xlu0
      %v2279 = vpop.trf.xlu0
      %v2280 = vpop.trf.xlu0
      %v2281 = vpop.trf.xlu0
      %v2282 = vpop.trf.xlu0
      %v2283 = vpop.trf.xlu0
      %v2284 = vpop.trf.xlu0
      %v2285 = vpop.trf.xlu0
      %v2286 = vpop.trf.xlu0
      %v2287 = vpop.trf.xlu0
      %v2288 = vpop.trf.xlu0
      %v2289 = vpop.trf.xlu0
      %v2290 = vpop.trf.xlu0
      %v2291 = vpop.trf.xlu0
      %2292 = vxpose.xlu0.b32.start [1/16] %v1390, 128
      %2293 = vxpose.xlu0.b32.cont [2/16] %v1394, 128
      %2294 = vxpose.xlu0.b32.cont [3/16] %v1398, 128
      %2295 = vxpose.xlu0.b32.cont [4/16] %v1402, 128
      %2296 = vxpose.xlu0.b32.cont [5/16] %v1406, 128
      %2297 = vxpose.xlu0.b32.cont [6/16] %v1410, 128
      %2298 = vxpose.xlu0.b32.cont [7/16] %v1414, 128
      %2299 = vxpose.xlu0.b32.cont [8/16] %v1418, 128
      %2300 = vxpose.xlu0.b32.cont [9/16] %v1422, 128
      %2301 = vxpose.xlu0.b32.cont [10/16] %v1426, 128
      %2302 = vxpose.xlu0.b32.cont [11/16] %v1430, 128
      %2303 = vxpose.xlu0.b32.cont [12/16] %v1434, 128
      %2304 = vxpose.xlu0.b32.cont [13/16] %v1438, 128
      %2305 = vxpose.xlu0.b32.cont [14/16] %v1442, 128
      %2306 = vxpose.xlu0.b32.cont [15/16] %v1446, 128
      %2307 = vxpose.xlu0.b32.end [16/16] %v1450, 128
      %v2308 = vpop.trf.xlu0
      %v2309 = vpop.trf.xlu0
      %v2310 = vpop.trf.xlu0
      %v2311 = vpop.trf.xlu0
      %v2312 = vpop.trf.xlu0
      %v2313 = vpop.trf.xlu0
      %v2314 = vpop.trf.xlu0
      %v2315 = vpop.trf.xlu0
      %v2316 = vpop.trf.xlu0
      %v2317 = vpop.trf.xlu0
      %v2318 = vpop.trf.xlu0
      %v2319 = vpop.trf.xlu0
      %v2320 = vpop.trf.xlu0
      %v2321 = vpop.trf.xlu0
      %v2322 = vpop.trf.xlu0
      %v2323 = vpop.trf.xlu0
      %2324 = vmatprep.subr.mxu0 0.0
      %2325 = vmatpush1.msra.mxu0 %v471
      %2326 = vmatprep.subr.mxu0 0.0
      %2327 = vmatpush1.msra.mxu0 %v477
      %2328 = vmatprep.subr.mxu0 0.0
      %2329 = vmatpush1.msra.mxu0 %v483
      %2330 = vmatprep.subr.mxu0 0.0
      %2331 = vmatpush1.msra.mxu0 %v489
      %2332 = vmatprep.subr.mxu0 0.0
      %2333 = vmatpush1.msra.mxu0 %v495
      %2334 = vmatprep.subr.mxu0 0.0
      %2335 = vmatpush1.msra.mxu0 %v501
      %2336 = vmatprep.subr.mxu0 0.0
      %2337 = vmatpush1.msra.mxu0 %v507
      %2338 = vmatprep.subr.mxu0 0.0
      %2339 = vmatpush1.msra.mxu0 %v513
      %2340 = vmatprep.subr.mxu0 0.0
      %2341 = vmatpush1.msra.mxu0 %v519
      %2342 = vmatprep.subr.mxu0 0.0
      %2343 = vmatpush1.msra.mxu0 %v525
      %2344 = vmatprep.subr.mxu0 0.0
      %2345 = vmatpush1.msra.mxu0 %v531
      %2346 = vmatprep.subr.mxu0 0.0
      %2347 = vmatpush1.msra.mxu0 %v537
      %2348 = vmatprep.subr.mxu0 0.0
      %2349 = vmatpush1.msra.mxu0 %v543
      %2350 = vmatprep.subr.mxu0 0.0
      %2351 = vmatpush1.msra.mxu0 %v549
      %2352 = vmatprep.subr.mxu0 0.0
      %2353 = vmatpush1.msra.mxu0 %v555
      %2354 = vmatprep.subr.mxu0 0.0
      %2355 = vmatpush1.msra.mxu0 %v561
      %2356 = vmatprep.subr.mxu0 0.0
      %2357 = vmatpush1.msra.mxu0 0.0
      %2358 = vmatprep.subr.mxu0 0.0
      %2359 = vmatpush1.msra.mxu0 0.0
      %2360 = vmatprep.subr.mxu0 0.0
      %2361 = vmatpush1.msra.mxu0 0.0
      %2362 = vmatprep.subr.mxu0 0.0
      %2363 = vmatpush1.msra.mxu0 0.0
      %2364 = vmatprep.subr.mxu0 0.0
      %2365 = vmatpush1.msra.mxu0 0.0
      %2366 = vmatprep.subr.mxu0 0.0
      %2367 = vmatpush1.msra.mxu0 0.0
      %2368 = vmatprep.subr.mxu0 0.0
      %2369 = vmatpush1.msra.mxu0 0.0
      %2370 = vmatprep.subr.mxu0 0.0
      %2371 = vmatpush1.msra.mxu0 0.0
      %2372 = vmatprep.subr.mxu0 0.0
      %2373 = vmatpush1.msra.mxu0 0.0
      %2374 = vmatprep.subr.mxu0 0.0
      %2375 = vmatpush1.msra.mxu0 0.0
      %2376 = vmatprep.subr.mxu0 0.0
      %2377 = vmatpush1.msra.mxu0 0.0
      %2378 = vmatprep.subr.mxu0 0.0
      %2379 = vmatpush1.msra.mxu0 0.0
      %2380 = vmatprep.subr.mxu0 0.0
      %2381 = vmatpush1.msra.mxu0 0.0
      %2382 = vmatprep.subr.mxu0 0.0
      %2383 = vmatpush1.msra.mxu0 0.0
      %2384 = vmatprep.subr.mxu0 0.0
      %2385 = vmatpush1.msra.mxu0 0.0
      %2386 = vmatprep.subr.mxu0 0.0
      %2387 = vmatpush1.msra.mxu0 0.0
      %2388 = vmatprep.mubr.f32.mxu0 0.0
      %2389 = vmatmul.mubr.f32.gmra.mrb[0].mxu0 %v2212
      %v2390 = vpop.f32.mrb[0].mxu0
      %v2391 = vadd.f32 %v891, %v2390
      %v2392 = vpop.f32.mrb[0].mxu0
      %2393 = vmatprep.mubr.f32.mxu0 0.0
      %2394 = vmatmul.mubr.f32.gmra.mrb[0].mxu0 %v2213
      %v2395 = vpop.f32.mrb[0].mxu0
      %v2396 = vadd.f32 %v896, %v2395
      %v2397 = vpop.f32.mrb[0].mxu0
      %2398 = vmatprep.mubr.f32.mxu0 0.0
      %2399 = vmatmul.mubr.f32.gmra.mrb[0].mxu0 %v2214
      %v2400 = vpop.f32.mrb[0].mxu0
      %v2401 = vadd.f32 %v901, %v2400
      %v2402 = vpop.f32.mrb[0].mxu0
      %2403 = vmatprep.mubr.f32.mxu0 0.0
      %2404 = vmatmul.mubr.f32.gmra.mrb[0].mxu0 %v2215
      %v2405 = vpop.f32.mrb[0].mxu0
      %v2406 = vadd.f32 %v906, %v2405
      %v2407 = vpop.f32.mrb[0].mxu0
      %2408 = vmatprep.mubr.f32.mxu0 0.0
      %2409 = vmatmul.mubr.f32.gmra.mrb[0].mxu0 %v2216
      %v2410 = vpop.f32.mrb[0].mxu0
      %v2411 = vadd.f32 %v911, %v2410
      %v2412 = vpop.f32.mrb[0].mxu0
      %2413 = vmatprep.mubr.f32.mxu0 0.0
      %2414 = vmatmul.mubr.f32.gmra.mrb[0].mxu0 %v2217
      %v2415 = vpop.f32.mrb[0].mxu0
      %v2416 = vadd.f32 %v916, %v2415
      %v2417 = vpop.f32.mrb[0].mxu0
      %2418 = vmatprep.mubr.f32.mxu0 0.0
      %2419 = vmatmul.mubr.f32.gmra.mrb[0].mxu0 %v2218
      %v2420 = vpop.f32.mrb[0].mxu0
      %v2421 = vadd.f32 %v921, %v2420
      %v2422 = vpop.f32.mrb[0].mxu0
      %2423 = vmatprep.mubr.f32.mxu0 0.0
      %2424 = vmatmul.mubr.f32.gmra.mrb[0].mxu0 %v2219
      %v2425 = vpop.f32.mrb[0].mxu0
      %v2426 = vadd.f32 %v926, %v2425
      %v2427 = vpop.f32.mrb[0].mxu0
      %2428 = vmatprep.mubr.f32.mxu0 0.0
      %2429 = vmatmul.mubr.f32.gmra.mrb[0].mxu0 %v2220
      %v2430 = vpop.f32.mrb[0].mxu0
      %v2431 = vadd.f32 %v931, %v2430
      %v2432 = vpop.f32.mrb[0].mxu0
      %2433 = vmatprep.mubr.f32.mxu0 0.0
      %2434 = vmatmul.mubr.f32.gmra.mrb[0].mxu0 %v2221
      %v2435 = vpop.f32.mrb[0].mxu0
      %v2436 = vadd.f32 %v936, %v2435
      %v2437 = vpop.f32.mrb[0].mxu0
      %2438 = vmatprep.mubr.f32.mxu0 0.0
      %2439 = vmatmul.mubr.f32.gmra.mrb[0].mxu0 %v2222
      %v2440 = vpop.f32.mrb[0].mxu0
      %v2441 = vadd.f32 %v941, %v2440
      %v2442 = vpop.f32.mrb[0].mxu0
      %2443 = vmatprep.mubr.f32.mxu0 0.0
      %2444 = vmatmul.mubr.f32.gmra.mrb[0].mxu0 %v2223
      %v2445 = vpop.f32.mrb[0].mxu0
      %v2446 = vadd.f32 %v946, %v2445
      %v2447 = vpop.f32.mrb[0].mxu0
      %2448 = vmatprep.mubr.f32.mxu0 0.0
      %2449 = vmatmul.mubr.f32.gmra.mrb[0].mxu0 %v2224
      %v2450 = vpop.f32.mrb[0].mxu0
      %v2451 = vadd.f32 %v951, %v2450
      %v2452 = vpop.f32.mrb[0].mxu0
      %2453 = vmatprep.mubr.f32.mxu0 0.0
      %2454 = vmatmul.mubr.f32.gmra.mrb[0].mxu0 %v2225
      %v2455 = vpop.f32.mrb[0].mxu0
      %v2456 = vadd.f32 %v956, %v2455
      %v2457 = vpop.f32.mrb[0].mxu0
      %2458 = vmatprep.mubr.f32.mxu0 0.0
      %2459 = vmatmul.mubr.f32.gmra.mrb[0].mxu0 %v2226
      %v2460 = vpop.f32.mrb[0].mxu0
      %v2461 = vadd.f32 %v961, %v2460
      %v2462 = vpop.f32.mrb[0].mxu0
      %2463 = vmatprep.mubr.f32.mxu0 0.0
      %2464 = vmatmul.mubr.f32.gmra.mrb[0].mxu0 %v2227
      %v2465 = vpop.f32.mrb[0].mxu0
      %v2466 = vadd.f32 %v966, %v2465
      %v2467 = vpop.f32.mrb[0].mxu0
      %2468 = vmatprep.mubr.f32.mxu0 0.0
      %2469 = vmatmul.mubr.f32.gmra.mrb[0].mxu0 %v2244
      %v2470 = vpop.f32.mrb[0].mxu0
      %v2471 = vadd.f32 %v971, %v2470
      %v2472 = vpop.f32.mrb[0].mxu0
      %2473 = vmatprep.mubr.f32.mxu0 0.0
      %2474 = vmatmul.mubr.f32.gmra.mrb[0].mxu0 %v2245
      %v2475 = vpop.f32.mrb[0].mxu0
      %v2476 = vadd.f32 %v976, %v2475
      %v2477 = vpop.f32.mrb[0].mxu0
      %2478 = vmatprep.mubr.f32.mxu0 0.0
      %2479 = vmatmul.mubr.f32.gmra.mrb[0].mxu0 %v2246
      %v2480 = vpop.f32.mrb[0].mxu0
      %v2481 = vadd.f32 %v981, %v2480
      %v2482 = vpop.f32.mrb[0].mxu0
      %2483 = vmatprep.mubr.f32.mxu0 0.0
      %2484 = vmatmul.mubr.f32.gmra.mrb[0].mxu0 %v2247
      %v2485 = vpop.f32.mrb[0].mxu0
      %v2486 = vadd.f32 %v986, %v2485
      %v2487 = vpop.f32.mrb[0].mxu0
      %2488 = vmatprep.mubr.f32.mxu0 0.0
      %2489 = vmatmul.mubr.f32.gmra.mrb[0].mxu0 %v2248
      %v2490 = vpop.f32.mrb[0].mxu0
      %v2491 = vadd.f32 %v991, %v2490
      %v2492 = vpop.f32.mrb[0].mxu0
      %2493 = vmatprep.mubr.f32.mxu0 0.0
      %2494 = vmatmul.mubr.f32.gmra.mrb[0].mxu0 %v2249
      %v2495 = vpop.f32.mrb[0].mxu0
      %v2496 = vadd.f32 %v996, %v2495
      %v2497 = vpop.f32.mrb[0].mxu0
      %2498 = vmatprep.mubr.f32.mxu0 0.0
      %2499 = vmatmul.mubr.f32.gmra.mrb[0].mxu0 %v2250
      %v2500 = vpop.f32.mrb[0].mxu0
      %v2501 = vadd.f32 %v1001, %v2500
      %v2502 = vpop.f32.mrb[0].mxu0
      %2503 = vmatprep.mubr.f32.mxu0 0.0
      %2504 = vmatmul.mubr.f32.gmra.mrb[0].mxu0 %v2251
      %v2505 = vpop.f32.mrb[0].mxu0
      %v2506 = vadd.f32 %v1006, %v2505
      %v2507 = vpop.f32.mrb[0].mxu0
      %2508 = vmatprep.mubr.f32.mxu0 0.0
      %2509 = vmatmul.mubr.f32.gmra.mrb[0].mxu0 %v2252
      %v2510 = vpop.f32.mrb[0].mxu0
      %v2511 = vadd.f32 %v1011, %v2510
      %v2512 = vpop.f32.mrb[0].mxu0
      %2513 = vmatprep.mubr.f32.mxu0 0.0
      %2514 = vmatmul.mubr.f32.gmra.mrb[0].mxu0 %v2253
      %v2515 = vpop.f32.mrb[0].mxu0
      %v2516 = vadd.f32 %v1016, %v2515
      %v2517 = vpop.f32.mrb[0].mxu0
      %2518 = vmatprep.mubr.f32.mxu0 0.0
      %2519 = vmatmul.mubr.f32.gmra.mrb[0].mxu0 %v2254
      %v2520 = vpop.f32.mrb[0].mxu0
      %v2521 = vadd.f32 %v1021, %v2520
      %v2522 = vpop.f32.mrb[0].mxu0
      %2523 = vmatprep.mubr.f32.mxu0 0.0
      %2524 = vmatmul.mubr.f32.gmra.mrb[0].mxu0 %v2255
      %v2525 = vpop.f32.mrb[0].mxu0
      %v2526 = vadd.f32 %v1026, %v2525
      %v2527 = vpop.f32.mrb[0].mxu0
      %2528 = vmatprep.mubr.f32.mxu0 0.0
      %2529 = vmatmul.mubr.f32.gmra.mrb[0].mxu0 %v2256
      %v2530 = vpop.f32.mrb[0].mxu0
      %v2531 = vadd.f32 %v1031, %v2530
      %v2532 = vpop.f32.mrb[0].mxu0
      %2533 = vmatprep.mubr.f32.mxu0 0.0
      %2534 = vmatmul.mubr.f32.gmra.mrb[0].mxu0 %v2257
      %v2535 = vpop.f32.mrb[0].mxu0
      %v2536 = vadd.f32 %v1036, %v2535
      %v2537 = vpop.f32.mrb[0].mxu0
      %2538 = vmatprep.mubr.f32.mxu0 0.0
      %2539 = vmatmul.mubr.f32.gmra.mrb[0].mxu0 %v2258
      %v2540 = vpop.f32.mrb[0].mxu0
      %v2541 = vadd.f32 %v1041, %v2540
      %v2542 = vpop.f32.mrb[0].mxu0
      %2543 = vmatprep.mubr.f32.mxu0 0.0
      %2544 = vmatmul.mubr.f32.gmra.mrb[0].mxu0 %v2259
      %v2545 = vpop.f32.mrb[0].mxu0
      %v2546 = vadd.f32 %v1046, %v2545
      %v2547 = vpop.f32.mrb[0].mxu0
      %2548 = vmatprep.mubr.f32.mxu0 0.0
      %2549 = vmatmul.mubr.f32.gmra.mrb[0].mxu0 %v2276
      %v2550 = vpop.f32.mrb[0].mxu0
      %v2551 = vadd.f32 %v1051, %v2550
      %v2552 = vpop.f32.mrb[0].mxu0
      %2553 = vmatprep.mubr.f32.mxu0 0.0
      %2554 = vmatmul.mubr.f32.gmra.mrb[0].mxu0 %v2277
      %v2555 = vpop.f32.mrb[0].mxu0
      %v2556 = vadd.f32 %v1056, %v2555
      %v2557 = vpop.f32.mrb[0].mxu0
      %2558 = vmatprep.mubr.f32.mxu0 0.0
      %2559 = vmatmul.mubr.f32.gmra.mrb[0].mxu0 %v2278
      %v2560 = vpop.f32.mrb[0].mxu0
      %v2561 = vadd.f32 %v1061, %v2560
      %v2562 = vpop.f32.mrb[0].mxu0
      %2563 = vmatprep.mubr.f32.mxu0 0.0
      %2564 = vmatmul.mubr.f32.gmra.mrb[0].mxu0 %v2279
      %v2565 = vpop.f32.mrb[0].mxu0
      %v2566 = vadd.f32 %v1066, %v2565
      %v2567 = vpop.f32.mrb[0].mxu0
      %2568 = vmatprep.mubr.f32.mxu0 0.0
      %2569 = vmatmul.mubr.f32.gmra.mrb[0].mxu0 %v2280
      %v2570 = vpop.f32.mrb[0].mxu0
      %v2571 = vadd.f32 %v1071, %v2570
      %v2572 = vpop.f32.mrb[0].mxu0
      %2573 = vmatprep.mubr.f32.mxu0 0.0
      %2574 = vmatmul.mubr.f32.gmra.mrb[0].mxu0 %v2281
      %v2575 = vpop.f32.mrb[0].mxu0
      %v2576 = vadd.f32 %v1076, %v2575
      %v2577 = vpop.f32.mrb[0].mxu0
      %2578 = vmatprep.mubr.f32.mxu0 0.0
      %2579 = vmatmul.mubr.f32.gmra.mrb[0].mxu0 %v2282
      %v2580 = vpop.f32.mrb[0].mxu0
      %v2581 = vadd.f32 %v1081, %v2580
      %v2582 = vpop.f32.mrb[0].mxu0
      %2583 = vmatprep.mubr.f32.mxu0 0.0
      %2584 = vmatmul.mubr.f32.gmra.mrb[0].mxu0 %v2283
      %v2585 = vpop.f32.mrb[0].mxu0
      %v2586 = vadd.f32 %v1086, %v2585
      %v2587 = vpop.f32.mrb[0].mxu0
      %2588 = vmatprep.mubr.f32.mxu0 0.0
      %2589 = vmatmul.mubr.f32.gmra.mrb[0].mxu0 %v2284
      %v2590 = vpop.f32.mrb[0].mxu0
      %v2591 = vadd.f32 %v1091, %v2590
      %v2592 = vpop.f32.mrb[0].mxu0
      %2593 = vmatprep.mubr.f32.mxu0 0.0
      %2594 = vmatmul.mubr.f32.gmra.mrb[0].mxu0 %v2285
      %v2595 = vpop.f32.mrb[0].mxu0
      %v2596 = vadd.f32 %v1096, %v2595
      %v2597 = vpop.f32.mrb[0].mxu0
      %2598 = vmatprep.mubr.f32.mxu0 0.0
      %2599 = vmatmul.mubr.f32.gmra.mrb[0].mxu0 %v2286
      %v2600 = vpop.f32.mrb[0].mxu0
      %v2601 = vadd.f32 %v1101, %v2600
      %v2602 = vpop.f32.mrb[0].mxu0
      %2603 = vmatprep.mubr.f32.mxu0 0.0
      %2604 = vmatmul.mubr.f32.gmra.mrb[0].mxu0 %v2287
      %v2605 = vpop.f32.mrb[0].mxu0
      %v2606 = vadd.f32 %v1106, %v2605
      %v2607 = vpop.f32.mrb[0].mxu0
      %2608 = vmatprep.mubr.f32.mxu0 0.0
      %2609 = vmatmul.mubr.f32.gmra.mrb[0].mxu0 %v2288
      %v2610 = vpop.f32.mrb[0].mxu0
      %v2611 = vadd.f32 %v1111, %v2610
      %v2612 = vpop.f32.mrb[0].mxu0
      %2613 = vmatprep.mubr.f32.mxu0 0.0
      %2614 = vmatmul.mubr.f32.gmra.mrb[0].mxu0 %v2289
      %v2615 = vpop.f32.mrb[0].mxu0
      %v2616 = vadd.f32 %v1116, %v2615
      %v2617 = vpop.f32.mrb[0].mxu0
      %2618 = vmatprep.mubr.f32.mxu0 0.0
      %2619 = vmatmul.mubr.f32.gmra.mrb[0].mxu0 %v2290
      %v2620 = vpop.f32.mrb[0].mxu0
      %v2621 = vadd.f32 %v1121, %v2620
      %v2622 = vpop.f32.mrb[0].mxu0
      %2623 = vmatprep.mubr.f32.mxu0 0.0
      %2624 = vmatmul.mubr.f32.gmra.mrb[0].mxu0 %v2291
      %v2625 = vpop.f32.mrb[0].mxu0
      %v2626 = vadd.f32 %v1126, %v2625
      %v2627 = vpop.f32.mrb[0].mxu0
      %2628 = vmatprep.mubr.f32.mxu0 0.0
      %2629 = vmatmul.mubr.f32.gmra.mrb[0].mxu0 %v2308
      %v2630 = vpop.f32.mrb[0].mxu0
      %v2631 = vadd.f32 %v1131, %v2630
      %v2632 = vpop.f32.mrb[0].mxu0
      %2633 = vmatprep.mubr.f32.mxu0 0.0
      %2634 = vmatmul.mubr.f32.gmra.mrb[0].mxu0 %v2309
      %v2635 = vpop.f32.mrb[0].mxu0
      %v2636 = vadd.f32 %v1136, %v2635
      %v2637 = vpop.f32.mrb[0].mxu0
      %2638 = vmatprep.mubr.f32.mxu0 0.0
      %2639 = vmatmul.mubr.f32.gmra.mrb[0].mxu0 %v2310
      %v2640 = vpop.f32.mrb[0].mxu0
      %v2641 = vadd.f32 %v1141, %v2640
      %v2642 = vpop.f32.mrb[0].mxu0
      %2643 = vmatprep.mubr.f32.mxu0 0.0
      %2644 = vmatmul.mubr.f32.gmra.mrb[0].mxu0 %v2311
      %v2645 = vpop.f32.mrb[0].mxu0
      %v2646 = vadd.f32 %v1146, %v2645
      %v2647 = vpop.f32.mrb[0].mxu0
      %2648 = vmatprep.mubr.f32.mxu0 0.0
      %2649 = vmatmul.mubr.f32.gmra.mrb[0].mxu0 %v2312
      %v2650 = vpop.f32.mrb[0].mxu0
      %v2651 = vadd.f32 %v1151, %v2650
      %v2652 = vpop.f32.mrb[0].mxu0
      %2653 = vmatprep.mubr.f32.mxu0 0.0
      %2654 = vmatmul.mubr.f32.gmra.mrb[0].mxu0 %v2313
      %v2655 = vpop.f32.mrb[0].mxu0
      %v2656 = vadd.f32 %v1156, %v2655
      %v2657 = vpop.f32.mrb[0].mxu0
      %2658 = vmatprep.mubr.f32.mxu0 0.0
      %2659 = vmatmul.mubr.f32.gmra.mrb[0].mxu0 %v2314
      %v2660 = vpop.f32.mrb[0].mxu0
      %v2661 = vadd.f32 %v1161, %v2660
      %v2662 = vpop.f32.mrb[0].mxu0
      %2663 = vmatprep.mubr.f32.mxu0 0.0
      %2664 = vmatmul.mubr.f32.gmra.mrb[0].mxu0 %v2315
      %v2665 = vpop.f32.mrb[0].mxu0
      %v2666 = vadd.f32 %v1166, %v2665
      %v2667 = vpop.f32.mrb[0].mxu0
      %2668 = vmatprep.mubr.f32.mxu0 0.0
      %2669 = vmatmul.mubr.f32.gmra.mrb[0].mxu0 %v2316
      %v2670 = vpop.f32.mrb[0].mxu0
      %v2671 = vadd.f32 %v1171, %v2670
      %v2672 = vpop.f32.mrb[0].mxu0
      %2673 = vmatprep.mubr.f32.mxu0 0.0
      %2674 = vmatmul.mubr.f32.gmra.mrb[0].mxu0 %v2317
      %v2675 = vpop.f32.mrb[0].mxu0
      %v2676 = vadd.f32 %v1176, %v2675
      %v2677 = vpop.f32.mrb[0].mxu0
      %2678 = vmatprep.mubr.f32.mxu0 0.0
      %2679 = vmatmul.mubr.f32.gmra.mrb[0].mxu0 %v2318
      %v2680 = vpop.f32.mrb[0].mxu0
      %v2681 = vadd.f32 %v1181, %v2680
      %v2682 = vpop.f32.mrb[0].mxu0
      %2683 = vmatprep.mubr.f32.mxu0 0.0
      %2684 = vmatmul.mubr.f32.gmra.mrb[0].mxu0 %v2319
      %v2685 = vpop.f32.mrb[0].mxu0
      %v2686 = vadd.f32 %v1186, %v2685
      %v2687 = vpop.f32.mrb[0].mxu0
      %2688 = vmatprep.mubr.f32.mxu0 0.0
      %2689 = vmatmul.mubr.f32.gmra.mrb[0].mxu0 %v2320
      %v2690 = vpop.f32.mrb[0].mxu0
      %v2691 = vadd.f32 %v1191, %v2690
      %v2692 = vpop.f32.mrb[0].mxu0
      %2693 = vmatprep.mubr.f32.mxu0 0.0
      %2694 = vmatmul.mubr.f32.gmra.mrb[0].mxu0 %v2321
      %v2695 = vpop.f32.mrb[0].mxu0
      %v2696 = vadd.f32 %v1196, %v2695
      %v2697 = vpop.f32.mrb[0].mxu0
      %2698 = vmatprep.mubr.f32.mxu0 0.0
      %2699 = vmatmul.mubr.f32.gmra.mrb[0].mxu0 %v2322
      %v2700 = vpop.f32.mrb[0].mxu0
      %v2701 = vadd.f32 %v1201, %v2700
      %v2702 = vpop.f32.mrb[0].mxu0
      %2703 = vmatprep.mubr.f32.mxu0 0.0
      %2704 = vmatmul.mubr.f32.gmra.mrb[0].mxu0 %v2323
      %v2705 = vpop.f32.mrb[0].mxu0
      %v2706 = vadd.f32 %v1206, %v2705
      %v2707 = vpop.f32.mrb[0].mxu0
      %2708 = vdwg.mxu0
      %v2709 = vmul.f32 %v1878, %v2391
      %v2710 = vmul.f32 %v1883, %v2396
      %v2711 = vmul.f32 %v1888, %v2401
      %v2712 = vmul.f32 %v1893, %v2406
      %v2713 = vmul.f32 %v1898, %v2411
      %v2714 = vmul.f32 %v1903, %v2416
      %v2715 = vmul.f32 %v1908, %v2421
      %v2716 = vmul.f32 %v1913, %v2426
      %v2717 = vmul.f32 %v1918, %v2431
      %v2718 = vmul.f32 %v1923, %v2436
      %v2719 = vmul.f32 %v1928, %v2441
      %v2720 = vmul.f32 %v1933, %v2446
      %v2721 = vmul.f32 %v1938, %v2451
      %v2722 = vmul.f32 %v1943, %v2456
      %v2723 = vmul.f32 %v1948, %v2461
      %v2724 = vmul.f32 %v1953, %v2466
      %v2725 = vmul.f32 %v1958, %v2471
      %v2726 = vmul.f32 %v1963, %v2476
      %v2727 = vmul.f32 %v1968, %v2481
      %v2728 = vmul.f32 %v1973, %v2486
      %v2729 = vmul.f32 %v1978, %v2491
      %v2730 = vmul.f32 %v1983, %v2496
      %v2731 = vmul.f32 %v1988, %v2501
      %v2732 = vmul.f32 %v1993, %v2506
      %v2733 = vmul.f32 %v1998, %v2511
      %v2734 = vmul.f32 %v2003, %v2516
      %v2735 = vmul.f32 %v2008, %v2521
      %v2736 = vmul.f32 %v2013, %v2526
      %v2737 = vmul.f32 %v2018, %v2531
      %v2738 = vmul.f32 %v2023, %v2536
      %v2739 = vmul.f32 %v2028, %v2541
      %v2740 = vmul.f32 %v2033, %v2546
      %v2741 = vmul.f32 %v2038, %v2551
      %v2742 = vmul.f32 %v2043, %v2556
      %v2743 = vmul.f32 %v2048, %v2561
      %v2744 = vmul.f32 %v2053, %v2566
      %v2745 = vmul.f32 %v2058, %v2571
      %v2746 = vmul.f32 %v2063, %v2576
      %v2747 = vmul.f32 %v2068, %v2581
      %v2748 = vmul.f32 %v2073, %v2586
      %v2749 = vmul.f32 %v2078, %v2591
      %v2750 = vmul.f32 %v2083, %v2596
      %v2751 = vmul.f32 %v2088, %v2601
      %v2752 = vmul.f32 %v2093, %v2606
      %v2753 = vmul.f32 %v2098, %v2611
      %v2754 = vmul.f32 %v2103, %v2616
      %v2755 = vmul.f32 %v2108, %v2621
      %v2756 = vmul.f32 %v2113, %v2626
      %v2757 = vmul.f32 %v2118, %v2631
      %v2758 = vmul.f32 %v2123, %v2636
      %v2759 = vmul.f32 %v2128, %v2641
      %v2760 = vmul.f32 %v2133, %v2646
      %v2761 = vmul.f32 %v2138, %v2651
      %v2762 = vmul.f32 %v2143, %v2656
      %v2763 = vmul.f32 %v2148, %v2661
      %v2764 = vmul.f32 %v2153, %v2666
      %v2765 = vmul.f32 %v2158, %v2671
      %v2766 = vmul.f32 %v2163, %v2676
      %v2767 = vmul.f32 %v2168, %v2681
      %v2768 = vmul.f32 %v2173, %v2686
      %v2769 = vmul.f32 %v2178, %v2691
      %v2770 = vmul.f32 %v2183, %v2696
      %v2771 = vmul.f32 %v2188, %v2701
      %v2772 = vmul.f32 %v2193, %v2706
      %vm2773 = vcmask 523264
      %v2775 = vsel %vm2773, %v2709, 0
      %v2778 = vsel %vm2773, %v2710, 0
      %v2781 = vsel %vm2773, %v2711, 0
      %v2784 = vsel %vm2773, %v2712, 0
      %v2787 = vsel %vm2773, %v2713, 0
      %v2790 = vsel %vm2773, %v2714, 0
      %v2793 = vsel %vm2773, %v2715, 0
      %v2796 = vsel %vm2773, %v2716, 0
      %v2799 = vsel %vm2773, %v2717, 0
      %v2802 = vsel %vm2773, %v2718, 0
      %v2805 = vsel %vm2773, %v2719, 0
      %v2808 = vsel %vm2773, %v2720, 0
      %v2811 = vsel %vm2773, %v2721, 0
      %v2814 = vsel %vm2773, %v2722, 0
      %v2817 = vsel %vm2773, %v2723, 0
      %v2820 = vsel %vm2773, %v2724, 0
      %v2823 = vsel %vm2773, %v2725, 0
      %v2826 = vsel %vm2773, %v2726, 0
      %v2829 = vsel %vm2773, %v2727, 0
      %v2832 = vsel %vm2773, %v2728, 0
      %v2835 = vsel %vm2773, %v2729, 0
      %v2838 = vsel %vm2773, %v2730, 0
      %v2841 = vsel %vm2773, %v2731, 0
      %v2844 = vsel %vm2773, %v2732, 0
      %v2847 = vsel %vm2773, %v2733, 0
      %v2850 = vsel %vm2773, %v2734, 0
      %v2853 = vsel %vm2773, %v2735, 0
      %v2856 = vsel %vm2773, %v2736, 0
      %v2859 = vsel %vm2773, %v2737, 0
      %v2862 = vsel %vm2773, %v2738, 0
      %v2865 = vsel %vm2773, %v2739, 0
      %v2868 = vsel %vm2773, %v2740, 0
      %v2871 = vsel %vm2773, %v2741, 0
      %v2874 = vsel %vm2773, %v2742, 0
      %v2877 = vsel %vm2773, %v2743, 0
      %v2880 = vsel %vm2773, %v2744, 0
      %v2883 = vsel %vm2773, %v2745, 0
      %v2886 = vsel %vm2773, %v2746, 0
      %v2889 = vsel %vm2773, %v2747, 0
      %v2892 = vsel %vm2773, %v2748, 0
      %v2895 = vsel %vm2773, %v2749, 0
      %v2898 = vsel %vm2773, %v2750, 0
      %v2901 = vsel %vm2773, %v2751, 0
      %v2904 = vsel %vm2773, %v2752, 0
      %v2907 = vsel %vm2773, %v2753, 0
      %v2910 = vsel %vm2773, %v2754, 0
      %v2913 = vsel %vm2773, %v2755, 0
      %v2916 = vsel %vm2773, %v2756, 0
      %v2919 = vsel %vm2773, %v2757, 0
      %v2922 = vsel %vm2773, %v2758, 0
      %v2925 = vsel %vm2773, %v2759, 0
      %v2928 = vsel %vm2773, %v2760, 0
      %v2931 = vsel %vm2773, %v2761, 0
      %v2934 = vsel %vm2773, %v2762, 0
      %v2937 = vsel %vm2773, %v2763, 0
      %v2940 = vsel %vm2773, %v2764, 0
      %v2943 = vsel %vm2773, %v2765, 0
      %v2946 = vsel %vm2773, %v2766, 0
      %v2949 = vsel %vm2773, %v2767, 0
      %v2952 = vsel %vm2773, %v2768, 0
      %v2955 = vsel %vm2773, %v2769, 0
      %v2958 = vsel %vm2773, %v2770, 0
      %v2961 = vsel %vm2773, %v2771, 0
      %v2964 = vsel %vm2773, %v2772, 0
      %2966 = vmatprep.subr.mxu0 0.0
      %2967 = vmatpush1.msra.mxu0 %v1675
      %2968 = vmatprep.subr.mxu0 0.0
      %2969 = vmatpush1.msra.mxu0 %v1676
      %2970 = vmatprep.subr.mxu0 0.0
      %2971 = vmatpush1.msra.mxu0 %v1677
      %2972 = vmatprep.subr.mxu0 0.0
      %2973 = vmatpush1.msra.mxu0 %v1678
      %2974 = vmatprep.subr.mxu0 0.0
      %2975 = vmatpush1.msra.mxu0 %v1679
      %2976 = vmatprep.subr.mxu0 0.0
      %2977 = vmatpush1.msra.mxu0 %v1680
      %2978 = vmatprep.subr.mxu0 0.0
      %2979 = vmatpush1.msra.mxu0 %v1681
      %2980 = vmatprep.subr.mxu0 0.0
      %2981 = vmatpush1.msra.mxu0 %v1682
      %2982 = vmatprep.subr.mxu0 0.0
      %2983 = vmatpush1.msra.mxu0 0.0
      %2984 = vmatprep.subr.mxu0 0.0
      %2985 = vmatpush1.msra.mxu0 0.0
      %2986 = vmatprep.subr.mxu0 0.0
      %2987 = vmatpush1.msra.mxu0 0.0
      %2988 = vmatprep.subr.mxu0 0.0
      %2989 = vmatpush1.msra.mxu0 0.0
      %2990 = vmatprep.subr.mxu0 0.0
      %2991 = vmatpush1.msra.mxu0 0.0
      %2992 = vmatprep.subr.mxu0 0.0
      %2993 = vmatpush1.msra.mxu0 0.0
      %2994 = vmatprep.subr.mxu0 0.0
      %2995 = vmatpush1.msra.mxu0 0.0
      %2996 = vmatprep.subr.mxu0 0.0
      %2997 = vmatpush1.msra.mxu0 0.0
      %2998 = vmatprep.subr.mxu0 0.0
      %2999 = vmatpush1.msra.mxu0 0.0
      %3000 = vmatprep.subr.mxu0 0.0
      %3001 = vmatpush1.msra.mxu0 0.0
      %3002 = vmatprep.subr.mxu0 0.0
      %3003 = vmatpush1.msra.mxu0 0.0
      %3004 = vmatprep.subr.mxu0 0.0
      %3005 = vmatpush1.msra.mxu0 0.0
      %3006 = vmatprep.subr.mxu0 0.0
      %3007 = vmatpush1.msra.mxu0 0.0
      %3008 = vmatprep.subr.mxu0 0.0
      %3009 = vmatpush1.msra.mxu0 0.0
      %3010 = vmatprep.subr.mxu0 0.0
      %3011 = vmatpush1.msra.mxu0 0.0
      %3012 = vmatprep.subr.mxu0 0.0
      %3013 = vmatpush1.msra.mxu0 0.0
      %3014 = vmatprep.subr.mxu0 0.0
      %3015 = vmatpush1.msra.mxu0 0.0
      %3016 = vmatprep.subr.mxu0 0.0
      %3017 = vmatpush1.msra.mxu0 0.0
      %3018 = vmatprep.subr.mxu0 0.0
      %3019 = vmatpush1.msra.mxu0 0.0
      %3020 = vmatprep.subr.mxu0 0.0
      %3021 = vmatpush1.msra.mxu0 0.0
      %3022 = vmatprep.subr.mxu0 0.0
      %3023 = vmatpush1.msra.mxu0 0.0
      %3024 = vmatprep.subr.mxu0 0.0
      %3025 = vmatpush1.msra.mxu0 0.0
      %3026 = vmatprep.subr.mxu0 0.0
      %3027 = vmatpush1.msra.mxu0 0.0
      %3028 = vmatprep.subr.mxu0 0.0
      %3029 = vmatpush1.msra.mxu0 0.0
      %3030 = vmatprep.mubr.f32.mxu0 0.0
      %3031 = vmatmul.mubr.f32.gmra.mrb[0].mxu0 %v2775
      %v3032 = vpop.f32.mrb[0].mxu0
      %v3033 = vadd.f32 0.0, %v3032
      %v3034 = vpop.f32.mrb[0].mxu0
      %3035 = vmatprep.mubr.f32.mxu0 0.0
      %3036 = vmatmul.mubr.f32.gmra.mrb[0].mxu0 %v2778
      %v3037 = vpop.f32.mrb[0].mxu0
      %v3038 = vadd.f32 0.0, %v3037
      %v3039 = vpop.f32.mrb[0].mxu0
      %3040 = vmatprep.mubr.f32.mxu0 0.0
      %3041 = vmatmul.mubr.f32.gmra.mrb[0].mxu0 %v2781
      %v3042 = vpop.f32.mrb[0].mxu0
      %v3043 = vadd.f32 0.0, %v3042
      %v3044 = vpop.f32.mrb[0].mxu0
      %3045 = vmatprep.mubr.f32.mxu0 0.0
      %3046 = vmatmul.mubr.f32.gmra.mrb[0].mxu0 %v2784
      %v3047 = vpop.f32.mrb[0].mxu0
      %v3048 = vadd.f32 0.0, %v3047
      %v3049 = vpop.f32.mrb[0].mxu0
      %3050 = vmatprep.mubr.f32.mxu0 0.0
      %3051 = vmatmul.mubr.f32.gmra.mrb[0].mxu0 %v2787
      %v3052 = vpop.f32.mrb[0].mxu0
      %v3053 = vadd.f32 0.0, %v3052
      %v3054 = vpop.f32.mrb[0].mxu0
      %3055 = vmatprep.mubr.f32.mxu0 0.0
      %3056 = vmatmul.mubr.f32.gmra.mrb[0].mxu0 %v2790
      %v3057 = vpop.f32.mrb[0].mxu0
      %v3058 = vadd.f32 0.0, %v3057
      %v3059 = vpop.f32.mrb[0].mxu0
      %3060 = vmatprep.mubr.f32.mxu0 0.0
      %3061 = vmatmul.mubr.f32.gmra.mrb[0].mxu0 %v2793
      %v3062 = vpop.f32.mrb[0].mxu0
      %v3063 = vadd.f32 0.0, %v3062
      %v3064 = vpop.f32.mrb[0].mxu0
      %3065 = vmatprep.mubr.f32.mxu0 0.0
      %3066 = vmatmul.mubr.f32.gmra.mrb[0].mxu0 %v2796
      %v3067 = vpop.f32.mrb[0].mxu0
      %v3068 = vadd.f32 0.0, %v3067
      %v3069 = vpop.f32.mrb[0].mxu0
      %3070 = vmatprep.mubr.f32.mxu0 0.0
      %3071 = vmatmul.mubr.f32.gmra.mrb[0].mxu0 %v2799
      %v3072 = vpop.f32.mrb[0].mxu0
      %v3073 = vadd.f32 0.0, %v3072
      %v3074 = vpop.f32.mrb[0].mxu0
      %3075 = vmatprep.mubr.f32.mxu0 0.0
      %3076 = vmatmul.mubr.f32.gmra.mrb[0].mxu0 %v2802
      %v3077 = vpop.f32.mrb[0].mxu0
      %v3078 = vadd.f32 0.0, %v3077
      %v3079 = vpop.f32.mrb[0].mxu0
      %3080 = vmatprep.mubr.f32.mxu0 0.0
      %3081 = vmatmul.mubr.f32.gmra.mrb[0].mxu0 %v2805
      %v3082 = vpop.f32.mrb[0].mxu0
      %v3083 = vadd.f32 0.0, %v3082
      %v3084 = vpop.f32.mrb[0].mxu0
      %3085 = vmatprep.mubr.f32.mxu0 0.0
      %3086 = vmatmul.mubr.f32.gmra.mrb[0].mxu0 %v2808
      %v3087 = vpop.f32.mrb[0].mxu0
      %v3088 = vadd.f32 0.0, %v3087
      %v3089 = vpop.f32.mrb[0].mxu0
      %3090 = vmatprep.mubr.f32.mxu0 0.0
      %3091 = vmatmul.mubr.f32.gmra.mrb[0].mxu0 %v2811
      %v3092 = vpop.f32.mrb[0].mxu0
      %v3093 = vadd.f32 0.0, %v3092
      %v3094 = vpop.f32.mrb[0].mxu0
      %3095 = vmatprep.mubr.f32.mxu0 0.0
      %3096 = vmatmul.mubr.f32.gmra.mrb[0].mxu0 %v2814
      %v3097 = vpop.f32.mrb[0].mxu0
      %v3098 = vadd.f32 0.0, %v3097
      %v3099 = vpop.f32.mrb[0].mxu0
      %3100 = vmatprep.mubr.f32.mxu0 0.0
      %3101 = vmatmul.mubr.f32.gmra.mrb[0].mxu0 %v2817
      %v3102 = vpop.f32.mrb[0].mxu0
      %v3103 = vadd.f32 0.0, %v3102
      %v3104 = vpop.f32.mrb[0].mxu0
      %3105 = vmatprep.mubr.f32.mxu0 0.0
      %3106 = vmatmul.mubr.f32.gmra.mrb[0].mxu0 %v2820
      %v3107 = vpop.f32.mrb[0].mxu0
      %v3108 = vadd.f32 0.0, %v3107
      %v3109 = vpop.f32.mrb[0].mxu0
      %3110 = vmatprep.mubr.f32.mxu0 0.0
      %3111 = vmatmul.mubr.f32.gmra.mrb[0].mxu0 %v2823
      %v3112 = vpop.f32.mrb[0].mxu0
      %v3113 = vadd.f32 0.0, %v3112
      %v3114 = vpop.f32.mrb[0].mxu0
      %3115 = vmatprep.mubr.f32.mxu0 0.0
      %3116 = vmatmul.mubr.f32.gmra.mrb[0].mxu0 %v2826
      %v3117 = vpop.f32.mrb[0].mxu0
      %v3118 = vadd.f32 0.0, %v3117
      %v3119 = vpop.f32.mrb[0].mxu0
      %3120 = vmatprep.mubr.f32.mxu0 0.0
      %3121 = vmatmul.mubr.f32.gmra.mrb[0].mxu0 %v2829
      %v3122 = vpop.f32.mrb[0].mxu0
      %v3123 = vadd.f32 0.0, %v3122
      %v3124 = vpop.f32.mrb[0].mxu0
      %3125 = vmatprep.mubr.f32.mxu0 0.0
      %3126 = vmatmul.mubr.f32.gmra.mrb[0].mxu0 %v2832
      %v3127 = vpop.f32.mrb[0].mxu0
      %v3128 = vadd.f32 0.0, %v3127
      %v3129 = vpop.f32.mrb[0].mxu0
      %3130 = vmatprep.mubr.f32.mxu0 0.0
      %3131 = vmatmul.mubr.f32.gmra.mrb[0].mxu0 %v2835
      %v3132 = vpop.f32.mrb[0].mxu0
      %v3133 = vadd.f32 0.0, %v3132
      %v3134 = vpop.f32.mrb[0].mxu0
      %3135 = vmatprep.mubr.f32.mxu0 0.0
      %3136 = vmatmul.mubr.f32.gmra.mrb[0].mxu0 %v2838
      %v3137 = vpop.f32.mrb[0].mxu0
      %v3138 = vadd.f32 0.0, %v3137
      %v3139 = vpop.f32.mrb[0].mxu0
      %3140 = vmatprep.mubr.f32.mxu0 0.0
      %3141 = vmatmul.mubr.f32.gmra.mrb[0].mxu0 %v2841
      %v3142 = vpop.f32.mrb[0].mxu0
      %v3143 = vadd.f32 0.0, %v3142
      %v3144 = vpop.f32.mrb[0].mxu0
      %3145 = vmatprep.mubr.f32.mxu0 0.0
      %3146 = vmatmul.mubr.f32.gmra.mrb[0].mxu0 %v2844
      %v3147 = vpop.f32.mrb[0].mxu0
      %v3148 = vadd.f32 0.0, %v3147
      %v3149 = vpop.f32.mrb[0].mxu0
      %3150 = vmatprep.mubr.f32.mxu0 0.0
      %3151 = vmatmul.mubr.f32.gmra.mrb[0].mxu0 %v2847
      %v3152 = vpop.f32.mrb[0].mxu0
      %v3153 = vadd.f32 0.0, %v3152
      %v3154 = vpop.f32.mrb[0].mxu0
      %3155 = vmatprep.mubr.f32.mxu0 0.0
      %3156 = vmatmul.mubr.f32.gmra.mrb[0].mxu0 %v2850
      %v3157 = vpop.f32.mrb[0].mxu0
      %v3158 = vadd.f32 0.0, %v3157
      %v3159 = vpop.f32.mrb[0].mxu0
      %3160 = vmatprep.mubr.f32.mxu0 0.0
      %3161 = vmatmul.mubr.f32.gmra.mrb[0].mxu0 %v2853
      %v3162 = vpop.f32.mrb[0].mxu0
      %v3163 = vadd.f32 0.0, %v3162
      %v3164 = vpop.f32.mrb[0].mxu0
      %3165 = vmatprep.mubr.f32.mxu0 0.0
      %3166 = vmatmul.mubr.f32.gmra.mrb[0].mxu0 %v2856
      %v3167 = vpop.f32.mrb[0].mxu0
      %v3168 = vadd.f32 0.0, %v3167
      %v3169 = vpop.f32.mrb[0].mxu0
      %3170 = vmatprep.mubr.f32.mxu0 0.0
      %3171 = vmatmul.mubr.f32.gmra.mrb[0].mxu0 %v2859
      %v3172 = vpop.f32.mrb[0].mxu0
      %v3173 = vadd.f32 0.0, %v3172
      %v3174 = vpop.f32.mrb[0].mxu0
      %3175 = vmatprep.mubr.f32.mxu0 0.0
      %3176 = vmatmul.mubr.f32.gmra.mrb[0].mxu0 %v2862
      %v3177 = vpop.f32.mrb[0].mxu0
      %v3178 = vadd.f32 0.0, %v3177
      %v3179 = vpop.f32.mrb[0].mxu0
      %3180 = vmatprep.mubr.f32.mxu0 0.0
      %3181 = vmatmul.mubr.f32.gmra.mrb[0].mxu0 %v2865
      %v3182 = vpop.f32.mrb[0].mxu0
      %v3183 = vadd.f32 0.0, %v3182
      %v3184 = vpop.f32.mrb[0].mxu0
      %3185 = vmatprep.mubr.f32.mxu0 0.0
      %3186 = vmatmul.mubr.f32.gmra.mrb[0].mxu0 %v2868
      %v3187 = vpop.f32.mrb[0].mxu0
      %v3188 = vadd.f32 0.0, %v3187
      %v3189 = vpop.f32.mrb[0].mxu0
      %3190 = vmatprep.mubr.f32.mxu0 0.0
      %3191 = vmatmul.mubr.f32.gmra.mrb[0].mxu0 %v2871
      %v3192 = vpop.f32.mrb[0].mxu0
      %v3193 = vadd.f32 0.0, %v3192
      %v3194 = vpop.f32.mrb[0].mxu0
      %3195 = vmatprep.mubr.f32.mxu0 0.0
      %3196 = vmatmul.mubr.f32.gmra.mrb[0].mxu0 %v2874
      %v3197 = vpop.f32.mrb[0].mxu0
      %v3198 = vadd.f32 0.0, %v3197
      %v3199 = vpop.f32.mrb[0].mxu0
      %3200 = vmatprep.mubr.f32.mxu0 0.0
      %3201 = vmatmul.mubr.f32.gmra.mrb[0].mxu0 %v2877
      %v3202 = vpop.f32.mrb[0].mxu0
      %v3203 = vadd.f32 0.0, %v3202
      %v3204 = vpop.f32.mrb[0].mxu0
      %3205 = vmatprep.mubr.f32.mxu0 0.0
      %3206 = vmatmul.mubr.f32.gmra.mrb[0].mxu0 %v2880
      %v3207 = vpop.f32.mrb[0].mxu0
      %v3208 = vadd.f32 0.0, %v3207
      %v3209 = vpop.f32.mrb[0].mxu0
      %3210 = vmatprep.mubr.f32.mxu0 0.0
      %3211 = vmatmul.mubr.f32.gmra.mrb[0].mxu0 %v2883
      %v3212 = vpop.f32.mrb[0].mxu0
      %v3213 = vadd.f32 0.0, %v3212
      %v3214 = vpop.f32.mrb[0].mxu0
      %3215 = vmatprep.mubr.f32.mxu0 0.0
      %3216 = vmatmul.mubr.f32.gmra.mrb[0].mxu0 %v2886
      %v3217 = vpop.f32.mrb[0].mxu0
      %v3218 = vadd.f32 0.0, %v3217
      %v3219 = vpop.f32.mrb[0].mxu0
      %3220 = vmatprep.mubr.f32.mxu0 0.0
      %3221 = vmatmul.mubr.f32.gmra.mrb[0].mxu0 %v2889
      %v3222 = vpop.f32.mrb[0].mxu0
      %v3223 = vadd.f32 0.0, %v3222
      %v3224 = vpop.f32.mrb[0].mxu0
      %3225 = vmatprep.mubr.f32.mxu0 0.0
      %3226 = vmatmul.mubr.f32.gmra.mrb[0].mxu0 %v2892
      %v3227 = vpop.f32.mrb[0].mxu0
      %v3228 = vadd.f32 0.0, %v3227
      %v3229 = vpop.f32.mrb[0].mxu0
      %3230 = vmatprep.mubr.f32.mxu0 0.0
      %3231 = vmatmul.mubr.f32.gmra.mrb[0].mxu0 %v2895
      %v3232 = vpop.f32.mrb[0].mxu0
      %v3233 = vadd.f32 0.0, %v3232
      %v3234 = vpop.f32.mrb[0].mxu0
      %3235 = vmatprep.mubr.f32.mxu0 0.0
      %3236 = vmatmul.mubr.f32.gmra.mrb[0].mxu0 %v2898
      %v3237 = vpop.f32.mrb[0].mxu0
      %v3238 = vadd.f32 0.0, %v3237
      %v3239 = vpop.f32.mrb[0].mxu0
      %3240 = vmatprep.mubr.f32.mxu0 0.0
      %3241 = vmatmul.mubr.f32.gmra.mrb[0].mxu0 %v2901
      %v3242 = vpop.f32.mrb[0].mxu0
      %v3243 = vadd.f32 0.0, %v3242
      %v3244 = vpop.f32.mrb[0].mxu0
      %3245 = vmatprep.mubr.f32.mxu0 0.0
      %3246 = vmatmul.mubr.f32.gmra.mrb[0].mxu0 %v2904
      %v3247 = vpop.f32.mrb[0].mxu0
      %v3248 = vadd.f32 0.0, %v3247
      %v3249 = vpop.f32.mrb[0].mxu0
      %3250 = vmatprep.mubr.f32.mxu0 0.0
      %3251 = vmatmul.mubr.f32.gmra.mrb[0].mxu0 %v2907
      %v3252 = vpop.f32.mrb[0].mxu0
      %v3253 = vadd.f32 0.0, %v3252
      %v3254 = vpop.f32.mrb[0].mxu0
      %3255 = vmatprep.mubr.f32.mxu0 0.0
      %3256 = vmatmul.mubr.f32.gmra.mrb[0].mxu0 %v2910
      %v3257 = vpop.f32.mrb[0].mxu0
      %v3258 = vadd.f32 0.0, %v3257
      %v3259 = vpop.f32.mrb[0].mxu0
      %3260 = vmatprep.mubr.f32.mxu0 0.0
      %3261 = vmatmul.mubr.f32.gmra.mrb[0].mxu0 %v2913
      %v3262 = vpop.f32.mrb[0].mxu0
      %v3263 = vadd.f32 0.0, %v3262
      %v3264 = vpop.f32.mrb[0].mxu0
      %3265 = vmatprep.mubr.f32.mxu0 0.0
      %3266 = vmatmul.mubr.f32.gmra.mrb[0].mxu0 %v2916
      %v3267 = vpop.f32.mrb[0].mxu0
      %v3268 = vadd.f32 0.0, %v3267
      %v3269 = vpop.f32.mrb[0].mxu0
      %3270 = vmatprep.mubr.f32.mxu0 0.0
      %3271 = vmatmul.mubr.f32.gmra.mrb[0].mxu0 %v2919
      %v3272 = vpop.f32.mrb[0].mxu0
      %v3273 = vadd.f32 0.0, %v3272
      %v3274 = vpop.f32.mrb[0].mxu0
      %3275 = vmatprep.mubr.f32.mxu0 0.0
      %3276 = vmatmul.mubr.f32.gmra.mrb[0].mxu0 %v2922
      %v3277 = vpop.f32.mrb[0].mxu0
      %v3278 = vadd.f32 0.0, %v3277
      %v3279 = vpop.f32.mrb[0].mxu0
      %3280 = vmatprep.mubr.f32.mxu0 0.0
      %3281 = vmatmul.mubr.f32.gmra.mrb[0].mxu0 %v2925
      %v3282 = vpop.f32.mrb[0].mxu0
      %v3283 = vadd.f32 0.0, %v3282
      %v3284 = vpop.f32.mrb[0].mxu0
      %3285 = vmatprep.mubr.f32.mxu0 0.0
      %3286 = vmatmul.mubr.f32.gmra.mrb[0].mxu0 %v2928
      %v3287 = vpop.f32.mrb[0].mxu0
      %v3288 = vadd.f32 0.0, %v3287
      %v3289 = vpop.f32.mrb[0].mxu0
      %3290 = vmatprep.mubr.f32.mxu0 0.0
      %3291 = vmatmul.mubr.f32.gmra.mrb[0].mxu0 %v2931
      %v3292 = vpop.f32.mrb[0].mxu0
      %v3293 = vadd.f32 0.0, %v3292
      %v3294 = vpop.f32.mrb[0].mxu0
      %3295 = vmatprep.mubr.f32.mxu0 0.0
      %3296 = vmatmul.mubr.f32.gmra.mrb[0].mxu0 %v2934
      %v3297 = vpop.f32.mrb[0].mxu0
      %v3298 = vadd.f32 0.0, %v3297
      %v3299 = vpop.f32.mrb[0].mxu0
      %3300 = vmatprep.mubr.f32.mxu0 0.0
      %3301 = vmatmul.mubr.f32.gmra.mrb[0].mxu0 %v2937
      %v3302 = vpop.f32.mrb[0].mxu0
      %v3303 = vadd.f32 0.0, %v3302
      %v3304 = vpop.f32.mrb[0].mxu0
      %3305 = vmatprep.mubr.f32.mxu0 0.0
      %3306 = vmatmul.mubr.f32.gmra.mrb[0].mxu0 %v2940
      %v3307 = vpop.f32.mrb[0].mxu0
      %v3308 = vadd.f32 0.0, %v3307
      %v3309 = vpop.f32.mrb[0].mxu0
      %3310 = vmatprep.mubr.f32.mxu0 0.0
      %3311 = vmatmul.mubr.f32.gmra.mrb[0].mxu0 %v2943
      %v3312 = vpop.f32.mrb[0].mxu0
      %v3313 = vadd.f32 0.0, %v3312
      %v3314 = vpop.f32.mrb[0].mxu0
      %3315 = vmatprep.mubr.f32.mxu0 0.0
      %3316 = vmatmul.mubr.f32.gmra.mrb[0].mxu0 %v2946
      %v3317 = vpop.f32.mrb[0].mxu0
      %v3318 = vadd.f32 0.0, %v3317
      %v3319 = vpop.f32.mrb[0].mxu0
      %3320 = vmatprep.mubr.f32.mxu0 0.0
      %3321 = vmatmul.mubr.f32.gmra.mrb[0].mxu0 %v2949
      %v3322 = vpop.f32.mrb[0].mxu0
      %v3323 = vadd.f32 0.0, %v3322
      %v3324 = vpop.f32.mrb[0].mxu0
      %3325 = vmatprep.mubr.f32.mxu0 0.0
      %3326 = vmatmul.mubr.f32.gmra.mrb[0].mxu0 %v2952
      %v3327 = vpop.f32.mrb[0].mxu0
      %v3328 = vadd.f32 0.0, %v3327
      %v3329 = vpop.f32.mrb[0].mxu0
      %3330 = vmatprep.mubr.f32.mxu0 0.0
      %3331 = vmatmul.mubr.f32.gmra.mrb[0].mxu0 %v2955
      %v3332 = vpop.f32.mrb[0].mxu0
      %v3333 = vadd.f32 0.0, %v3332
      %v3334 = vpop.f32.mrb[0].mxu0
      %3335 = vmatprep.mubr.f32.mxu0 0.0
      %3336 = vmatmul.mubr.f32.gmra.mrb[0].mxu0 %v2958
      %v3337 = vpop.f32.mrb[0].mxu0
      %v3338 = vadd.f32 0.0, %v3337
      %v3339 = vpop.f32.mrb[0].mxu0
      %3340 = vmatprep.mubr.f32.mxu0 0.0
      %3341 = vmatmul.mubr.f32.gmra.mrb[0].mxu0 %v2961
      %v3342 = vpop.f32.mrb[0].mxu0
      %v3343 = vadd.f32 0.0, %v3342
      %v3344 = vpop.f32.mrb[0].mxu0
      %3345 = vmatprep.mubr.f32.mxu0 0.0
      %3346 = vmatmul.mubr.f32.gmra.mrb[0].mxu0 %v2964
      %v3347 = vpop.f32.mrb[0].mxu0
      %v3348 = vadd.f32 0.0, %v3347
      %v3349 = vpop.f32.mrb[0].mxu0
      %3350 = vdwg.mxu0
      %v3351 = vmul.f32 %v3033, 0.25
      %v3352 = vmul.f32 %v3038, 0.25
      %v3353 = vmul.f32 %v3043, 0.25
      %v3354 = vmul.f32 %v3048, 0.25
      %v3355 = vmul.f32 %v3053, 0.25
      %v3356 = vmul.f32 %v3058, 0.25
      %v3357 = vmul.f32 %v3063, 0.25
      %v3358 = vmul.f32 %v3068, 0.25
      %v3359 = vmul.f32 %v3073, 0.25
      %v3360 = vmul.f32 %v3078, 0.25
      %v3361 = vmul.f32 %v3083, 0.25
      %v3362 = vmul.f32 %v3088, 0.25
      %v3363 = vmul.f32 %v3093, 0.25
      %v3364 = vmul.f32 %v3098, 0.25
      %v3365 = vmul.f32 %v3103, 0.25
      %v3366 = vmul.f32 %v3108, 0.25
      %v3367 = vmul.f32 %v3113, 0.25
      %v3368 = vmul.f32 %v3118, 0.25
      %v3369 = vmul.f32 %v3123, 0.25
      %v3370 = vmul.f32 %v3128, 0.25
      %v3371 = vmul.f32 %v3133, 0.25
      %v3372 = vmul.f32 %v3138, 0.25
      %v3373 = vmul.f32 %v3143, 0.25
      %v3374 = vmul.f32 %v3148, 0.25
      %v3375 = vmul.f32 %v3153, 0.25
      %v3376 = vmul.f32 %v3158, 0.25
      %v3377 = vmul.f32 %v3163, 0.25
      %v3378 = vmul.f32 %v3168, 0.25
      %v3379 = vmul.f32 %v3173, 0.25
      %v3380 = vmul.f32 %v3178, 0.25
      %v3381 = vmul.f32 %v3183, 0.25
      %v3382 = vmul.f32 %v3188, 0.25
      %v3383 = vmul.f32 %v3193, 0.25
      %v3384 = vmul.f32 %v3198, 0.25
      %v3385 = vmul.f32 %v3203, 0.25
      %v3386 = vmul.f32 %v3208, 0.25
      %v3387 = vmul.f32 %v3213, 0.25
      %v3388 = vmul.f32 %v3218, 0.25
      %v3389 = vmul.f32 %v3223, 0.25
      %v3390 = vmul.f32 %v3228, 0.25
      %v3391 = vmul.f32 %v3233, 0.25
      %v3392 = vmul.f32 %v3238, 0.25
      %v3393 = vmul.f32 %v3243, 0.25
      %v3394 = vmul.f32 %v3248, 0.25
      %v3395 = vmul.f32 %v3253, 0.25
      %v3396 = vmul.f32 %v3258, 0.25
      %v3397 = vmul.f32 %v3263, 0.25
      %v3398 = vmul.f32 %v3268, 0.25
      %v3399 = vmul.f32 %v3273, 0.25
      %v3400 = vmul.f32 %v3278, 0.25
      %v3401 = vmul.f32 %v3283, 0.25
      %v3402 = vmul.f32 %v3288, 0.25
      %v3403 = vmul.f32 %v3293, 0.25
      %v3404 = vmul.f32 %v3298, 0.25
      %v3405 = vmul.f32 %v3303, 0.25
      %v3406 = vmul.f32 %v3308, 0.25
      %v3407 = vmul.f32 %v3313, 0.25
      %v3408 = vmul.f32 %v3318, 0.25
      %v3409 = vmul.f32 %v3323, 0.25
      %v3410 = vmul.f32 %v3328, 0.25
      %v3411 = vmul.f32 %v3333, 0.25
      %v3412 = vmul.f32 %v3338, 0.25
      %v3413 = vmul.f32 %v3343, 0.25
      %v3414 = vmul.f32 %v3348, 0.25
      %vm3415 = vcmask 31744
      %v3416 = vsel %vm3415, %v3351, -inf
      %v3417 = vsel %vm3415, %v3352, -inf
      %v3418 = vsel %vm3415, %v3353, -inf
      %v3419 = vsel %vm3415, %v3354, -inf
      %v3420 = vsel %vm3415, %v3355, -inf
      %v3421 = vmax.f32 %v3416, %v3420
      %v3422 = vsel %vm3415, %v3356, -inf
      %v3423 = vmax.f32 %v3417, %v3422
      %v3424 = vsel %vm3415, %v3357, -inf
      %v3425 = vmax.f32 %v3418, %v3424
      %v3426 = vsel %vm3415, %v3358, -inf
      %v3427 = vmax.f32 %v3419, %v3426
      %v3428 = vsel %vm3415, %v3359, -inf
      %v3429 = vmax.f32 %v3421, %v3428
      %v3430 = vsel %vm3415, %v3360, -inf
      %v3431 = vmax.f32 %v3423, %v3430
      %v3432 = vsel %vm3415, %v3361, -inf
      %v3433 = vmax.f32 %v3425, %v3432
      %v3434 = vsel %vm3415, %v3362, -inf
      %v3435 = vmax.f32 %v3427, %v3434
      %v3436 = vsel %vm3415, %v3363, -inf
      %v3437 = vmax.f32 %v3429, %v3436
      %v3438 = vsel %vm3415, %v3364, -inf
      %v3439 = vmax.f32 %v3431, %v3438
      %v3440 = vsel %vm3415, %v3365, -inf
      %v3441 = vmax.f32 %v3433, %v3440
      %v3442 = vsel %vm3415, %v3366, -inf
      %v3443 = vmax.f32 %v3435, %v3442
      %v3444 = vsel %vm3415, %v3367, -inf
      %v3445 = vmax.f32 %v3437, %v3444
      %v3446 = vsel %vm3415, %v3368, -inf
      %v3447 = vmax.f32 %v3439, %v3446
      %v3448 = vsel %vm3415, %v3369, -inf
      %v3449 = vmax.f32 %v3441, %v3448
      %v3450 = vsel %vm3415, %v3370, -inf
      %v3451 = vmax.f32 %v3443, %v3450
      %v3452 = vsel %vm3415, %v3371, -inf
      %v3453 = vmax.f32 %v3445, %v3452
      %v3454 = vsel %vm3415, %v3372, -inf
      %v3455 = vmax.f32 %v3447, %v3454
      %v3456 = vsel %vm3415, %v3373, -inf
      %v3457 = vmax.f32 %v3449, %v3456
      %v3458 = vsel %vm3415, %v3374, -inf
      %v3459 = vmax.f32 %v3451, %v3458
      %v3460 = vsel %vm3415, %v3375, -inf
      %v3461 = vmax.f32 %v3453, %v3460
      %v3462 = vsel %vm3415, %v3376, -inf
      %v3463 = vmax.f32 %v3455, %v3462
      %v3464 = vsel %vm3415, %v3377, -inf
      %v3465 = vmax.f32 %v3457, %v3464
      %v3466 = vsel %vm3415, %v3378, -inf
      %v3467 = vmax.f32 %v3459, %v3466
      %v3468 = vsel %vm3415, %v3379, -inf
      %v3469 = vmax.f32 %v3461, %v3468
      %v3470 = vsel %vm3415, %v3380, -inf
      %v3471 = vmax.f32 %v3463, %v3470
      %v3472 = vsel %vm3415, %v3381, -inf
      %v3473 = vmax.f32 %v3465, %v3472
      %v3474 = vsel %vm3415, %v3382, -inf
      %v3475 = vmax.f32 %v3467, %v3474
      %v3476 = vsel %vm3415, %v3383, -inf
      %v3477 = vmax.f32 %v3469, %v3476
      %v3478 = vsel %vm3415, %v3384, -inf
      %v3479 = vmax.f32 %v3471, %v3478
      %v3480 = vsel %vm3415, %v3385, -inf
      %v3481 = vmax.f32 %v3473, %v3480
      %v3482 = vsel %vm3415, %v3386, -inf
      %v3483 = vmax.f32 %v3475, %v3482
      %v3484 = vsel %vm3415, %v3387, -inf
      %v3485 = vmax.f32 %v3477, %v3484
      %v3486 = vsel %vm3415, %v3388, -inf
      %v3487 = vmax.f32 %v3479, %v3486
      %v3488 = vsel %vm3415, %v3389, -inf
      %v3489 = vmax.f32 %v3481, %v3488
      %v3490 = vsel %vm3415, %v3390, -inf
      %v3491 = vmax.f32 %v3483, %v3490
      %v3492 = vsel %vm3415, %v3391, -inf
      %v3493 = vmax.f32 %v3485, %v3492
      %v3494 = vsel %vm3415, %v3392, -inf
      %v3495 = vmax.f32 %v3487, %v3494
      %v3496 = vsel %vm3415, %v3393, -inf
      %v3497 = vmax.f32 %v3489, %v3496
      %v3498 = vsel %vm3415, %v3394, -inf
      %v3499 = vmax.f32 %v3491, %v3498
      %v3500 = vsel %vm3415, %v3395, -inf
      %v3501 = vmax.f32 %v3493, %v3500
      %v3502 = vsel %vm3415, %v3396, -inf
      %v3503 = vmax.f32 %v3495, %v3502
      %v3504 = vsel %vm3415, %v3397, -inf
      %v3505 = vmax.f32 %v3497, %v3504
      %v3506 = vsel %vm3415, %v3398, -inf
      %v3507 = vmax.f32 %v3499, %v3506
      %v3508 = vsel %vm3415, %v3399, -inf
      %v3509 = vmax.f32 %v3501, %v3508
      %v3510 = vsel %vm3415, %v3400, -inf
      %v3511 = vmax.f32 %v3503, %v3510
      %v3512 = vsel %vm3415, %v3401, -inf
      %v3513 = vmax.f32 %v3505, %v3512
      %v3514 = vsel %vm3415, %v3402, -inf
      %v3515 = vmax.f32 %v3507, %v3514
      %v3516 = vsel %vm3415, %v3403, -inf
      %v3517 = vmax.f32 %v3509, %v3516
      %v3518 = vsel %vm3415, %v3404, -inf
      %v3519 = vmax.f32 %v3511, %v3518
      %v3520 = vsel %vm3415, %v3405, -inf
      %v3521 = vmax.f32 %v3513, %v3520
      %v3522 = vsel %vm3415, %v3406, -inf
      %v3523 = vmax.f32 %v3515, %v3522
      %v3524 = vsel %vm3415, %v3407, -inf
      %v3525 = vmax.f32 %v3517, %v3524
      %v3526 = vsel %vm3415, %v3408, -inf
      %v3527 = vmax.f32 %v3519, %v3526
      %v3528 = vsel %vm3415, %v3409, -inf
      %v3529 = vmax.f32 %v3521, %v3528
      %v3530 = vsel %vm3415, %v3410, -inf
      %v3531 = vmax.f32 %v3523, %v3530
      %v3532 = vsel %vm3415, %v3411, -inf
      %v3533 = vmax.f32 %v3525, %v3532
      %v3534 = vsel %vm3415, %v3412, -inf
      %v3535 = vmax.f32 %v3527, %v3534
      %v3536 = vsel %vm3415, %v3413, -inf
      %v3537 = vmax.f32 %v3529, %v3536
      %v3538 = vsel %vm3415, %v3414, -inf
      %v3539 = vmax.f32 %v3531, %v3538
      %v3540 = vmax.f32 %v3533, %v3535
      %v3541 = vmax.f32 %v3537, %v3539
      %v3542 = vmax.f32 %v3540, %v3541
      %v3543 = vrot.slane %v3542, 4
      %v3544 = vmax.f32 %v3542, %v3543
      %v3545 = vrot.slane %v3544, 2
      %v3546 = vmax.f32 %v3544, %v3545
      %v3547 = vrot.slane %v3546, 1
      %v3548 = vmax.f32 %v3546, %v3547
      %v3549 = vsub.f32 %v3351, %v3548
      %v3550 = vsub.f32 %v3352, %v3548
      %v3551 = vsub.f32 %v3353, %v3548
      %v3552 = vsub.f32 %v3354, %v3548
      %v3553 = vsub.f32 %v3355, %v3548
      %v3554 = vsub.f32 %v3356, %v3548
      %v3555 = vsub.f32 %v3357, %v3548
      %v3556 = vsub.f32 %v3358, %v3548
      %v3557 = vsub.f32 %v3359, %v3548
      %v3558 = vsub.f32 %v3360, %v3548
      %v3559 = vsub.f32 %v3361, %v3548
      %v3560 = vsub.f32 %v3362, %v3548
      %v3561 = vsub.f32 %v3363, %v3548
      %v3562 = vsub.f32 %v3364, %v3548
      %v3563 = vsub.f32 %v3365, %v3548
      %v3564 = vsub.f32 %v3366, %v3548
      %v3565 = vsub.f32 %v3367, %v3548
      %v3566 = vsub.f32 %v3368, %v3548
      %v3567 = vsub.f32 %v3369, %v3548
      %v3568 = vsub.f32 %v3370, %v3548
      %v3569 = vsub.f32 %v3371, %v3548
      %v3570 = vsub.f32 %v3372, %v3548
      %v3571 = vsub.f32 %v3373, %v3548
      %v3572 = vsub.f32 %v3374, %v3548
      %v3573 = vsub.f32 %v3375, %v3548
      %v3574 = vsub.f32 %v3376, %v3548
      %v3575 = vsub.f32 %v3377, %v3548
      %v3576 = vsub.f32 %v3378, %v3548
      %v3577 = vsub.f32 %v3379, %v3548
      %v3578 = vsub.f32 %v3380, %v3548
      %v3579 = vsub.f32 %v3381, %v3548
      %v3580 = vsub.f32 %v3382, %v3548
      %v3581 = vsub.f32 %v3383, %v3548
      %v3582 = vsub.f32 %v3384, %v3548
      %v3583 = vsub.f32 %v3385, %v3548
      %v3584 = vsub.f32 %v3386, %v3548
      %v3585 = vsub.f32 %v3387, %v3548
      %v3586 = vsub.f32 %v3388, %v3548
      %v3587 = vsub.f32 %v3389, %v3548
      %v3588 = vsub.f32 %v3390, %v3548
      %v3589 = vsub.f32 %v3391, %v3548
      %v3590 = vsub.f32 %v3392, %v3548
      %v3591 = vsub.f32 %v3393, %v3548
      %v3592 = vsub.f32 %v3394, %v3548
      %v3593 = vsub.f32 %v3395, %v3548
      %v3594 = vsub.f32 %v3396, %v3548
      %v3595 = vsub.f32 %v3397, %v3548
      %v3596 = vsub.f32 %v3398, %v3548
      %v3597 = vsub.f32 %v3399, %v3548
      %v3598 = vsub.f32 %v3400, %v3548
      %v3599 = vsub.f32 %v3401, %v3548
      %v3600 = vsub.f32 %v3402, %v3548
      %v3601 = vsub.f32 %v3403, %v3548
      %v3602 = vsub.f32 %v3404, %v3548
      %v3603 = vsub.f32 %v3405, %v3548
      %v3604 = vsub.f32 %v3406, %v3548
      %v3605 = vsub.f32 %v3407, %v3548
      %v3606 = vsub.f32 %v3408, %v3548
      %v3607 = vsub.f32 %v3409, %v3548
      %v3608 = vsub.f32 %v3410, %v3548
      %v3609 = vsub.f32 %v3411, %v3548
      %v3610 = vsub.f32 %v3412, %v3548
      %v3611 = vsub.f32 %v3413, %v3548
      %v3612 = vsub.f32 %v3414, %v3548
      %v3613 = vmul.f32 %v3549, 1.442695
      %v3614 = vpow.pop %v3613
      %v3615 = vmul.f32 %v3550, 1.442695
      %v3616 = vpow.pop %v3615
      %v3617 = vmul.f32 %v3551, 1.442695
      %v3618 = vpow.pop %v3617
      %v3619 = vmul.f32 %v3552, 1.442695
      %v3620 = vpow.pop %v3619
      %v3621 = vmul.f32 %v3553, 1.442695
      %v3622 = vpow.pop %v3621
      %v3623 = vmul.f32 %v3554, 1.442695
      %v3624 = vpow.pop %v3623
      %v3625 = vmul.f32 %v3555, 1.442695
      %v3626 = vpow.pop %v3625
      %v3627 = vmul.f32 %v3556, 1.442695
      %v3628 = vpow.pop %v3627
      %v3629 = vmul.f32 %v3557, 1.442695
      %v3630 = vpow.pop %v3629
      %v3631 = vmul.f32 %v3558, 1.442695
      %v3632 = vpow.pop %v3631
      %v3633 = vmul.f32 %v3559, 1.442695
      %v3634 = vpow.pop %v3633
      %v3635 = vmul.f32 %v3560, 1.442695
      %v3636 = vpow.pop %v3635
      %v3637 = vmul.f32 %v3561, 1.442695
      %v3638 = vpow.pop %v3637
      %v3639 = vmul.f32 %v3562, 1.442695
      %v3640 = vpow.pop %v3639
      %v3641 = vmul.f32 %v3563, 1.442695
      %v3642 = vpow.pop %v3641
      %v3643 = vmul.f32 %v3564, 1.442695
      %v3644 = vpow.pop %v3643
      %v3645 = vmul.f32 %v3565, 1.442695
      %v3646 = vpow.pop %v3645
      %v3647 = vmul.f32 %v3566, 1.442695
      %v3648 = vpow.pop %v3647
      %v3649 = vmul.f32 %v3567, 1.442695
      %v3650 = vpow.pop %v3649
      %v3651 = vmul.f32 %v3568, 1.442695
      %v3652 = vpow.pop %v3651
      %v3653 = vmul.f32 %v3569, 1.442695
      %v3654 = vpow.pop %v3653
      %v3655 = vmul.f32 %v3570, 1.442695
      %v3656 = vpow.pop %v3655
      %v3657 = vmul.f32 %v3571, 1.442695
      %v3658 = vpow.pop %v3657
      %v3659 = vmul.f32 %v3572, 1.442695
      %v3660 = vpow.pop %v3659
      %v3661 = vmul.f32 %v3573, 1.442695
      %v3662 = vpow.pop %v3661
      %v3663 = vmul.f32 %v3574, 1.442695
      %v3664 = vpow.pop %v3663
      %v3665 = vmul.f32 %v3575, 1.442695
      %v3666 = vpow.pop %v3665
      %v3667 = vmul.f32 %v3576, 1.442695
      %v3668 = vpow.pop %v3667
      %v3669 = vmul.f32 %v3577, 1.442695
      %v3670 = vpow.pop %v3669
      %v3671 = vmul.f32 %v3578, 1.442695
      %v3672 = vpow.pop %v3671
      %v3673 = vmul.f32 %v3579, 1.442695
      %v3674 = vpow.pop %v3673
      %v3675 = vmul.f32 %v3580, 1.442695
      %v3676 = vpow.pop %v3675
      %v3677 = vmul.f32 %v3581, 1.442695
      %v3678 = vpow.pop %v3677
      %v3679 = vmul.f32 %v3582, 1.442695
      %v3680 = vpow.pop %v3679
      %v3681 = vmul.f32 %v3583, 1.442695
      %v3682 = vpow.pop %v3681
      %v3683 = vmul.f32 %v3584, 1.442695
      %v3684 = vpow.pop %v3683
      %v3685 = vmul.f32 %v3585, 1.442695
      %v3686 = vpow.pop %v3685
      %v3687 = vmul.f32 %v3586, 1.442695
      %v3688 = vpow.pop %v3687
      %v3689 = vmul.f32 %v3587, 1.442695
      %v3690 = vpow.pop %v3689
      %v3691 = vmul.f32 %v3588, 1.442695
      %v3692 = vpow.pop %v3691
      %v3693 = vmul.f32 %v3589, 1.442695
      %v3694 = vpow.pop %v3693
      %v3695 = vmul.f32 %v3590, 1.442695
      %v3696 = vpow.pop %v3695
      %v3697 = vmul.f32 %v3591, 1.442695
      %v3698 = vpow.pop %v3697
      %v3699 = vmul.f32 %v3592, 1.442695
      %v3700 = vpow.pop %v3699
      %v3701 = vmul.f32 %v3593, 1.442695
      %v3702 = vpow.pop %v3701
      %v3703 = vmul.f32 %v3594, 1.442695
      %v3704 = vpow.pop %v3703
      %v3705 = vmul.f32 %v3595, 1.442695
      %v3706 = vpow.pop %v3705
      %v3707 = vmul.f32 %v3596, 1.442695
      %v3708 = vpow.pop %v3707
      %v3709 = vmul.f32 %v3597, 1.442695
      %v3710 = vpow.pop %v3709
      %v3711 = vmul.f32 %v3598, 1.442695
      %v3712 = vpow.pop %v3711
      %v3713 = vmul.f32 %v3599, 1.442695
      %v3714 = vpow.pop %v3713
      %v3715 = vmul.f32 %v3600, 1.442695
      %v3716 = vpow.pop %v3715
      %v3717 = vmul.f32 %v3601, 1.442695
      %v3718 = vpow.pop %v3717
      %v3719 = vmul.f32 %v3602, 1.442695
      %v3720 = vpow.pop %v3719
      %v3721 = vmul.f32 %v3603, 1.442695
      %v3722 = vpow.pop %v3721
      %v3723 = vmul.f32 %v3604, 1.442695
      %v3724 = vpow.pop %v3723
      %v3725 = vmul.f32 %v3605, 1.442695
      %v3726 = vpow.pop %v3725
      %v3727 = vmul.f32 %v3606, 1.442695
      %v3728 = vpow.pop %v3727
      %v3729 = vmul.f32 %v3607, 1.442695
      %v3730 = vpow.pop %v3729
      %v3731 = vmul.f32 %v3608, 1.442695
      %v3732 = vpow.pop %v3731
      %v3733 = vmul.f32 %v3609, 1.442695
      %v3734 = vpow.pop %v3733
      %v3735 = vmul.f32 %v3610, 1.442695
      %v3736 = vpow.pop %v3735
      %v3737 = vmul.f32 %v3611, 1.442695
      %v3738 = vpow.pop %v3737
      %v3739 = vmul.f32 %v3612, 1.442695
      %v3740 = vpow.pop %v3739
      %3741 = vmatprep.subr.mxu0 0.0
      %3742 = vmatpush1.msra.mxu0 %v3614
      %3743 = vmatprep.subr.mxu0 0.0
      %3744 = vmatpush1.msra.mxu0 %v3616
      %3745 = vmatprep.subr.mxu0 0.0
      %3746 = vmatpush1.msra.mxu0 %v3618
      %3747 = vmatprep.subr.mxu0 0.0
      %3748 = vmatpush1.msra.mxu0 %v3620
      %3749 = vmatprep.subr.mxu0 0.0
      %3750 = vmatpush1.msra.mxu0 %v3622
      %3751 = vmatprep.subr.mxu0 0.0
      %3752 = vmatpush1.msra.mxu0 %v3624
      %3753 = vmatprep.subr.mxu0 0.0
      %3754 = vmatpush1.msra.mxu0 %v3626
      %3755 = vmatprep.subr.mxu0 0.0
      %3756 = vmatpush1.msra.mxu0 %v3628
      %3757 = vmatprep.subr.mxu0 0.0
      %3758 = vmatpush1.msra.mxu0 %v3630
      %3759 = vmatprep.subr.mxu0 0.0
      %3760 = vmatpush1.msra.mxu0 %v3632
      %3761 = vmatprep.subr.mxu0 0.0
      %3762 = vmatpush1.msra.mxu0 %v3634
      %3763 = vmatprep.subr.mxu0 0.0
      %3764 = vmatpush1.msra.mxu0 %v3636
      %3765 = vmatprep.subr.mxu0 0.0
      %3766 = vmatpush1.msra.mxu0 %v3638
      %3767 = vmatprep.subr.mxu0 0.0
      %3768 = vmatpush1.msra.mxu0 %v3640
      %3769 = vmatprep.subr.mxu0 0.0
      %3770 = vmatpush1.msra.mxu0 %v3642
      %3771 = vmatprep.subr.mxu0 0.0
      %3772 = vmatpush1.msra.mxu0 %v3644
      %3773 = vmatprep.subr.mxu0 0.0
      %3774 = vmatpush1.msra.mxu0 %v3646
      %3775 = vmatprep.subr.mxu0 0.0
      %3776 = vmatpush1.msra.mxu0 %v3648
      %3777 = vmatprep.subr.mxu0 0.0
      %3778 = vmatpush1.msra.mxu0 %v3650
      %3779 = vmatprep.subr.mxu0 0.0
      %3780 = vmatpush1.msra.mxu0 %v3652
      %3781 = vmatprep.subr.mxu0 0.0
      %3782 = vmatpush1.msra.mxu0 %v3654
      %3783 = vmatprep.subr.mxu0 0.0
      %3784 = vmatpush1.msra.mxu0 %v3656
      %3785 = vmatprep.subr.mxu0 0.0
      %3786 = vmatpush1.msra.mxu0 %v3658
      %3787 = vmatprep.subr.mxu0 0.0
      %3788 = vmatpush1.msra.mxu0 %v3660
      %3789 = vmatprep.subr.mxu0 0.0
      %3790 = vmatpush1.msra.mxu0 %v3662
      %3791 = vmatprep.subr.mxu0 0.0
      %3792 = vmatpush1.msra.mxu0 %v3664
      %3793 = vmatprep.subr.mxu0 0.0
      %3794 = vmatpush1.msra.mxu0 %v3666
      %3795 = vmatprep.subr.mxu0 0.0
      %3796 = vmatpush1.msra.mxu0 %v3668
      %3797 = vmatprep.subr.mxu0 0.0
      %3798 = vmatpush1.msra.mxu0 %v3670
      %3799 = vmatprep.subr.mxu0 0.0
      %3800 = vmatpush1.msra.mxu0 %v3672
      %3801 = vmatprep.subr.mxu0 0.0
      %3802 = vmatpush1.msra.mxu0 %v3674
      %3803 = vmatprep.subr.mxu0 0.0
      %3804 = vmatpush1.msra.mxu0 %v3676
      %3805 = vmatprep.mubr.f32.mxu0 %v1612
      %3806 = vmatmul.mubr.f32.gmra.mrb[0].mxu0 %v1611
      %v3807 = vpop.f32.mrb[0].mxu0
      %v3808 = vadd.f32 0.0, %v3807
      %v3809 = vpop.f32.mrb[0].mxu0
      %3810 = vmatprep.mubr.f32.mxu0 %v1616
      %3811 = vmatmul.mubr.f32.gmra.mrb[0].mxu0 %v1615
      %v3812 = vpop.f32.mrb[0].mxu0
      %v3813 = vadd.f32 0.0, %v3812
      %v3814 = vpop.f32.mrb[0].mxu0
      %3815 = vmatprep.mubr.f32.mxu0 %v1620
      %3816 = vmatmul.mubr.f32.gmra.mrb[0].mxu0 %v1619
      %v3817 = vpop.f32.mrb[0].mxu0
      %v3818 = vadd.f32 0.0, %v3817
      %v3819 = vpop.f32.mrb[0].mxu0
      %3820 = vmatprep.mubr.f32.mxu0 %v1624
      %3821 = vmatmul.mubr.f32.gmra.mrb[0].mxu0 %v1623
      %v3822 = vpop.f32.mrb[0].mxu0
      %v3823 = vadd.f32 0.0, %v3822
      %v3824 = vpop.f32.mrb[0].mxu0
      %3825 = vmatprep.mubr.f32.mxu0 %v1628
      %3826 = vmatmul.mubr.f32.gmra.mrb[0].mxu0 %v1627
      %v3827 = vpop.f32.mrb[0].mxu0
      %v3828 = vadd.f32 0.0, %v3827
      %v3829 = vpop.f32.mrb[0].mxu0
      %3830 = vmatprep.mubr.f32.mxu0 %v1632
      %3831 = vmatmul.mubr.f32.gmra.mrb[0].mxu0 %v1631
      %v3832 = vpop.f32.mrb[0].mxu0
      %v3833 = vadd.f32 0.0, %v3832
      %v3834 = vpop.f32.mrb[0].mxu0
      %3835 = vmatprep.mubr.f32.mxu0 %v1636
      %3836 = vmatmul.mubr.f32.gmra.mrb[0].mxu0 %v1635
      %v3837 = vpop.f32.mrb[0].mxu0
      %v3838 = vadd.f32 0.0, %v3837
      %v3839 = vpop.f32.mrb[0].mxu0
      %3840 = vmatprep.mubr.f32.mxu0 %v1640
      %3841 = vmatmul.mubr.f32.gmra.mrb[0].mxu0 %v1639
      %v3842 = vpop.f32.mrb[0].mxu0
      %v3843 = vadd.f32 0.0, %v3842
      %v3844 = vpop.f32.mrb[0].mxu0
      %3845 = vmatprep.mubr.f32.mxu0 %v1644
      %3846 = vmatmul.mubr.f32.gmra.mrb[0].mxu0 %v1643
      %v3847 = vpop.f32.mrb[0].mxu0
      %v3848 = vadd.f32 0.0, %v3847
      %v3849 = vpop.f32.mrb[0].mxu0
      %3850 = vmatprep.mubr.f32.mxu0 %v1648
      %3851 = vmatmul.mubr.f32.gmra.mrb[0].mxu0 %v1647
      %v3852 = vpop.f32.mrb[0].mxu0
      %v3853 = vadd.f32 0.0, %v3852
      %v3854 = vpop.f32.mrb[0].mxu0
      %3855 = vmatprep.mubr.f32.mxu0 %v1652
      %3856 = vmatmul.mubr.f32.gmra.mrb[0].mxu0 %v1651
      %v3857 = vpop.f32.mrb[0].mxu0
      %v3858 = vadd.f32 0.0, %v3857
      %v3859 = vpop.f32.mrb[0].mxu0
      %3860 = vmatprep.mubr.f32.mxu0 %v1656
      %3861 = vmatmul.mubr.f32.gmra.mrb[0].mxu0 %v1655
      %v3862 = vpop.f32.mrb[0].mxu0
      %v3863 = vadd.f32 0.0, %v3862
      %v3864 = vpop.f32.mrb[0].mxu0
      %3865 = vmatprep.mubr.f32.mxu0 %v1660
      %3866 = vmatmul.mubr.f32.gmra.mrb[0].mxu0 %v1659
      %v3867 = vpop.f32.mrb[0].mxu0
      %v3868 = vadd.f32 0.0, %v3867
      %v3869 = vpop.f32.mrb[0].mxu0
      %3870 = vmatprep.mubr.f32.mxu0 %v1664
      %3871 = vmatmul.mubr.f32.gmra.mrb[0].mxu0 %v1663
      %v3872 = vpop.f32.mrb[0].mxu0
      %v3873 = vadd.f32 0.0, %v3872
      %v3874 = vpop.f32.mrb[0].mxu0
      %3875 = vmatprep.mubr.f32.mxu0 %v1668
      %3876 = vmatmul.mubr.f32.gmra.mrb[0].mxu0 %v1667
      %v3877 = vpop.f32.mrb[0].mxu0
      %v3878 = vadd.f32 0.0, %v3877
      %v3879 = vpop.f32.mrb[0].mxu0
      %3880 = vmatprep.mubr.f32.mxu0 %v1672
      %3881 = vmatmul.mubr.f32.gmra.mrb[0].mxu0 %v1671
      %v3882 = vpop.f32.mrb[0].mxu0
      %v3883 = vadd.f32 0.0, %v3882
      %v3884 = vpop.f32.mrb[0].mxu0
      %3885 = vdwg.mxu0
      %3886 = vmatprep.subr.mxu0 0.0
      %3887 = vmatpush1.msra.mxu0 %v3678
      %3888 = vmatprep.subr.mxu0 0.0
      %3889 = vmatpush1.msra.mxu0 %v3680
      %3890 = vmatprep.subr.mxu0 0.0
      %3891 = vmatpush1.msra.mxu0 %v3682
      %3892 = vmatprep.subr.mxu0 0.0
      %3893 = vmatpush1.msra.mxu0 %v3684
      %3894 = vmatprep.subr.mxu0 0.0
      %3895 = vmatpush1.msra.mxu0 %v3686
      %3896 = vmatprep.subr.mxu0 0.0
      %3897 = vmatpush1.msra.mxu0 %v3688
      %3898 = vmatprep.subr.mxu0 0.0
      %3899 = vmatpush1.msra.mxu0 %v3690
      %3900 = vmatprep.subr.mxu0 0.0
      %3901 = vmatpush1.msra.mxu0 %v3692
      %3902 = vmatprep.subr.mxu0 0.0
      %3903 = vmatpush1.msra.mxu0 %v3694
      %3904 = vmatprep.subr.mxu0 0.0
      %3905 = vmatpush1.msra.mxu0 %v3696
      %3906 = vmatprep.subr.mxu0 0.0
      %3907 = vmatpush1.msra.mxu0 %v3698
      %3908 = vmatprep.subr.mxu0 0.0
      %3909 = vmatpush1.msra.mxu0 %v3700
      %3910 = vmatprep.subr.mxu0 0.0
      %3911 = vmatpush1.msra.mxu0 %v3702
      %3912 = vmatprep.subr.mxu0 0.0
      %3913 = vmatpush1.msra.mxu0 %v3704
      %3914 = vmatprep.subr.mxu0 0.0
      %3915 = vmatpush1.msra.mxu0 %v3706
      %3916 = vmatprep.subr.mxu0 0.0
      %3917 = vmatpush1.msra.mxu0 %v3708
      %3918 = vmatprep.subr.mxu0 0.0
      %3919 = vmatpush1.msra.mxu0 %v3710
      %3920 = vmatprep.subr.mxu0 0.0
      %3921 = vmatpush1.msra.mxu0 %v3712
      %3922 = vmatprep.subr.mxu0 0.0
      %3923 = vmatpush1.msra.mxu0 %v3714
      %3924 = vmatprep.subr.mxu0 0.0
      %3925 = vmatpush1.msra.mxu0 %v3716
      %3926 = vmatprep.subr.mxu0 0.0
      %3927 = vmatpush1.msra.mxu0 %v3718
      %3928 = vmatprep.subr.mxu0 0.0
      %3929 = vmatpush1.msra.mxu0 %v3720
      %3930 = vmatprep.subr.mxu0 0.0
      %3931 = vmatpush1.msra.mxu0 %v3722
      %3932 = vmatprep.subr.mxu0 0.0
      %3933 = vmatpush1.msra.mxu0 %v3724
      %3934 = vmatprep.subr.mxu0 0.0
      %3935 = vmatpush1.msra.mxu0 %v3726
      %3936 = vmatprep.subr.mxu0 0.0
      %3937 = vmatpush1.msra.mxu0 %v3728
      %3938 = vmatprep.subr.mxu0 0.0
      %3939 = vmatpush1.msra.mxu0 %v3730
      %3940 = vmatprep.subr.mxu0 0.0
      %3941 = vmatpush1.msra.mxu0 %v3732
      %3942 = vmatprep.subr.mxu0 0.0
      %3943 = vmatpush1.msra.mxu0 %v3734
      %3944 = vmatprep.subr.mxu0 0.0
      %3945 = vmatpush1.msra.mxu0 %v3736
      %3946 = vmatprep.subr.mxu0 0.0
      %3947 = vmatpush1.msra.mxu0 %v3738
      %3948 = vmatprep.subr.mxu0 0.0
      %3949 = vmatpush1.msra.mxu0 %v3740
      %3950 = vmatprep.mubr.f32.mxu0 %v1614
      %3951 = vmatmul.mubr.f32.gmra.mrb[0].mxu0 %v1613
      %v3952 = vpop.f32.mrb[0].mxu0
      %v3953 = vadd.f32 %v3808, %v3952
      %v3954 = vpop.f32.mrb[0].mxu0
      %3955 = vmatprep.mubr.f32.mxu0 %v1618
      %3956 = vmatmul.mubr.f32.gmra.mrb[0].mxu0 %v1617
      %v3957 = vpop.f32.mrb[0].mxu0
      %v3958 = vadd.f32 %v3813, %v3957
      %v3959 = vpop.f32.mrb[0].mxu0
      %3960 = vmatprep.mubr.f32.mxu0 %v1622
      %3961 = vmatmul.mubr.f32.gmra.mrb[0].mxu0 %v1621
      %v3962 = vpop.f32.mrb[0].mxu0
      %v3963 = vadd.f32 %v3818, %v3962
      %v3964 = vpop.f32.mrb[0].mxu0
      %3965 = vmatprep.mubr.f32.mxu0 %v1626
      %3966 = vmatmul.mubr.f32.gmra.mrb[0].mxu0 %v1625
      %v3967 = vpop.f32.mrb[0].mxu0
      %v3968 = vadd.f32 %v3823, %v3967
      %v3969 = vpop.f32.mrb[0].mxu0
      %3970 = vmatprep.mubr.f32.mxu0 %v1630
      %3971 = vmatmul.mubr.f32.gmra.mrb[0].mxu0 %v1629
      %v3972 = vpop.f32.mrb[0].mxu0
      %v3973 = vadd.f32 %v3828, %v3972
      %v3974 = vpop.f32.mrb[0].mxu0
      %3975 = vmatprep.mubr.f32.mxu0 %v1634
      %3976 = vmatmul.mubr.f32.gmra.mrb[0].mxu0 %v1633
      %v3977 = vpop.f32.mrb[0].mxu0
      %v3978 = vadd.f32 %v3833, %v3977
      %v3979 = vpop.f32.mrb[0].mxu0
      %3980 = vmatprep.mubr.f32.mxu0 %v1638
      %3981 = vmatmul.mubr.f32.gmra.mrb[0].mxu0 %v1637
      %v3982 = vpop.f32.mrb[0].mxu0
      %v3983 = vadd.f32 %v3838, %v3982
      %v3984 = vpop.f32.mrb[0].mxu0
      %3985 = vmatprep.mubr.f32.mxu0 %v1642
      %3986 = vmatmul.mubr.f32.gmra.mrb[0].mxu0 %v1641
      %v3987 = vpop.f32.mrb[0].mxu0
      %v3988 = vadd.f32 %v3843, %v3987
      %v3989 = vpop.f32.mrb[0].mxu0
      %3990 = vmatprep.mubr.f32.mxu0 %v1646
      %3991 = vmatmul.mubr.f32.gmra.mrb[0].mxu0 %v1645
      %v3992 = vpop.f32.mrb[0].mxu0
      %v3993 = vadd.f32 %v3848, %v3992
      %v3994 = vpop.f32.mrb[0].mxu0
      %3995 = vmatprep.mubr.f32.mxu0 %v1650
      %3996 = vmatmul.mubr.f32.gmra.mrb[0].mxu0 %v1649
      %v3997 = vpop.f32.mrb[0].mxu0
      %v3998 = vadd.f32 %v3853, %v3997
      %v3999 = vpop.f32.mrb[0].mxu0
      %4000 = vmatprep.mubr.f32.mxu0 %v1654
      %4001 = vmatmul.mubr.f32.gmra.mrb[0].mxu0 %v1653
      %v4002 = vpop.f32.mrb[0].mxu0
      %v4003 = vadd.f32 %v3858, %v4002
      %v4004 = vpop.f32.mrb[0].mxu0
      %4005 = vmatprep.mubr.f32.mxu0 %v1658
      %4006 = vmatmul.mubr.f32.gmra.mrb[0].mxu0 %v1657
      %v4007 = vpop.f32.mrb[0].mxu0
      %v4008 = vadd.f32 %v3863, %v4007
      %v4009 = vpop.f32.mrb[0].mxu0
      %4010 = vmatprep.mubr.f32.mxu0 %v1662
      %4011 = vmatmul.mubr.f32.gmra.mrb[0].mxu0 %v1661
      %v4012 = vpop.f32.mrb[0].mxu0
      %v4013 = vadd.f32 %v3868, %v4012
      %v4014 = vpop.f32.mrb[0].mxu0
      %4015 = vmatprep.mubr.f32.mxu0 %v1666
      %4016 = vmatmul.mubr.f32.gmra.mrb[0].mxu0 %v1665
      %v4017 = vpop.f32.mrb[0].mxu0
      %v4018 = vadd.f32 %v3873, %v4017
      %v4019 = vpop.f32.mrb[0].mxu0
      %4020 = vmatprep.mubr.f32.mxu0 %v1670
      %4021 = vmatmul.mubr.f32.gmra.mrb[0].mxu0 %v1669
      %v4022 = vpop.f32.mrb[0].mxu0
      %v4023 = vadd.f32 %v3878, %v4022
      %v4024 = vpop.f32.mrb[0].mxu0
      %4025 = vmatprep.mubr.f32.mxu0 %v1674
      %4026 = vmatmul.mubr.f32.gmra.mrb[0].mxu0 %v1673
      %v4027 = vpop.f32.mrb[0].mxu0
      %v4028 = vadd.f32 %v3883, %v4027
      %v4029 = vpop.f32.mrb[0].mxu0
      %4030 = vdwg.mxu0
      %4031 = vmatprep.subr.mxu0 0.0
      %4032 = vmatpush1.msra.mxu0 %v3953
      %4033 = vmatprep.subr.mxu0 0.0
      %4034 = vmatpush1.msra.mxu0 %v3958
      %4035 = vmatprep.subr.mxu0 0.0
      %4036 = vmatpush1.msra.mxu0 %v3963
      %4037 = vmatprep.subr.mxu0 0.0
      %4038 = vmatpush1.msra.mxu0 %v3968
      %4039 = vmatprep.subr.mxu0 0.0
      %4040 = vmatpush1.msra.mxu0 %v3973
      %4041 = vmatprep.subr.mxu0 0.0
      %4042 = vmatpush1.msra.mxu0 %v3978
      %4043 = vmatprep.subr.mxu0 0.0
      %4044 = vmatpush1.msra.mxu0 %v3983
      %4045 = vmatprep.subr.mxu0 0.0
      %4046 = vmatpush1.msra.mxu0 %v3988
      %4047 = vmatprep.subr.mxu0 0.0
      %4048 = vmatpush1.msra.mxu0 %v3993
      %4049 = vmatprep.subr.mxu0 0.0
      %4050 = vmatpush1.msra.mxu0 %v3998
      %4051 = vmatprep.subr.mxu0 0.0
      %4052 = vmatpush1.msra.mxu0 %v4003
      %4053 = vmatprep.subr.mxu0 0.0
      %4054 = vmatpush1.msra.mxu0 %v4008
      %4055 = vmatprep.subr.mxu0 0.0
      %4056 = vmatpush1.msra.mxu0 %v4013
      %4057 = vmatprep.subr.mxu0 0.0
      %4058 = vmatpush1.msra.mxu0 %v4018
      %4059 = vmatprep.subr.mxu0 0.0
      %4060 = vmatpush1.msra.mxu0 %v4023
      %4061 = vmatprep.subr.mxu0 0.0
      %4062 = vmatpush1.msra.mxu0 %v4028
      %4063 = vmatprep.subr.mxu0 0.0
      %4064 = vmatpush1.msra.mxu0 0.0
      %4065 = vmatprep.subr.mxu0 0.0
      %4066 = vmatpush1.msra.mxu0 0.0
      %4067 = vmatprep.subr.mxu0 0.0
      %4068 = vmatpush1.msra.mxu0 0.0
      %4069 = vmatprep.subr.mxu0 0.0
      %4070 = vmatpush1.msra.mxu0 0.0
      %4071 = vmatprep.subr.mxu0 0.0
      %4072 = vmatpush1.msra.mxu0 0.0
      %4073 = vmatprep.subr.mxu0 0.0
      %4074 = vmatpush1.msra.mxu0 0.0
      %4075 = vmatprep.subr.mxu0 0.0
      %4076 = vmatpush1.msra.mxu0 0.0
      %4077 = vmatprep.subr.mxu0 0.0
      %4078 = vmatpush1.msra.mxu0 0.0
      %4079 = vmatprep.subr.mxu0 0.0
      %4080 = vmatpush1.msra.mxu0 0.0
      %4081 = vmatprep.subr.mxu0 0.0
      %4082 = vmatpush1.msra.mxu0 0.0
      %4083 = vmatprep.subr.mxu0 0.0
      %4084 = vmatpush1.msra.mxu0 0.0
      %4085 = vmatprep.subr.mxu0 0.0
      %4086 = vmatpush1.msra.mxu0 0.0
      %4087 = vmatprep.subr.mxu0 0.0
      %4088 = vmatpush1.msra.mxu0 0.0
      %4089 = vmatprep.subr.mxu0 0.0
      %4090 = vmatpush1.msra.mxu0 0.0
      %4091 = vmatprep.subr.mxu0 0.0
      %4092 = vmatpush1.msra.mxu0 0.0
      %4093 = vmatprep.subr.mxu0 0.0
      %4094 = vmatpush1.msra.mxu0 0.0
      %4095 = vmatprep.mubr.f32.mxu0 0.0
      %4096 = vmatmul.mubr.f32.gmra.mrb[0].mxu0 %v1699
      %v4097 = vpop.f32.mrb[0].mxu0
      %v4098 = vadd.f32 0.0, %v4097
      %v4099 = vpop.f32.mrb[0].mxu0
      %4100 = vmatprep.mubr.f32.mxu0 0.0
      %4101 = vmatmul.mubr.f32.gmra.mrb[0].mxu0 %v1700
      %v4102 = vpop.f32.mrb[0].mxu0
      %v4103 = vadd.f32 0.0, %v4102
      %v4104 = vpop.f32.mrb[0].mxu0
      %4105 = vmatprep.mubr.f32.mxu0 0.0
      %4106 = vmatmul.mubr.f32.gmra.mrb[0].mxu0 %v1701
      %v4107 = vpop.f32.mrb[0].mxu0
      %v4108 = vadd.f32 0.0, %v4107
      %v4109 = vpop.f32.mrb[0].mxu0
      %4110 = vmatprep.mubr.f32.mxu0 0.0
      %4111 = vmatmul.mubr.f32.gmra.mrb[0].mxu0 %v1702
      %v4112 = vpop.f32.mrb[0].mxu0
      %v4113 = vadd.f32 0.0, %v4112
      %v4114 = vpop.f32.mrb[0].mxu0
      %4115 = vmatprep.mubr.f32.mxu0 0.0
      %4116 = vmatmul.mubr.f32.gmra.mrb[0].mxu0 %v1703
      %v4117 = vpop.f32.mrb[0].mxu0
      %v4118 = vadd.f32 0.0, %v4117
      %v4119 = vpop.f32.mrb[0].mxu0
      %4120 = vmatprep.mubr.f32.mxu0 0.0
      %4121 = vmatmul.mubr.f32.gmra.mrb[0].mxu0 %v1704
      %v4122 = vpop.f32.mrb[0].mxu0
      %v4123 = vadd.f32 0.0, %v4122
      %v4124 = vpop.f32.mrb[0].mxu0
      %4125 = vmatprep.mubr.f32.mxu0 0.0
      %4126 = vmatmul.mubr.f32.gmra.mrb[0].mxu0 %v1705
      %v4127 = vpop.f32.mrb[0].mxu0
      %v4128 = vadd.f32 0.0, %v4127
      %v4129 = vpop.f32.mrb[0].mxu0
      %4130 = vmatprep.mubr.f32.mxu0 0.0
      %4131 = vmatmul.mubr.f32.gmra.mrb[0].mxu0 %v1706
      %v4132 = vpop.f32.mrb[0].mxu0
      %v4133 = vadd.f32 0.0, %v4132
      %v4134 = vpop.f32.mrb[0].mxu0
      %4135 = vmatprep.mubr.f32.mxu0 0.0
      %4136 = vmatmul.mubr.f32.gmra.mrb[0].mxu0 %v1707
      %v4137 = vpop.f32.mrb[0].mxu0
      %v4138 = vadd.f32 0.0, %v4137
      %v4139 = vpop.f32.mrb[0].mxu0
      %4140 = vmatprep.mubr.f32.mxu0 0.0
      %4141 = vmatmul.mubr.f32.gmra.mrb[0].mxu0 %v1708
      %v4142 = vpop.f32.mrb[0].mxu0
      %v4143 = vadd.f32 0.0, %v4142
      %v4144 = vpop.f32.mrb[0].mxu0
      %4145 = vmatprep.mubr.f32.mxu0 0.0
      %4146 = vmatmul.mubr.f32.gmra.mrb[0].mxu0 %v1709
      %v4147 = vpop.f32.mrb[0].mxu0
      %v4148 = vadd.f32 0.0, %v4147
      %v4149 = vpop.f32.mrb[0].mxu0
      %4150 = vmatprep.mubr.f32.mxu0 0.0
      %4151 = vmatmul.mubr.f32.gmra.mrb[0].mxu0 %v1710
      %v4152 = vpop.f32.mrb[0].mxu0
      %v4153 = vadd.f32 0.0, %v4152
      %v4154 = vpop.f32.mrb[0].mxu0
      %4155 = vmatprep.mubr.f32.mxu0 0.0
      %4156 = vmatmul.mubr.f32.gmra.mrb[0].mxu0 %v1711
      %v4157 = vpop.f32.mrb[0].mxu0
      %v4158 = vadd.f32 0.0, %v4157
      %v4159 = vpop.f32.mrb[0].mxu0
      %4160 = vmatprep.mubr.f32.mxu0 0.0
      %4161 = vmatmul.mubr.f32.gmra.mrb[0].mxu0 %v1712
      %v4162 = vpop.f32.mrb[0].mxu0
      %v4163 = vadd.f32 0.0, %v4162
      %v4164 = vpop.f32.mrb[0].mxu0
      %4165 = vmatprep.mubr.f32.mxu0 0.0
      %4166 = vmatmul.mubr.f32.gmra.mrb[0].mxu0 %v1713
      %v4167 = vpop.f32.mrb[0].mxu0
      %v4168 = vadd.f32 0.0, %v4167
      %v4169 = vpop.f32.mrb[0].mxu0
      %4170 = vmatprep.mubr.f32.mxu0 0.0
      %4171 = vmatmul.mubr.f32.gmra.mrb[0].mxu0 %v1714
      %v4172 = vpop.f32.mrb[0].mxu0
      %v4173 = vadd.f32 0.0, %v4172
      %v4174 = vpop.f32.mrb[0].mxu0
      %4175 = vmatprep.mubr.f32.mxu0 0.0
      %4176 = vmatmul.mubr.f32.gmra.mrb[0].mxu0 %v1731
      %v4177 = vpop.f32.mrb[0].mxu0
      %v4178 = vadd.f32 0.0, %v4177
      %v4179 = vpop.f32.mrb[0].mxu0
      %4180 = vmatprep.mubr.f32.mxu0 0.0
      %4181 = vmatmul.mubr.f32.gmra.mrb[0].mxu0 %v1732
      %v4182 = vpop.f32.mrb[0].mxu0
      %v4183 = vadd.f32 0.0, %v4182
      %v4184 = vpop.f32.mrb[0].mxu0
      %4185 = vmatprep.mubr.f32.mxu0 0.0
      %4186 = vmatmul.mubr.f32.gmra.mrb[0].mxu0 %v1733
      %v4187 = vpop.f32.mrb[0].mxu0
      %v4188 = vadd.f32 0.0, %v4187
      %v4189 = vpop.f32.mrb[0].mxu0
      %4190 = vmatprep.mubr.f32.mxu0 0.0
      %4191 = vmatmul.mubr.f32.gmra.mrb[0].mxu0 %v1734
      %v4192 = vpop.f32.mrb[0].mxu0
      %v4193 = vadd.f32 0.0, %v4192
      %v4194 = vpop.f32.mrb[0].mxu0
      %4195 = vmatprep.mubr.f32.mxu0 0.0
      %4196 = vmatmul.mubr.f32.gmra.mrb[0].mxu0 %v1735
      %v4197 = vpop.f32.mrb[0].mxu0
      %v4198 = vadd.f32 0.0, %v4197
      %v4199 = vpop.f32.mrb[0].mxu0
      %4200 = vmatprep.mubr.f32.mxu0 0.0
      %4201 = vmatmul.mubr.f32.gmra.mrb[0].mxu0 %v1736
      %v4202 = vpop.f32.mrb[0].mxu0
      %v4203 = vadd.f32 0.0, %v4202
      %v4204 = vpop.f32.mrb[0].mxu0
      %4205 = vmatprep.mubr.f32.mxu0 0.0
      %4206 = vmatmul.mubr.f32.gmra.mrb[0].mxu0 %v1737
      %v4207 = vpop.f32.mrb[0].mxu0
      %v4208 = vadd.f32 0.0, %v4207
      %v4209 = vpop.f32.mrb[0].mxu0
      %4210 = vmatprep.mubr.f32.mxu0 0.0
      %4211 = vmatmul.mubr.f32.gmra.mrb[0].mxu0 %v1738
      %v4212 = vpop.f32.mrb[0].mxu0
      %v4213 = vadd.f32 0.0, %v4212
      %v4214 = vpop.f32.mrb[0].mxu0
      %4215 = vmatprep.mubr.f32.mxu0 0.0
      %4216 = vmatmul.mubr.f32.gmra.mrb[0].mxu0 %v1739
      %v4217 = vpop.f32.mrb[0].mxu0
      %v4218 = vadd.f32 0.0, %v4217
      %v4219 = vpop.f32.mrb[0].mxu0
      %4220 = vmatprep.mubr.f32.mxu0 0.0
      %4221 = vmatmul.mubr.f32.gmra.mrb[0].mxu0 %v1740
      %v4222 = vpop.f32.mrb[0].mxu0
      %v4223 = vadd.f32 0.0, %v4222
      %v4224 = vpop.f32.mrb[0].mxu0
      %4225 = vmatprep.mubr.f32.mxu0 0.0
      %4226 = vmatmul.mubr.f32.gmra.mrb[0].mxu0 %v1741
      %v4227 = vpop.f32.mrb[0].mxu0
      %v4228 = vadd.f32 0.0, %v4227
      %v4229 = vpop.f32.mrb[0].mxu0
      %4230 = vmatprep.mubr.f32.mxu0 0.0
      %4231 = vmatmul.mubr.f32.gmra.mrb[0].mxu0 %v1742
      %v4232 = vpop.f32.mrb[0].mxu0
      %v4233 = vadd.f32 0.0, %v4232
      %v4234 = vpop.f32.mrb[0].mxu0
      %4235 = vmatprep.mubr.f32.mxu0 0.0
      %4236 = vmatmul.mubr.f32.gmra.mrb[0].mxu0 %v1743
      %v4237 = vpop.f32.mrb[0].mxu0
      %v4238 = vadd.f32 0.0, %v4237
      %v4239 = vpop.f32.mrb[0].mxu0
      %4240 = vmatprep.mubr.f32.mxu0 0.0
      %4241 = vmatmul.mubr.f32.gmra.mrb[0].mxu0 %v1744
      %v4242 = vpop.f32.mrb[0].mxu0
      %v4243 = vadd.f32 0.0, %v4242
      %v4244 = vpop.f32.mrb[0].mxu0
      %4245 = vmatprep.mubr.f32.mxu0 0.0
      %4246 = vmatmul.mubr.f32.gmra.mrb[0].mxu0 %v1745
      %v4247 = vpop.f32.mrb[0].mxu0
      %v4248 = vadd.f32 0.0, %v4247
      %v4249 = vpop.f32.mrb[0].mxu0
      %4250 = vmatprep.mubr.f32.mxu0 0.0
      %4251 = vmatmul.mubr.f32.gmra.mrb[0].mxu0 %v1746
      %v4252 = vpop.f32.mrb[0].mxu0
      %v4253 = vadd.f32 0.0, %v4252
      %v4254 = vpop.f32.mrb[0].mxu0
      %4255 = vmatprep.mubr.f32.mxu0 0.0
      %4256 = vmatmul.mubr.f32.gmra.mrb[0].mxu0 %v1763
      %v4257 = vpop.f32.mrb[0].mxu0
      %v4258 = vadd.f32 0.0, %v4257
      %v4259 = vpop.f32.mrb[0].mxu0
      %4260 = vmatprep.mubr.f32.mxu0 0.0
      %4261 = vmatmul.mubr.f32.gmra.mrb[0].mxu0 %v1764
      %v4262 = vpop.f32.mrb[0].mxu0
      %v4263 = vadd.f32 0.0, %v4262
      %v4264 = vpop.f32.mrb[0].mxu0
      %4265 = vmatprep.mubr.f32.mxu0 0.0
      %4266 = vmatmul.mubr.f32.gmra.mrb[0].mxu0 %v1765
      %v4267 = vpop.f32.mrb[0].mxu0
      %v4268 = vadd.f32 0.0, %v4267
      %v4269 = vpop.f32.mrb[0].mxu0
      %4270 = vmatprep.mubr.f32.mxu0 0.0
      %4271 = vmatmul.mubr.f32.gmra.mrb[0].mxu0 %v1766
      %v4272 = vpop.f32.mrb[0].mxu0
      %v4273 = vadd.f32 0.0, %v4272
      %v4274 = vpop.f32.mrb[0].mxu0
      %4275 = vmatprep.mubr.f32.mxu0 0.0
      %4276 = vmatmul.mubr.f32.gmra.mrb[0].mxu0 %v1767
      %v4277 = vpop.f32.mrb[0].mxu0
      %v4278 = vadd.f32 0.0, %v4277
      %v4279 = vpop.f32.mrb[0].mxu0
      %4280 = vmatprep.mubr.f32.mxu0 0.0
      %4281 = vmatmul.mubr.f32.gmra.mrb[0].mxu0 %v1768
      %v4282 = vpop.f32.mrb[0].mxu0
      %v4283 = vadd.f32 0.0, %v4282
      %v4284 = vpop.f32.mrb[0].mxu0
      %4285 = vmatprep.mubr.f32.mxu0 0.0
      %4286 = vmatmul.mubr.f32.gmra.mrb[0].mxu0 %v1769
      %v4287 = vpop.f32.mrb[0].mxu0
      %v4288 = vadd.f32 0.0, %v4287
      %v4289 = vpop.f32.mrb[0].mxu0
      %4290 = vmatprep.mubr.f32.mxu0 0.0
      %4291 = vmatmul.mubr.f32.gmra.mrb[0].mxu0 %v1770
      %v4292 = vpop.f32.mrb[0].mxu0
      %v4293 = vadd.f32 0.0, %v4292
      %v4294 = vpop.f32.mrb[0].mxu0
      %4295 = vmatprep.mubr.f32.mxu0 0.0
      %4296 = vmatmul.mubr.f32.gmra.mrb[0].mxu0 %v1771
      %v4297 = vpop.f32.mrb[0].mxu0
      %v4298 = vadd.f32 0.0, %v4297
      %v4299 = vpop.f32.mrb[0].mxu0
      %4300 = vmatprep.mubr.f32.mxu0 0.0
      %4301 = vmatmul.mubr.f32.gmra.mrb[0].mxu0 %v1772
      %v4302 = vpop.f32.mrb[0].mxu0
      %v4303 = vadd.f32 0.0, %v4302
      %v4304 = vpop.f32.mrb[0].mxu0
      %4305 = vmatprep.mubr.f32.mxu0 0.0
      %4306 = vmatmul.mubr.f32.gmra.mrb[0].mxu0 %v1773
      %v4307 = vpop.f32.mrb[0].mxu0
      %v4308 = vadd.f32 0.0, %v4307
      %v4309 = vpop.f32.mrb[0].mxu0
      %4310 = vmatprep.mubr.f32.mxu0 0.0
      %4311 = vmatmul.mubr.f32.gmra.mrb[0].mxu0 %v1774
      %v4312 = vpop.f32.mrb[0].mxu0
      %v4313 = vadd.f32 0.0, %v4312
      %v4314 = vpop.f32.mrb[0].mxu0
      %4315 = vmatprep.mubr.f32.mxu0 0.0
      %4316 = vmatmul.mubr.f32.gmra.mrb[0].mxu0 %v1775
      %v4317 = vpop.f32.mrb[0].mxu0
      %v4318 = vadd.f32 0.0, %v4317
      %v4319 = vpop.f32.mrb[0].mxu0
      %4320 = vmatprep.mubr.f32.mxu0 0.0
      %4321 = vmatmul.mubr.f32.gmra.mrb[0].mxu0 %v1776
      %v4322 = vpop.f32.mrb[0].mxu0
      %v4323 = vadd.f32 0.0, %v4322
      %v4324 = vpop.f32.mrb[0].mxu0
      %4325 = vmatprep.mubr.f32.mxu0 0.0
      %4326 = vmatmul.mubr.f32.gmra.mrb[0].mxu0 %v1777
      %v4327 = vpop.f32.mrb[0].mxu0
      %v4328 = vadd.f32 0.0, %v4327
      %v4329 = vpop.f32.mrb[0].mxu0
      %4330 = vmatprep.mubr.f32.mxu0 0.0
      %4331 = vmatmul.mubr.f32.gmra.mrb[0].mxu0 %v1778
      %v4332 = vpop.f32.mrb[0].mxu0
      %v4333 = vadd.f32 0.0, %v4332
      %v4334 = vpop.f32.mrb[0].mxu0
      %4335 = vmatprep.mubr.f32.mxu0 0.0
      %4336 = vmatmul.mubr.f32.gmra.mrb[0].mxu0 %v1795
      %v4337 = vpop.f32.mrb[0].mxu0
      %v4338 = vadd.f32 0.0, %v4337
      %v4339 = vpop.f32.mrb[0].mxu0
      %4340 = vmatprep.mubr.f32.mxu0 0.0
      %4341 = vmatmul.mubr.f32.gmra.mrb[0].mxu0 %v1796
      %v4342 = vpop.f32.mrb[0].mxu0
      %v4343 = vadd.f32 0.0, %v4342
      %v4344 = vpop.f32.mrb[0].mxu0
      %4345 = vmatprep.mubr.f32.mxu0 0.0
      %4346 = vmatmul.mubr.f32.gmra.mrb[0].mxu0 %v1797
      %v4347 = vpop.f32.mrb[0].mxu0
      %v4348 = vadd.f32 0.0, %v4347
      %v4349 = vpop.f32.mrb[0].mxu0
      %4350 = vmatprep.mubr.f32.mxu0 0.0
      %4351 = vmatmul.mubr.f32.gmra.mrb[0].mxu0 %v1798
      %v4352 = vpop.f32.mrb[0].mxu0
      %v4353 = vadd.f32 0.0, %v4352
      %v4354 = vpop.f32.mrb[0].mxu0
      %4355 = vmatprep.mubr.f32.mxu0 0.0
      %4356 = vmatmul.mubr.f32.gmra.mrb[0].mxu0 %v1799
      %v4357 = vpop.f32.mrb[0].mxu0
      %v4358 = vadd.f32 0.0, %v4357
      %v4359 = vpop.f32.mrb[0].mxu0
      %4360 = vmatprep.mubr.f32.mxu0 0.0
      %4361 = vmatmul.mubr.f32.gmra.mrb[0].mxu0 %v1800
      %v4362 = vpop.f32.mrb[0].mxu0
      %v4363 = vadd.f32 0.0, %v4362
      %v4364 = vpop.f32.mrb[0].mxu0
      %4365 = vmatprep.mubr.f32.mxu0 0.0
      %4366 = vmatmul.mubr.f32.gmra.mrb[0].mxu0 %v1801
      %v4367 = vpop.f32.mrb[0].mxu0
      %v4368 = vadd.f32 0.0, %v4367
      %v4369 = vpop.f32.mrb[0].mxu0
      %4370 = vmatprep.mubr.f32.mxu0 0.0
      %4371 = vmatmul.mubr.f32.gmra.mrb[0].mxu0 %v1802
      %v4372 = vpop.f32.mrb[0].mxu0
      %v4373 = vadd.f32 0.0, %v4372
      %v4374 = vpop.f32.mrb[0].mxu0
      %4375 = vmatprep.mubr.f32.mxu0 0.0
      %4376 = vmatmul.mubr.f32.gmra.mrb[0].mxu0 %v1803
      %v4377 = vpop.f32.mrb[0].mxu0
      %v4378 = vadd.f32 0.0, %v4377
      %v4379 = vpop.f32.mrb[0].mxu0
      %4380 = vmatprep.mubr.f32.mxu0 0.0
      %4381 = vmatmul.mubr.f32.gmra.mrb[0].mxu0 %v1804
      %v4382 = vpop.f32.mrb[0].mxu0
      %v4383 = vadd.f32 0.0, %v4382
      %v4384 = vpop.f32.mrb[0].mxu0
      %4385 = vmatprep.mubr.f32.mxu0 0.0
      %4386 = vmatmul.mubr.f32.gmra.mrb[0].mxu0 %v1805
      %v4387 = vpop.f32.mrb[0].mxu0
      %v4388 = vadd.f32 0.0, %v4387
      %v4389 = vpop.f32.mrb[0].mxu0
      %4390 = vmatprep.mubr.f32.mxu0 0.0
      %4391 = vmatmul.mubr.f32.gmra.mrb[0].mxu0 %v1806
      %v4392 = vpop.f32.mrb[0].mxu0
      %v4393 = vadd.f32 0.0, %v4392
      %v4394 = vpop.f32.mrb[0].mxu0
      %4395 = vmatprep.mubr.f32.mxu0 0.0
      %4396 = vmatmul.mubr.f32.gmra.mrb[0].mxu0 %v1807
      %v4397 = vpop.f32.mrb[0].mxu0
      %v4398 = vadd.f32 0.0, %v4397
      %v4399 = vpop.f32.mrb[0].mxu0
      %4400 = vmatprep.mubr.f32.mxu0 0.0
      %4401 = vmatmul.mubr.f32.gmra.mrb[0].mxu0 %v1808
      %v4402 = vpop.f32.mrb[0].mxu0
      %v4403 = vadd.f32 0.0, %v4402
      %v4404 = vpop.f32.mrb[0].mxu0
      %4405 = vmatprep.mubr.f32.mxu0 0.0
      %4406 = vmatmul.mubr.f32.gmra.mrb[0].mxu0 %v1809
      %v4407 = vpop.f32.mrb[0].mxu0
      %v4408 = vadd.f32 0.0, %v4407
      %v4409 = vpop.f32.mrb[0].mxu0
      %4410 = vmatprep.mubr.f32.mxu0 0.0
      %4411 = vmatmul.mubr.f32.gmra.mrb[0].mxu0 %v1810
      %v4412 = vpop.f32.mrb[0].mxu0
      %v4413 = vadd.f32 0.0, %v4412
      %v4414 = vpop.f32.mrb[0].mxu0
      %4415 = vdwg.mxu0
      %v4416 = vrcp.pop %v4098
      %v4417 = vrcp.pop %v4103
      %v4418 = vrcp.pop %v4108
      %v4419 = vrcp.pop %v4113
      %v4420 = vrcp.pop %v4118
      %v4421 = vrcp.pop %v4123
      %v4422 = vrcp.pop %v4128
      %v4423 = vrcp.pop %v4133
      %v4424 = vrcp.pop %v4138
      %v4425 = vrcp.pop %v4143
      %v4426 = vrcp.pop %v4148
      %v4427 = vrcp.pop %v4153
      %v4428 = vrcp.pop %v4158
      %v4429 = vrcp.pop %v4163
      %v4430 = vrcp.pop %v4168
      %v4431 = vrcp.pop %v4173
      %v4432 = vrcp.pop %v4178
      %v4433 = vrcp.pop %v4183
      %v4434 = vrcp.pop %v4188
      %v4435 = vrcp.pop %v4193
      %v4436 = vrcp.pop %v4198
      %v4437 = vrcp.pop %v4203
      %v4438 = vrcp.pop %v4208
      %v4439 = vrcp.pop %v4213
      %v4440 = vrcp.pop %v4218
      %v4441 = vrcp.pop %v4223
      %v4442 = vrcp.pop %v4228
      %v4443 = vrcp.pop %v4233
      %v4444 = vrcp.pop %v4238
      %v4445 = vrcp.pop %v4243
      %v4446 = vrcp.pop %v4248
      %v4447 = vrcp.pop %v4253
      %v4448 = vrcp.pop %v4258
      %v4449 = vrcp.pop %v4263
      %v4450 = vrcp.pop %v4268
      %v4451 = vrcp.pop %v4273
      %v4452 = vrcp.pop %v4278
      %v4453 = vrcp.pop %v4283
      %v4454 = vrcp.pop %v4288
      %v4455 = vrcp.pop %v4293
      %v4456 = vrcp.pop %v4298
      %v4457 = vrcp.pop %v4303
      %v4458 = vrcp.pop %v4308
      %v4459 = vrcp.pop %v4313
      %v4460 = vrcp.pop %v4318
      %v4461 = vrcp.pop %v4323
      %v4462 = vrcp.pop %v4328
      %v4463 = vrcp.pop %v4333
      %v4464 = vrcp.pop %v4338
      %v4465 = vrcp.pop %v4343
      %v4466 = vrcp.pop %v4348
      %v4467 = vrcp.pop %v4353
      %v4468 = vrcp.pop %v4358
      %v4469 = vrcp.pop %v4363
      %v4470 = vrcp.pop %v4368
      %v4471 = vrcp.pop %v4373
      %v4472 = vrcp.pop %v4378
      %v4473 = vrcp.pop %v4383
      %v4474 = vrcp.pop %v4388
      %v4475 = vrcp.pop %v4393
      %v4476 = vrcp.pop %v4398
      %v4477 = vrcp.pop %v4403
      %v4478 = vrcp.pop %v4408
      %v4479 = vrcp.pop %v4413
      %v4480 = vmul.f32 %v4098, %v4416
      %v4481 = vmul.f32 %v4103, %v4417
      %v4482 = vmul.f32 %v4108, %v4418
      %v4483 = vmul.f32 %v4113, %v4419
      %v4484 = vmul.f32 %v4118, %v4420
      %v4485 = vmul.f32 %v4123, %v4421
      %v4486 = vmul.f32 %v4128, %v4422
      %v4487 = vmul.f32 %v4133, %v4423
      %v4488 = vmul.f32 %v4138, %v4424
      %v4489 = vmul.f32 %v4143, %v4425
      %v4490 = vmul.f32 %v4148, %v4426
      %v4491 = vmul.f32 %v4153, %v4427
      %v4492 = vmul.f32 %v4158, %v4428
      %v4493 = vmul.f32 %v4163, %v4429
      %v4494 = vmul.f32 %v4168, %v4430
      %v4495 = vmul.f32 %v4173, %v4431
      %v4496 = vmul.f32 %v4178, %v4432
      %v4497 = vmul.f32 %v4183, %v4433
      %v4498 = vmul.f32 %v4188, %v4434
      %v4499 = vmul.f32 %v4193, %v4435
      %v4500 = vmul.f32 %v4198, %v4436
      %v4501 = vmul.f32 %v4203, %v4437
      %v4502 = vmul.f32 %v4208, %v4438
      %v4503 = vmul.f32 %v4213, %v4439
      %v4504 = vmul.f32 %v4218, %v4440
      %v4505 = vmul.f32 %v4223, %v4441
      %v4506 = vmul.f32 %v4228, %v4442
      %v4507 = vmul.f32 %v4233, %v4443
      %v4508 = vmul.f32 %v4238, %v4444
      %v4509 = vmul.f32 %v4243, %v4445
      %v4510 = vmul.f32 %v4248, %v4446
      %v4511 = vmul.f32 %v4253, %v4447
      %v4512 = vmul.f32 %v4258, %v4448
      %v4513 = vmul.f32 %v4263, %v4449
      %v4514 = vmul.f32 %v4268, %v4450
      %v4515 = vmul.f32 %v4273, %v4451
      %v4516 = vmul.f32 %v4278, %v4452
      %v4517 = vmul.f32 %v4283, %v4453
      %v4518 = vmul.f32 %v4288, %v4454
      %v4519 = vmul.f32 %v4293, %v4455
      %v4520 = vmul.f32 %v4298, %v4456
      %v4521 = vmul.f32 %v4303, %v4457
      %v4522 = vmul.f32 %v4308, %v4458
      %v4523 = vmul.f32 %v4313, %v4459
      %v4524 = vmul.f32 %v4318, %v4460
      %v4525 = vmul.f32 %v4323, %v4461
      %v4526 = vmul.f32 %v4328, %v4462
      %v4527 = vmul.f32 %v4333, %v4463
      %v4528 = vmul.f32 %v4338, %v4464
      %v4529 = vmul.f32 %v4343, %v4465
      %v4530 = vmul.f32 %v4348, %v4466
      %v4531 = vmul.f32 %v4353, %v4467
      %v4532 = vmul.f32 %v4358, %v4468
      %v4533 = vmul.f32 %v4363, %v4469
      %v4534 = vmul.f32 %v4368, %v4470
      %v4535 = vmul.f32 %v4373, %v4471
      %v4536 = vmul.f32 %v4378, %v4472
      %v4537 = vmul.f32 %v4383, %v4473
      %v4538 = vmul.f32 %v4388, %v4474
      %v4539 = vmul.f32 %v4393, %v4475
      %v4540 = vmul.f32 %v4398, %v4476
      %v4541 = vmul.f32 %v4403, %v4477
      %v4542 = vmul.f32 %v4408, %v4478
      %v4543 = vmul.f32 %v4413, %v4479
      %v4544 = vsub.f32 2.0, %v4480
      %v4545 = vsub.f32 2.0, %v4481
      %v4546 = vsub.f32 2.0, %v4482
      %v4547 = vsub.f32 2.0, %v4483
      %v4548 = vsub.f32 2.0, %v4484
      %v4549 = vsub.f32 2.0, %v4485
      %v4550 = vsub.f32 2.0, %v4486
      %v4551 = vsub.f32 2.0, %v4487
      %v4552 = vsub.f32 2.0, %v4488
      %v4553 = vsub.f32 2.0, %v4489
      %v4554 = vsub.f32 2.0, %v4490
      %v4555 = vsub.f32 2.0, %v4491
      %v4556 = vsub.f32 2.0, %v4492
      %v4557 = vsub.f32 2.0, %v4493
      %v4558 = vsub.f32 2.0, %v4494
      %v4559 = vsub.f32 2.0, %v4495
      %v4560 = vsub.f32 2.0, %v4496
      %v4561 = vsub.f32 2.0, %v4497
      %v4562 = vsub.f32 2.0, %v4498
      %v4563 = vsub.f32 2.0, %v4499
      %v4564 = vsub.f32 2.0, %v4500
      %v4565 = vsub.f32 2.0, %v4501
      %v4566 = vsub.f32 2.0, %v4502
      %v4567 = vsub.f32 2.0, %v4503
      %v4568 = vsub.f32 2.0, %v4504
      %v4569 = vsub.f32 2.0, %v4505
      %v4570 = vsub.f32 2.0, %v4506
      %v4571 = vsub.f32 2.0, %v4507
      %v4572 = vsub.f32 2.0, %v4508
      %v4573 = vsub.f32 2.0, %v4509
      %v4574 = vsub.f32 2.0, %v4510
      %v4575 = vsub.f32 2.0, %v4511
      %v4576 = vsub.f32 2.0, %v4512
      %v4577 = vsub.f32 2.0, %v4513
      %v4578 = vsub.f32 2.0, %v4514
      %v4579 = vsub.f32 2.0, %v4515
      %v4580 = vsub.f32 2.0, %v4516
      %v4581 = vsub.f32 2.0, %v4517
      %v4582 = vsub.f32 2.0, %v4518
      %v4583 = vsub.f32 2.0, %v4519
      %v4584 = vsub.f32 2.0, %v4520
      %v4585 = vsub.f32 2.0, %v4521
      %v4586 = vsub.f32 2.0, %v4522
      %v4587 = vsub.f32 2.0, %v4523
      %v4588 = vsub.f32 2.0, %v4524
      %v4589 = vsub.f32 2.0, %v4525
      %v4590 = vsub.f32 2.0, %v4526
      %v4591 = vsub.f32 2.0, %v4527
      %v4592 = vsub.f32 2.0, %v4528
      %v4593 = vsub.f32 2.0, %v4529
      %v4594 = vsub.f32 2.0, %v4530
      %v4595 = vsub.f32 2.0, %v4531
      %v4596 = vsub.f32 2.0, %v4532
      %v4597 = vsub.f32 2.0, %v4533
      %v4598 = vsub.f32 2.0, %v4534
      %v4599 = vsub.f32 2.0, %v4535
      %v4600 = vsub.f32 2.0, %v4536
      %v4601 = vsub.f32 2.0, %v4537
      %v4602 = vsub.f32 2.0, %v4538
      %v4603 = vsub.f32 2.0, %v4539
      %v4604 = vsub.f32 2.0, %v4540
      %v4605 = vsub.f32 2.0, %v4541
      %v4606 = vsub.f32 2.0, %v4542
      %v4607 = vsub.f32 2.0, %v4543
      %v4608 = vmul.f32 %v4416, %v4544
      %v4609 = vmul.f32 %v4417, %v4545
      %v4610 = vmul.f32 %v4418, %v4546
      %v4611 = vmul.f32 %v4419, %v4547
      %v4612 = vmul.f32 %v4420, %v4548
      %v4613 = vmul.f32 %v4421, %v4549
      %v4614 = vmul.f32 %v4422, %v4550
      %v4615 = vmul.f32 %v4423, %v4551
      %v4616 = vmul.f32 %v4424, %v4552
      %v4617 = vmul.f32 %v4425, %v4553
      %v4618 = vmul.f32 %v4426, %v4554
      %v4619 = vmul.f32 %v4427, %v4555
      %v4620 = vmul.f32 %v4428, %v4556
      %v4621 = vmul.f32 %v4429, %v4557
      %v4622 = vmul.f32 %v4430, %v4558
      %v4623 = vmul.f32 %v4431, %v4559
      %v4624 = vmul.f32 %v4432, %v4560
      %v4625 = vmul.f32 %v4433, %v4561
      %v4626 = vmul.f32 %v4434, %v4562
      %v4627 = vmul.f32 %v4435, %v4563
      %v4628 = vmul.f32 %v4436, %v4564
      %v4629 = vmul.f32 %v4437, %v4565
      %v4630 = vmul.f32 %v4438, %v4566
      %v4631 = vmul.f32 %v4439, %v4567
      %v4632 = vmul.f32 %v4440, %v4568
      %v4633 = vmul.f32 %v4441, %v4569
      %v4634 = vmul.f32 %v4442, %v4570
      %v4635 = vmul.f32 %v4443, %v4571
      %v4636 = vmul.f32 %v4444, %v4572
      %v4637 = vmul.f32 %v4445, %v4573
      %v4638 = vmul.f32 %v4446, %v4574
      %v4639 = vmul.f32 %v4447, %v4575
      %v4640 = vmul.f32 %v4448, %v4576
      %v4641 = vmul.f32 %v4449, %v4577
      %v4642 = vmul.f32 %v4450, %v4578
      %v4643 = vmul.f32 %v4451, %v4579
      %v4644 = vmul.f32 %v4452, %v4580
      %v4645 = vmul.f32 %v4453, %v4581
      %v4646 = vmul.f32 %v4454, %v4582
      %v4647 = vmul.f32 %v4455, %v4583
      %v4648 = vmul.f32 %v4456, %v4584
      %v4649 = vmul.f32 %v4457, %v4585
      %v4650 = vmul.f32 %v4458, %v4586
      %v4651 = vmul.f32 %v4459, %v4587
      %v4652 = vmul.f32 %v4460, %v4588
      %v4653 = vmul.f32 %v4461, %v4589
      %v4654 = vmul.f32 %v4462, %v4590
      %v4655 = vmul.f32 %v4463, %v4591
      %v4656 = vmul.f32 %v4464, %v4592
      %v4657 = vmul.f32 %v4465, %v4593
      %v4658 = vmul.f32 %v4466, %v4594
      %v4659 = vmul.f32 %v4467, %v4595
      %v4660 = vmul.f32 %v4468, %v4596
      %v4661 = vmul.f32 %v4469, %v4597
      %v4662 = vmul.f32 %v4470, %v4598
      %v4663 = vmul.f32 %v4471, %v4599
      %v4664 = vmul.f32 %v4472, %v4600
      %v4665 = vmul.f32 %v4473, %v4601
      %v4666 = vmul.f32 %v4474, %v4602
      %v4667 = vmul.f32 %v4475, %v4603
      %v4668 = vmul.f32 %v4476, %v4604
      %v4669 = vmul.f32 %v4477, %v4605
      %v4670 = vmul.f32 %v4478, %v4606
      %v4671 = vmul.f32 %v4479, %v4607
      %v4672 = vmul.f32 %v3614, %v4608
      %v4673 = vmul.f32 %v3616, %v4609
      %v4674 = vmul.f32 %v3618, %v4610
      %v4675 = vmul.f32 %v3620, %v4611
      %v4676 = vmul.f32 %v3622, %v4612
      %v4677 = vmul.f32 %v3624, %v4613
      %v4678 = vmul.f32 %v3626, %v4614
      %v4679 = vmul.f32 %v3628, %v4615
      %v4680 = vmul.f32 %v3630, %v4616
      %v4681 = vmul.f32 %v3632, %v4617
      %v4682 = vmul.f32 %v3634, %v4618
      %v4683 = vmul.f32 %v3636, %v4619
      %v4684 = vmul.f32 %v3638, %v4620
      %v4685 = vmul.f32 %v3640, %v4621
      %v4686 = vmul.f32 %v3642, %v4622
      %v4687 = vmul.f32 %v3644, %v4623
      %v4688 = vmul.f32 %v3646, %v4624
      %v4689 = vmul.f32 %v3648, %v4625
      %v4690 = vmul.f32 %v3650, %v4626
      %v4691 = vmul.f32 %v3652, %v4627
      %v4692 = vmul.f32 %v3654, %v4628
      %v4693 = vmul.f32 %v3656, %v4629
      %v4694 = vmul.f32 %v3658, %v4630
      %v4695 = vmul.f32 %v3660, %v4631
      %v4696 = vmul.f32 %v3662, %v4632
      %v4697 = vmul.f32 %v3664, %v4633
      %v4698 = vmul.f32 %v3666, %v4634
      %v4699 = vmul.f32 %v3668, %v4635
      %v4700 = vmul.f32 %v3670, %v4636
      %v4701 = vmul.f32 %v3672, %v4637
      %v4702 = vmul.f32 %v3674, %v4638
      %v4703 = vmul.f32 %v3676, %v4639
      %v4704 = vmul.f32 %v3678, %v4640
      %v4705 = vmul.f32 %v3680, %v4641
      %v4706 = vmul.f32 %v3682, %v4642
      %v4707 = vmul.f32 %v3684, %v4643
      %v4708 = vmul.f32 %v3686, %v4644
      %v4709 = vmul.f32 %v3688, %v4645
      %v4710 = vmul.f32 %v3690, %v4646
      %v4711 = vmul.f32 %v3692, %v4647
      %v4712 = vmul.f32 %v3694, %v4648
      %v4713 = vmul.f32 %v3696, %v4649
      %v4714 = vmul.f32 %v3698, %v4650
      %v4715 = vmul.f32 %v3700, %v4651
      %v4716 = vmul.f32 %v3702, %v4652
      %v4717 = vmul.f32 %v3704, %v4653
      %v4718 = vmul.f32 %v3706, %v4654
      %v4719 = vmul.f32 %v3708, %v4655
      %v4720 = vmul.f32 %v3710, %v4656
      %v4721 = vmul.f32 %v3712, %v4657
      %v4722 = vmul.f32 %v3714, %v4658
      %v4723 = vmul.f32 %v3716, %v4659
      %v4724 = vmul.f32 %v3718, %v4660
      %v4725 = vmul.f32 %v3720, %v4661
      %v4726 = vmul.f32 %v3722, %v4662
      %v4727 = vmul.f32 %v3724, %v4663
      %v4728 = vmul.f32 %v3726, %v4664
      %v4729 = vmul.f32 %v3728, %v4665
      %v4730 = vmul.f32 %v3730, %v4666
      %v4731 = vmul.f32 %v3732, %v4667
      %v4732 = vmul.f32 %v3734, %v4668
      %v4733 = vmul.f32 %v3736, %v4669
      %v4734 = vmul.f32 %v3738, %v4670
      %v4735 = vmul.f32 %v3740, %v4671
      %v4737 = vsel %vm3415, %v4672, 0
      %v4740 = vsel %vm3415, %v4673, 0
      %v4743 = vsel %vm3415, %v4674, 0
      %v4746 = vsel %vm3415, %v4675, 0
      %v4749 = vsel %vm3415, %v4676, 0
      %v4752 = vsel %vm3415, %v4677, 0
      %v4755 = vsel %vm3415, %v4678, 0
      %v4758 = vsel %vm3415, %v4679, 0
      %v4761 = vsel %vm3415, %v4680, 0
      %v4764 = vsel %vm3415, %v4681, 0
      %v4767 = vsel %vm3415, %v4682, 0
      %v4770 = vsel %vm3415, %v4683, 0
      %v4773 = vsel %vm3415, %v4684, 0
      %v4776 = vsel %vm3415, %v4685, 0
      %v4779 = vsel %vm3415, %v4686, 0
      %v4782 = vsel %vm3415, %v4687, 0
      %v4785 = vsel %vm3415, %v4688, 0
      %v4788 = vsel %vm3415, %v4689, 0
      %v4791 = vsel %vm3415, %v4690, 0
      %v4794 = vsel %vm3415, %v4691, 0
      %v4797 = vsel %vm3415, %v4692, 0
      %v4800 = vsel %vm3415, %v4693, 0
      %v4803 = vsel %vm3415, %v4694, 0
      %v4806 = vsel %vm3415, %v4695, 0
      %v4809 = vsel %vm3415, %v4696, 0
      %v4812 = vsel %vm3415, %v4697, 0
      %v4815 = vsel %vm3415, %v4698, 0
      %v4818 = vsel %vm3415, %v4699, 0
      %v4821 = vsel %vm3415, %v4700, 0
      %v4824 = vsel %vm3415, %v4701, 0
      %v4827 = vsel %vm3415, %v4702, 0
      %v4830 = vsel %vm3415, %v4703, 0
      %v4833 = vsel %vm3415, %v4704, 0
      %v4836 = vsel %vm3415, %v4705, 0
      %v4839 = vsel %vm3415, %v4706, 0
      %v4842 = vsel %vm3415, %v4707, 0
      %v4845 = vsel %vm3415, %v4708, 0
      %v4848 = vsel %vm3415, %v4709, 0
      %v4851 = vsel %vm3415, %v4710, 0
      %v4854 = vsel %vm3415, %v4711, 0
      %v4857 = vsel %vm3415, %v4712, 0
      %v4860 = vsel %vm3415, %v4713, 0
      %v4863 = vsel %vm3415, %v4714, 0
      %v4866 = vsel %vm3415, %v4715, 0
      %v4869 = vsel %vm3415, %v4716, 0
      %v4872 = vsel %vm3415, %v4717, 0
      %v4875 = vsel %vm3415, %v4718, 0
      %v4878 = vsel %vm3415, %v4719, 0
      %v4881 = vsel %vm3415, %v4720, 0
      %v4884 = vsel %vm3415, %v4721, 0
      %v4887 = vsel %vm3415, %v4722, 0
      %v4890 = vsel %vm3415, %v4723, 0
      %v4893 = vsel %vm3415, %v4724, 0
      %v4896 = vsel %vm3415, %v4725, 0
      %v4899 = vsel %vm3415, %v4726, 0
      %v4902 = vsel %vm3415, %v4727, 0
      %v4905 = vsel %vm3415, %v4728, 0
      %v4908 = vsel %vm3415, %v4729, 0
      %v4911 = vsel %vm3415, %v4730, 0
      %v4914 = vsel %vm3415, %v4731, 0
      %v4917 = vsel %vm3415, %v4732, 0
      %v4920 = vsel %vm3415, %v4733, 0
      %v4923 = vsel %vm3415, %v4734, 0
      %v4926 = vsel %vm3415, %v4735, 0
      %v4929 = vsel %vm3415, %v1675, 0
      %v4932 = vsel %vm3415, %v1676, 0
      %v4935 = vsel %vm3415, %v1677, 0
      %v4938 = vsel %vm3415, %v1678, 0
      %v4941 = vsel %vm3415, %v1679, 0
      %v4944 = vsel %vm3415, %v1680, 0
      %v4947 = vsel %vm3415, %v1681, 0
      %v4950 = vsel %vm3415, %v1682, 0
      %4952 = vmatprep.subr.mxu0 0.0
      %4953 = vmatpush1.xpose.msra.mxu0 %v4929
      %4954 = vmatprep.subr.mxu0 0.0
      %4955 = vmatpush1.xpose.msra.mxu0 %v4932
      %4956 = vmatprep.subr.mxu0 0.0
      %4957 = vmatpush1.xpose.msra.mxu0 %v4935
      %4958 = vmatprep.subr.mxu0 0.0
      %4959 = vmatpush1.xpose.msra.mxu0 %v4938
      %4960 = vmatprep.subr.mxu0 0.0
      %4961 = vmatpush1.xpose.msra.mxu0 %v4941
      %4962 = vmatprep.subr.mxu0 0.0
      %4963 = vmatpush1.xpose.msra.mxu0 %v4944
      %4964 = vmatprep.subr.mxu0 0.0
      %4965 = vmatpush1.xpose.msra.mxu0 %v4947
      %4966 = vmatprep.subr.mxu0 0.0
      %4967 = vmatpush1.xpose.msra.mxu0 %v4950
      %4968 = vmatprep.subr.mxu0 0.0
      %4969 = vmatpush1.xpose.msra.mxu0 0.0
      %4970 = vmatprep.subr.mxu0 0.0
      %4971 = vmatpush1.xpose.msra.mxu0 0.0
      %4972 = vmatprep.subr.mxu0 0.0
      %4973 = vmatpush1.xpose.msra.mxu0 0.0
      %4974 = vmatprep.subr.mxu0 0.0
      %4975 = vmatpush1.xpose.msra.mxu0 0.0
      %4976 = vmatprep.subr.mxu0 0.0
      %4977 = vmatpush1.xpose.msra.mxu0 0.0
      %4978 = vmatprep.subr.mxu0 0.0
      %4979 = vmatpush1.xpose.msra.mxu0 0.0
      %4980 = vmatprep.subr.mxu0 0.0
      %4981 = vmatpush1.xpose.msra.mxu0 0.0
      %4982 = vmatprep.subr.mxu0 0.0
      %4983 = vmatpush1.xpose.msra.mxu0 0.0
      %4984 = vmatprep.subr.mxu0 0.0
      %4985 = vmatpush1.xpose.msra.mxu0 0.0
      %4986 = vmatprep.subr.mxu0 0.0
      %4987 = vmatpush1.xpose.msra.mxu0 0.0
      %4988 = vmatprep.subr.mxu0 0.0
      %4989 = vmatpush1.xpose.msra.mxu0 0.0
      %4990 = vmatprep.subr.mxu0 0.0
      %4991 = vmatpush1.xpose.msra.mxu0 0.0
      %4992 = vmatprep.subr.mxu0 0.0
      %4993 = vmatpush1.xpose.msra.mxu0 0.0
      %4994 = vmatprep.subr.mxu0 0.0
      %4995 = vmatpush1.xpose.msra.mxu0 0.0
      %4996 = vmatprep.subr.mxu0 0.0
      %4997 = vmatpush1.xpose.msra.mxu0 0.0
      %4998 = vmatprep.subr.mxu0 0.0
      %4999 = vmatpush1.xpose.msra.mxu0 0.0
      %5000 = vmatprep.subr.mxu0 0.0
      %5001 = vmatpush1.xpose.msra.mxu0 0.0
      %5002 = vmatprep.subr.mxu0 0.0
      %5003 = vmatpush1.xpose.msra.mxu0 0.0
      %5004 = vmatprep.subr.mxu0 0.0
      %5005 = vmatpush1.xpose.msra.mxu0 0.0
      %5006 = vmatprep.subr.mxu0 0.0
      %5007 = vmatpush1.xpose.msra.mxu0 0.0
      %5008 = vmatprep.subr.mxu0 0.0
      %5009 = vmatpush1.xpose.msra.mxu0 0.0
      %5010 = vmatprep.subr.mxu0 0.0
      %5011 = vmatpush1.xpose.msra.mxu0 0.0
      %5012 = vmatprep.subr.mxu0 0.0
      %5013 = vmatpush1.xpose.msra.mxu0 0.0
      %5014 = vmatprep.subr.mxu0 0.0
      %5015 = vmatpush1.xpose.msra.mxu0 0.0
      %5016 = vmatprep.mubr.f32.mxu0 0.0
      %5017 = vmatmul.mubr.f32.gmra.mrb[0].mxu0 %v4737
      %v5018 = vpop.f32.mrb[0].mxu0
      %v5019 = vadd.f32 0.0, %v5018
      %v5020 = vpop.f32.mrb[0].mxu0
      %5021 = vmatprep.mubr.f32.mxu0 0.0
      %5022 = vmatmul.mubr.f32.gmra.mrb[0].mxu0 %v4740
      %v5023 = vpop.f32.mrb[0].mxu0
      %v5024 = vadd.f32 0.0, %v5023
      %v5025 = vpop.f32.mrb[0].mxu0
      %5026 = vmatprep.mubr.f32.mxu0 0.0
      %5027 = vmatmul.mubr.f32.gmra.mrb[0].mxu0 %v4743
      %v5028 = vpop.f32.mrb[0].mxu0
      %v5029 = vadd.f32 0.0, %v5028
      %v5030 = vpop.f32.mrb[0].mxu0
      %5031 = vmatprep.mubr.f32.mxu0 0.0
      %5032 = vmatmul.mubr.f32.gmra.mrb[0].mxu0 %v4746
      %v5033 = vpop.f32.mrb[0].mxu0
      %v5034 = vadd.f32 0.0, %v5033
      %v5035 = vpop.f32.mrb[0].mxu0
      %5036 = vmatprep.mubr.f32.mxu0 0.0
      %5037 = vmatmul.mubr.f32.gmra.mrb[0].mxu0 %v4749
      %v5038 = vpop.f32.mrb[0].mxu0
      %v5039 = vadd.f32 0.0, %v5038
      %v5040 = vpop.f32.mrb[0].mxu0
      %5041 = vmatprep.mubr.f32.mxu0 0.0
      %5042 = vmatmul.mubr.f32.gmra.mrb[0].mxu0 %v4752
      %v5043 = vpop.f32.mrb[0].mxu0
      %v5044 = vadd.f32 0.0, %v5043
      %v5045 = vpop.f32.mrb[0].mxu0
      %5046 = vmatprep.mubr.f32.mxu0 0.0
      %5047 = vmatmul.mubr.f32.gmra.mrb[0].mxu0 %v4755
      %v5048 = vpop.f32.mrb[0].mxu0
      %v5049 = vadd.f32 0.0, %v5048
      %v5050 = vpop.f32.mrb[0].mxu0
      %5051 = vmatprep.mubr.f32.mxu0 0.0
      %5052 = vmatmul.mubr.f32.gmra.mrb[0].mxu0 %v4758
      %v5053 = vpop.f32.mrb[0].mxu0
      %v5054 = vadd.f32 0.0, %v5053
      %v5055 = vpop.f32.mrb[0].mxu0
      %5056 = vmatprep.mubr.f32.mxu0 0.0
      %5057 = vmatmul.mubr.f32.gmra.mrb[0].mxu0 %v4761
      %v5058 = vpop.f32.mrb[0].mxu0
      %v5059 = vadd.f32 0.0, %v5058
      %v5060 = vpop.f32.mrb[0].mxu0
      %5061 = vmatprep.mubr.f32.mxu0 0.0
      %5062 = vmatmul.mubr.f32.gmra.mrb[0].mxu0 %v4764
      %v5063 = vpop.f32.mrb[0].mxu0
      %v5064 = vadd.f32 0.0, %v5063
      %v5065 = vpop.f32.mrb[0].mxu0
      %5066 = vmatprep.mubr.f32.mxu0 0.0
      %5067 = vmatmul.mubr.f32.gmra.mrb[0].mxu0 %v4767
      %v5068 = vpop.f32.mrb[0].mxu0
      %v5069 = vadd.f32 0.0, %v5068
      %v5070 = vpop.f32.mrb[0].mxu0
      %5071 = vmatprep.mubr.f32.mxu0 0.0
      %5072 = vmatmul.mubr.f32.gmra.mrb[0].mxu0 %v4770
      %v5073 = vpop.f32.mrb[0].mxu0
      %v5074 = vadd.f32 0.0, %v5073
      %v5075 = vpop.f32.mrb[0].mxu0
      %5076 = vmatprep.mubr.f32.mxu0 0.0
      %5077 = vmatmul.mubr.f32.gmra.mrb[0].mxu0 %v4773
      %v5078 = vpop.f32.mrb[0].mxu0
      %v5079 = vadd.f32 0.0, %v5078
      %v5080 = vpop.f32.mrb[0].mxu0
      %5081 = vmatprep.mubr.f32.mxu0 0.0
      %5082 = vmatmul.mubr.f32.gmra.mrb[0].mxu0 %v4776
      %v5083 = vpop.f32.mrb[0].mxu0
      %v5084 = vadd.f32 0.0, %v5083
      %v5085 = vpop.f32.mrb[0].mxu0
      %5086 = vmatprep.mubr.f32.mxu0 0.0
      %5087 = vmatmul.mubr.f32.gmra.mrb[0].mxu0 %v4779
      %v5088 = vpop.f32.mrb[0].mxu0
      %v5089 = vadd.f32 0.0, %v5088
      %v5090 = vpop.f32.mrb[0].mxu0
      %5091 = vmatprep.mubr.f32.mxu0 0.0
      %5092 = vmatmul.mubr.f32.gmra.mrb[0].mxu0 %v4782
      %v5093 = vpop.f32.mrb[0].mxu0
      %v5094 = vadd.f32 0.0, %v5093
      %v5095 = vpop.f32.mrb[0].mxu0
      %5096 = vmatprep.mubr.f32.mxu0 0.0
      %5097 = vmatmul.mubr.f32.gmra.mrb[0].mxu0 %v4785
      %v5098 = vpop.f32.mrb[0].mxu0
      %v5099 = vadd.f32 0.0, %v5098
      %v5100 = vpop.f32.mrb[0].mxu0
      %5101 = vmatprep.mubr.f32.mxu0 0.0
      %5102 = vmatmul.mubr.f32.gmra.mrb[0].mxu0 %v4788
      %v5103 = vpop.f32.mrb[0].mxu0
      %v5104 = vadd.f32 0.0, %v5103
      %v5105 = vpop.f32.mrb[0].mxu0
      %5106 = vmatprep.mubr.f32.mxu0 0.0
      %5107 = vmatmul.mubr.f32.gmra.mrb[0].mxu0 %v4791
      %v5108 = vpop.f32.mrb[0].mxu0
      %v5109 = vadd.f32 0.0, %v5108
      %v5110 = vpop.f32.mrb[0].mxu0
      %5111 = vmatprep.mubr.f32.mxu0 0.0
      %5112 = vmatmul.mubr.f32.gmra.mrb[0].mxu0 %v4794
      %v5113 = vpop.f32.mrb[0].mxu0
      %v5114 = vadd.f32 0.0, %v5113
      %v5115 = vpop.f32.mrb[0].mxu0
      %5116 = vmatprep.mubr.f32.mxu0 0.0
      %5117 = vmatmul.mubr.f32.gmra.mrb[0].mxu0 %v4797
      %v5118 = vpop.f32.mrb[0].mxu0
      %v5119 = vadd.f32 0.0, %v5118
      %v5120 = vpop.f32.mrb[0].mxu0
      %5121 = vmatprep.mubr.f32.mxu0 0.0
      %5122 = vmatmul.mubr.f32.gmra.mrb[0].mxu0 %v4800
      %v5123 = vpop.f32.mrb[0].mxu0
      %v5124 = vadd.f32 0.0, %v5123
      %v5125 = vpop.f32.mrb[0].mxu0
      %5126 = vmatprep.mubr.f32.mxu0 0.0
      %5127 = vmatmul.mubr.f32.gmra.mrb[0].mxu0 %v4803
      %v5128 = vpop.f32.mrb[0].mxu0
      %v5129 = vadd.f32 0.0, %v5128
      %v5130 = vpop.f32.mrb[0].mxu0
      %5131 = vmatprep.mubr.f32.mxu0 0.0
      %5132 = vmatmul.mubr.f32.gmra.mrb[0].mxu0 %v4806
      %v5133 = vpop.f32.mrb[0].mxu0
      %v5134 = vadd.f32 0.0, %v5133
      %v5135 = vpop.f32.mrb[0].mxu0
      %5136 = vmatprep.mubr.f32.mxu0 0.0
      %5137 = vmatmul.mubr.f32.gmra.mrb[0].mxu0 %v4809
      %v5138 = vpop.f32.mrb[0].mxu0
      %v5139 = vadd.f32 0.0, %v5138
      %v5140 = vpop.f32.mrb[0].mxu0
      %5141 = vmatprep.mubr.f32.mxu0 0.0
      %5142 = vmatmul.mubr.f32.gmra.mrb[0].mxu0 %v4812
      %v5143 = vpop.f32.mrb[0].mxu0
      %v5144 = vadd.f32 0.0, %v5143
      %v5145 = vpop.f32.mrb[0].mxu0
      %5146 = vmatprep.mubr.f32.mxu0 0.0
      %5147 = vmatmul.mubr.f32.gmra.mrb[0].mxu0 %v4815
      %v5148 = vpop.f32.mrb[0].mxu0
      %v5149 = vadd.f32 0.0, %v5148
      %v5150 = vpop.f32.mrb[0].mxu0
      %5151 = vmatprep.mubr.f32.mxu0 0.0
      %5152 = vmatmul.mubr.f32.gmra.mrb[0].mxu0 %v4818
      %v5153 = vpop.f32.mrb[0].mxu0
      %v5154 = vadd.f32 0.0, %v5153
      %v5155 = vpop.f32.mrb[0].mxu0
      %5156 = vmatprep.mubr.f32.mxu0 0.0
      %5157 = vmatmul.mubr.f32.gmra.mrb[0].mxu0 %v4821
      %v5158 = vpop.f32.mrb[0].mxu0
      %v5159 = vadd.f32 0.0, %v5158
      %v5160 = vpop.f32.mrb[0].mxu0
      %5161 = vmatprep.mubr.f32.mxu0 0.0
      %5162 = vmatmul.mubr.f32.gmra.mrb[0].mxu0 %v4824
      %v5163 = vpop.f32.mrb[0].mxu0
      %v5164 = vadd.f32 0.0, %v5163
      %v5165 = vpop.f32.mrb[0].mxu0
      %5166 = vmatprep.mubr.f32.mxu0 0.0
      %5167 = vmatmul.mubr.f32.gmra.mrb[0].mxu0 %v4827
      %v5168 = vpop.f32.mrb[0].mxu0
      %v5169 = vadd.f32 0.0, %v5168
      %v5170 = vpop.f32.mrb[0].mxu0
      %5171 = vmatprep.mubr.f32.mxu0 0.0
      %5172 = vmatmul.mubr.f32.gmra.mrb[0].mxu0 %v4830
      %v5173 = vpop.f32.mrb[0].mxu0
      %v5174 = vadd.f32 0.0, %v5173
      %v5175 = vpop.f32.mrb[0].mxu0
      %5176 = vmatprep.mubr.f32.mxu0 0.0
      %5177 = vmatmul.mubr.f32.gmra.mrb[0].mxu0 %v4833
      %v5178 = vpop.f32.mrb[0].mxu0
      %v5179 = vadd.f32 0.0, %v5178
      %v5180 = vpop.f32.mrb[0].mxu0
      %5181 = vmatprep.mubr.f32.mxu0 0.0
      %5182 = vmatmul.mubr.f32.gmra.mrb[0].mxu0 %v4836
      %v5183 = vpop.f32.mrb[0].mxu0
      %v5184 = vadd.f32 0.0, %v5183
      %v5185 = vpop.f32.mrb[0].mxu0
      %5186 = vmatprep.mubr.f32.mxu0 0.0
      %5187 = vmatmul.mubr.f32.gmra.mrb[0].mxu0 %v4839
      %v5188 = vpop.f32.mrb[0].mxu0
      %v5189 = vadd.f32 0.0, %v5188
      %v5190 = vpop.f32.mrb[0].mxu0
      %5191 = vmatprep.mubr.f32.mxu0 0.0
      %5192 = vmatmul.mubr.f32.gmra.mrb[0].mxu0 %v4842
      %v5193 = vpop.f32.mrb[0].mxu0
      %v5194 = vadd.f32 0.0, %v5193
      %v5195 = vpop.f32.mrb[0].mxu0
      %5196 = vmatprep.mubr.f32.mxu0 0.0
      %5197 = vmatmul.mubr.f32.gmra.mrb[0].mxu0 %v4845
      %v5198 = vpop.f32.mrb[0].mxu0
      %v5199 = vadd.f32 0.0, %v5198
      %v5200 = vpop.f32.mrb[0].mxu0
      %5201 = vmatprep.mubr.f32.mxu0 0.0
      %5202 = vmatmul.mubr.f32.gmra.mrb[0].mxu0 %v4848
      %v5203 = vpop.f32.mrb[0].mxu0
      %v5204 = vadd.f32 0.0, %v5203
      %v5205 = vpop.f32.mrb[0].mxu0
      %5206 = vmatprep.mubr.f32.mxu0 0.0
      %5207 = vmatmul.mubr.f32.gmra.mrb[0].mxu0 %v4851
      %v5208 = vpop.f32.mrb[0].mxu0
      %v5209 = vadd.f32 0.0, %v5208
      %v5210 = vpop.f32.mrb[0].mxu0
      %5211 = vmatprep.mubr.f32.mxu0 0.0
      %5212 = vmatmul.mubr.f32.gmra.mrb[0].mxu0 %v4854
      %v5213 = vpop.f32.mrb[0].mxu0
      %v5214 = vadd.f32 0.0, %v5213
      %v5215 = vpop.f32.mrb[0].mxu0
      %5216 = vmatprep.mubr.f32.mxu0 0.0
      %5217 = vmatmul.mubr.f32.gmra.mrb[0].mxu0 %v4857
      %v5218 = vpop.f32.mrb[0].mxu0
      %v5219 = vadd.f32 0.0, %v5218
      %v5220 = vpop.f32.mrb[0].mxu0
      %5221 = vmatprep.mubr.f32.mxu0 0.0
      %5222 = vmatmul.mubr.f32.gmra.mrb[0].mxu0 %v4860
      %v5223 = vpop.f32.mrb[0].mxu0
      %v5224 = vadd.f32 0.0, %v5223
      %v5225 = vpop.f32.mrb[0].mxu0
      %5226 = vmatprep.mubr.f32.mxu0 0.0
      %5227 = vmatmul.mubr.f32.gmra.mrb[0].mxu0 %v4863
      %v5228 = vpop.f32.mrb[0].mxu0
      %v5229 = vadd.f32 0.0, %v5228
      %v5230 = vpop.f32.mrb[0].mxu0
      %5231 = vmatprep.mubr.f32.mxu0 0.0
      %5232 = vmatmul.mubr.f32.gmra.mrb[0].mxu0 %v4866
      %v5233 = vpop.f32.mrb[0].mxu0
      %v5234 = vadd.f32 0.0, %v5233
      %v5235 = vpop.f32.mrb[0].mxu0
      %5236 = vmatprep.mubr.f32.mxu0 0.0
      %5237 = vmatmul.mubr.f32.gmra.mrb[0].mxu0 %v4869
      %v5238 = vpop.f32.mrb[0].mxu0
      %v5239 = vadd.f32 0.0, %v5238
      %v5240 = vpop.f32.mrb[0].mxu0
      %5241 = vmatprep.mubr.f32.mxu0 0.0
      %5242 = vmatmul.mubr.f32.gmra.mrb[0].mxu0 %v4872
      %v5243 = vpop.f32.mrb[0].mxu0
      %v5244 = vadd.f32 0.0, %v5243
      %v5245 = vpop.f32.mrb[0].mxu0
      %5246 = vmatprep.mubr.f32.mxu0 0.0
      %5247 = vmatmul.mubr.f32.gmra.mrb[0].mxu0 %v4875
      %v5248 = vpop.f32.mrb[0].mxu0
      %v5249 = vadd.f32 0.0, %v5248
      %v5250 = vpop.f32.mrb[0].mxu0
      %5251 = vmatprep.mubr.f32.mxu0 0.0
      %5252 = vmatmul.mubr.f32.gmra.mrb[0].mxu0 %v4878
      %v5253 = vpop.f32.mrb[0].mxu0
      %v5254 = vadd.f32 0.0, %v5253
      %v5255 = vpop.f32.mrb[0].mxu0
      %5256 = vmatprep.mubr.f32.mxu0 0.0
      %5257 = vmatmul.mubr.f32.gmra.mrb[0].mxu0 %v4881
      %v5258 = vpop.f32.mrb[0].mxu0
      %v5259 = vadd.f32 0.0, %v5258
      %v5260 = vpop.f32.mrb[0].mxu0
      %5261 = vmatprep.mubr.f32.mxu0 0.0
      %5262 = vmatmul.mubr.f32.gmra.mrb[0].mxu0 %v4884
      %v5263 = vpop.f32.mrb[0].mxu0
      %v5264 = vadd.f32 0.0, %v5263
      %v5265 = vpop.f32.mrb[0].mxu0
      %5266 = vmatprep.mubr.f32.mxu0 0.0
      %5267 = vmatmul.mubr.f32.gmra.mrb[0].mxu0 %v4887
      %v5268 = vpop.f32.mrb[0].mxu0
      %v5269 = vadd.f32 0.0, %v5268
      %v5270 = vpop.f32.mrb[0].mxu0
      %5271 = vmatprep.mubr.f32.mxu0 0.0
      %5272 = vmatmul.mubr.f32.gmra.mrb[0].mxu0 %v4890
      %v5273 = vpop.f32.mrb[0].mxu0
      %v5274 = vadd.f32 0.0, %v5273
      %v5275 = vpop.f32.mrb[0].mxu0
      %5276 = vmatprep.mubr.f32.mxu0 0.0
      %5277 = vmatmul.mubr.f32.gmra.mrb[0].mxu0 %v4893
      %v5278 = vpop.f32.mrb[0].mxu0
      %v5279 = vadd.f32 0.0, %v5278
      %v5280 = vpop.f32.mrb[0].mxu0
      %5281 = vmatprep.mubr.f32.mxu0 0.0
      %5282 = vmatmul.mubr.f32.gmra.mrb[0].mxu0 %v4896
      %v5283 = vpop.f32.mrb[0].mxu0
      %v5284 = vadd.f32 0.0, %v5283
      %v5285 = vpop.f32.mrb[0].mxu0
      %5286 = vmatprep.mubr.f32.mxu0 0.0
      %5287 = vmatmul.mubr.f32.gmra.mrb[0].mxu0 %v4899
      %v5288 = vpop.f32.mrb[0].mxu0
      %v5289 = vadd.f32 0.0, %v5288
      %v5290 = vpop.f32.mrb[0].mxu0
      %5291 = vmatprep.mubr.f32.mxu0 0.0
      %5292 = vmatmul.mubr.f32.gmra.mrb[0].mxu0 %v4902
      %v5293 = vpop.f32.mrb[0].mxu0
      %v5294 = vadd.f32 0.0, %v5293
      %v5295 = vpop.f32.mrb[0].mxu0
      %5296 = vmatprep.mubr.f32.mxu0 0.0
      %5297 = vmatmul.mubr.f32.gmra.mrb[0].mxu0 %v4905
      %v5298 = vpop.f32.mrb[0].mxu0
      %v5299 = vadd.f32 0.0, %v5298
      %v5300 = vpop.f32.mrb[0].mxu0
      %5301 = vmatprep.mubr.f32.mxu0 0.0
      %5302 = vmatmul.mubr.f32.gmra.mrb[0].mxu0 %v4908
      %v5303 = vpop.f32.mrb[0].mxu0
      %v5304 = vadd.f32 0.0, %v5303
      %v5305 = vpop.f32.mrb[0].mxu0
      %5306 = vmatprep.mubr.f32.mxu0 0.0
      %5307 = vmatmul.mubr.f32.gmra.mrb[0].mxu0 %v4911
      %v5308 = vpop.f32.mrb[0].mxu0
      %v5309 = vadd.f32 0.0, %v5308
      %v5310 = vpop.f32.mrb[0].mxu0
      %5311 = vmatprep.mubr.f32.mxu0 0.0
      %5312 = vmatmul.mubr.f32.gmra.mrb[0].mxu0 %v4914
      %v5313 = vpop.f32.mrb[0].mxu0
      %v5314 = vadd.f32 0.0, %v5313
      %v5315 = vpop.f32.mrb[0].mxu0
      %5316 = vmatprep.mubr.f32.mxu0 0.0
      %5317 = vmatmul.mubr.f32.gmra.mrb[0].mxu0 %v4917
      %v5318 = vpop.f32.mrb[0].mxu0
      %v5319 = vadd.f32 0.0, %v5318
      %v5320 = vpop.f32.mrb[0].mxu0
      %5321 = vmatprep.mubr.f32.mxu0 0.0
      %5322 = vmatmul.mubr.f32.gmra.mrb[0].mxu0 %v4920
      %v5323 = vpop.f32.mrb[0].mxu0
      %v5324 = vadd.f32 0.0, %v5323
      %v5325 = vpop.f32.mrb[0].mxu0
      %5326 = vmatprep.mubr.f32.mxu0 0.0
      %5327 = vmatmul.mubr.f32.gmra.mrb[0].mxu0 %v4923
      %v5328 = vpop.f32.mrb[0].mxu0
      %v5329 = vadd.f32 0.0, %v5328
      %v5330 = vpop.f32.mrb[0].mxu0
      %5331 = vmatprep.mubr.f32.mxu0 0.0
      %5332 = vmatmul.mubr.f32.gmra.mrb[0].mxu0 %v4926
      %v5333 = vpop.f32.mrb[0].mxu0
      %v5334 = vadd.f32 0.0, %v5333
      %v5335 = vpop.f32.mrb[0].mxu0
      %5336 = vdwg.mxu0
      %5401 = vrot.lane.b32.xlu0 %v2391, 64
      %v5402 = vpop.permute.xlu0 %5401
      %5403 = vrot.lane.b32.xlu0 %v2396, 64
      %v5404 = vpop.permute.xlu0 %5403
      %5405 = vrot.lane.b32.xlu0 %v2401, 64
      %v5406 = vpop.permute.xlu0 %5405
      %5407 = vrot.lane.b32.xlu0 %v2406, 64
      %v5408 = vpop.permute.xlu0 %5407
      %5409 = vrot.lane.b32.xlu0 %v2411, 64
      %v5410 = vpop.permute.xlu0 %5409
      %5411 = vrot.lane.b32.xlu0 %v2416, 64
      %v5412 = vpop.permute.xlu0 %5411
      %5413 = vrot.lane.b32.xlu0 %v2421, 64
      %v5414 = vpop.permute.xlu0 %5413
      %5415 = vrot.lane.b32.xlu0 %v2426, 64
      %v5416 = vpop.permute.xlu0 %5415
      %5417 = vrot.lane.b32.xlu0 %v2431, 64
      %v5418 = vpop.permute.xlu0 %5417
      %5419 = vrot.lane.b32.xlu0 %v2436, 64
      %v5420 = vpop.permute.xlu0 %5419
      %5421 = vrot.lane.b32.xlu0 %v2441, 64
      %v5422 = vpop.permute.xlu0 %5421
      %5423 = vrot.lane.b32.xlu0 %v2446, 64
      %v5424 = vpop.permute.xlu0 %5423
      %5425 = vrot.lane.b32.xlu0 %v2451, 64
      %v5426 = vpop.permute.xlu0 %5425
      %5427 = vrot.lane.b32.xlu0 %v2456, 64
      %v5428 = vpop.permute.xlu0 %5427
      %5429 = vrot.lane.b32.xlu0 %v2461, 64
      %v5430 = vpop.permute.xlu0 %5429
      %5431 = vrot.lane.b32.xlu0 %v2466, 64
      %v5432 = vpop.permute.xlu0 %5431
      %5433 = vrot.lane.b32.xlu0 %v2471, 64
      %v5434 = vpop.permute.xlu0 %5433
      %5435 = vrot.lane.b32.xlu0 %v2476, 64
      %v5436 = vpop.permute.xlu0 %5435
      %5437 = vrot.lane.b32.xlu0 %v2481, 64
      %v5438 = vpop.permute.xlu0 %5437
      %5439 = vrot.lane.b32.xlu0 %v2486, 64
      %v5440 = vpop.permute.xlu0 %5439
      %5441 = vrot.lane.b32.xlu0 %v2491, 64
      %v5442 = vpop.permute.xlu0 %5441
      %5443 = vrot.lane.b32.xlu0 %v2496, 64
      %v5444 = vpop.permute.xlu0 %5443
      %5445 = vrot.lane.b32.xlu0 %v2501, 64
      %v5446 = vpop.permute.xlu0 %5445
      %5447 = vrot.lane.b32.xlu0 %v2506, 64
      %v5448 = vpop.permute.xlu0 %5447
      %5449 = vrot.lane.b32.xlu0 %v2511, 64
      %v5450 = vpop.permute.xlu0 %5449
      %5451 = vrot.lane.b32.xlu0 %v2516, 64
      %v5452 = vpop.permute.xlu0 %5451
      %5453 = vrot.lane.b32.xlu0 %v2521, 64
      %v5454 = vpop.permute.xlu0 %5453
      %5455 = vrot.lane.b32.xlu0 %v2526, 64
      %v5456 = vpop.permute.xlu0 %5455
      %5457 = vrot.lane.b32.xlu0 %v2531, 64
      %v5458 = vpop.permute.xlu0 %5457
      %5459 = vrot.lane.b32.xlu0 %v2536, 64
      %v5460 = vpop.permute.xlu0 %5459
      %5461 = vrot.lane.b32.xlu0 %v2541, 64
      %v5462 = vpop.permute.xlu0 %5461
      %5463 = vrot.lane.b32.xlu0 %v2546, 64
      %v5464 = vpop.permute.xlu0 %5463
      %5465 = vrot.lane.b32.xlu0 %v2551, 64
      %v5466 = vpop.permute.xlu0 %5465
      %5467 = vrot.lane.b32.xlu0 %v2556, 64
      %v5468 = vpop.permute.xlu0 %5467
      %5469 = vrot.lane.b32.xlu0 %v2561, 64
      %v5470 = vpop.permute.xlu0 %5469
      %5471 = vrot.lane.b32.xlu0 %v2566, 64
      %v5472 = vpop.permute.xlu0 %5471
      %5473 = vrot.lane.b32.xlu0 %v2571, 64
      %v5474 = vpop.permute.xlu0 %5473
      %5475 = vrot.lane.b32.xlu0 %v2576, 64
      %v5476 = vpop.permute.xlu0 %5475
      %5477 = vrot.lane.b32.xlu0 %v2581, 64
      %v5478 = vpop.permute.xlu0 %5477
      %5479 = vrot.lane.b32.xlu0 %v2586, 64
      %v5480 = vpop.permute.xlu0 %5479
      %5481 = vrot.lane.b32.xlu0 %v2591, 64
      %v5482 = vpop.permute.xlu0 %5481
      %5483 = vrot.lane.b32.xlu0 %v2596, 64
      %v5484 = vpop.permute.xlu0 %5483
      %5485 = vrot.lane.b32.xlu0 %v2601, 64
      %v5486 = vpop.permute.xlu0 %5485
      %5487 = vrot.lane.b32.xlu0 %v2606, 64
      %v5488 = vpop.permute.xlu0 %5487
      %5489 = vrot.lane.b32.xlu0 %v2611, 64
      %v5490 = vpop.permute.xlu0 %5489
      %5491 = vrot.lane.b32.xlu0 %v2616, 64
      %v5492 = vpop.permute.xlu0 %5491
      %5493 = vrot.lane.b32.xlu0 %v2621, 64
      %v5494 = vpop.permute.xlu0 %5493
      %5495 = vrot.lane.b32.xlu0 %v2626, 64
      %v5496 = vpop.permute.xlu0 %5495
      %5497 = vrot.lane.b32.xlu0 %v2631, 64
      %v5498 = vpop.permute.xlu0 %5497
      %5499 = vrot.lane.b32.xlu0 %v2636, 64
      %v5500 = vpop.permute.xlu0 %5499
      %5501 = vrot.lane.b32.xlu0 %v2641, 64
      %v5502 = vpop.permute.xlu0 %5501
      %5503 = vrot.lane.b32.xlu0 %v2646, 64
      %v5504 = vpop.permute.xlu0 %5503
      %5505 = vrot.lane.b32.xlu0 %v2651, 64
      %v5506 = vpop.permute.xlu0 %5505
      %5507 = vrot.lane.b32.xlu0 %v2656, 64
      %v5508 = vpop.permute.xlu0 %5507
      %5509 = vrot.lane.b32.xlu0 %v2661, 64
      %v5510 = vpop.permute.xlu0 %5509
      %5511 = vrot.lane.b32.xlu0 %v2666, 64
      %v5512 = vpop.permute.xlu0 %5511
      %5513 = vrot.lane.b32.xlu0 %v2671, 64
      %v5514 = vpop.permute.xlu0 %5513
      %5515 = vrot.lane.b32.xlu0 %v2676, 64
      %v5516 = vpop.permute.xlu0 %5515
      %5517 = vrot.lane.b32.xlu0 %v2681, 64
      %v5518 = vpop.permute.xlu0 %5517
      %5519 = vrot.lane.b32.xlu0 %v2686, 64
      %v5520 = vpop.permute.xlu0 %5519
      %5521 = vrot.lane.b32.xlu0 %v2691, 64
      %v5522 = vpop.permute.xlu0 %5521
      %5523 = vrot.lane.b32.xlu0 %v2696, 64
      %v5524 = vpop.permute.xlu0 %5523
      %5525 = vrot.lane.b32.xlu0 %v2701, 64
      %v5526 = vpop.permute.xlu0 %5525
      %5527 = vrot.lane.b32.xlu0 %v2706, 64
      %v5528 = vpop.permute.xlu0 %5527
      %v5593 = vmul.f32 %v5019, %v5402
      %v5594 = vmul.f32 %v5024, %v5404
      %v5595 = vmul.f32 %v5029, %v5406
      %v5596 = vmul.f32 %v5034, %v5408
      %v5597 = vmul.f32 %v5039, %v5410
      %v5598 = vmul.f32 %v5044, %v5412
      %v5599 = vmul.f32 %v5049, %v5414
      %v5600 = vmul.f32 %v5054, %v5416
      %v5601 = vmul.f32 %v5059, %v5418
      %v5602 = vmul.f32 %v5064, %v5420
      %v5603 = vmul.f32 %v5069, %v5422
      %v5604 = vmul.f32 %v5074, %v5424
      %v5605 = vmul.f32 %v5079, %v5426
      %v5606 = vmul.f32 %v5084, %v5428
      %v5607 = vmul.f32 %v5089, %v5430
      %v5608 = vmul.f32 %v5094, %v5432
      %v5609 = vmul.f32 %v5099, %v5434
      %v5610 = vmul.f32 %v5104, %v5436
      %v5611 = vmul.f32 %v5109, %v5438
      %v5612 = vmul.f32 %v5114, %v5440
      %v5613 = vmul.f32 %v5119, %v5442
      %v5614 = vmul.f32 %v5124, %v5444
      %v5615 = vmul.f32 %v5129, %v5446
      %v5616 = vmul.f32 %v5134, %v5448
      %v5617 = vmul.f32 %v5139, %v5450
      %v5618 = vmul.f32 %v5144, %v5452
      %v5619 = vmul.f32 %v5149, %v5454
      %v5620 = vmul.f32 %v5154, %v5456
      %v5621 = vmul.f32 %v5159, %v5458
      %v5622 = vmul.f32 %v5164, %v5460
      %v5623 = vmul.f32 %v5169, %v5462
      %v5624 = vmul.f32 %v5174, %v5464
      %v5625 = vmul.f32 %v5179, %v5466
      %v5626 = vmul.f32 %v5184, %v5468
      %v5627 = vmul.f32 %v5189, %v5470
      %v5628 = vmul.f32 %v5194, %v5472
      %v5629 = vmul.f32 %v5199, %v5474
      %v5630 = vmul.f32 %v5204, %v5476
      %v5631 = vmul.f32 %v5209, %v5478
      %v5632 = vmul.f32 %v5214, %v5480
      %v5633 = vmul.f32 %v5219, %v5482
      %v5634 = vmul.f32 %v5224, %v5484
      %v5635 = vmul.f32 %v5229, %v5486
      %v5636 = vmul.f32 %v5234, %v5488
      %v5637 = vmul.f32 %v5239, %v5490
      %v5638 = vmul.f32 %v5244, %v5492
      %v5639 = vmul.f32 %v5249, %v5494
      %v5640 = vmul.f32 %v5254, %v5496
      %v5641 = vmul.f32 %v5259, %v5498
      %v5642 = vmul.f32 %v5264, %v5500
      %v5643 = vmul.f32 %v5269, %v5502
      %v5644 = vmul.f32 %v5274, %v5504
      %v5645 = vmul.f32 %v5279, %v5506
      %v5646 = vmul.f32 %v5284, %v5508
      %v5647 = vmul.f32 %v5289, %v5510
      %v5648 = vmul.f32 %v5294, %v5512
      %v5649 = vmul.f32 %v5299, %v5514
      %v5650 = vmul.f32 %v5304, %v5516
      %v5651 = vmul.f32 %v5309, %v5518
      %v5652 = vmul.f32 %v5314, %v5520
      %v5653 = vmul.f32 %v5319, %v5522
      %v5654 = vmul.f32 %v5324, %v5524
      %v5655 = vmul.f32 %v5329, %v5526
      %v5656 = vmul.f32 %v5334, %v5528
      %5673 = vrot.lane.b32.xlu0 %v473, 64
      %v5674 = vpop.permute.xlu0 %5673
      %5675 = vrot.lane.b32.xlu0 %v479, 64
      %v5676 = vpop.permute.xlu0 %5675
      %5677 = vrot.lane.b32.xlu0 %v485, 64
      %v5678 = vpop.permute.xlu0 %5677
      %5679 = vrot.lane.b32.xlu0 %v491, 64
      %v5680 = vpop.permute.xlu0 %5679
      %5681 = vrot.lane.b32.xlu0 %v497, 64
      %v5682 = vpop.permute.xlu0 %5681
      %5683 = vrot.lane.b32.xlu0 %v503, 64
      %v5684 = vpop.permute.xlu0 %5683
      %5685 = vrot.lane.b32.xlu0 %v509, 64
      %v5686 = vpop.permute.xlu0 %5685
      %5687 = vrot.lane.b32.xlu0 %v515, 64
      %v5688 = vpop.permute.xlu0 %5687
      %5689 = vrot.lane.b32.xlu0 %v521, 64
      %v5690 = vpop.permute.xlu0 %5689
      %5691 = vrot.lane.b32.xlu0 %v527, 64
      %v5692 = vpop.permute.xlu0 %5691
      %5693 = vrot.lane.b32.xlu0 %v533, 64
      %v5694 = vpop.permute.xlu0 %5693
      %5695 = vrot.lane.b32.xlu0 %v539, 64
      %v5696 = vpop.permute.xlu0 %5695
      %5697 = vrot.lane.b32.xlu0 %v545, 64
      %v5698 = vpop.permute.xlu0 %5697
      %5699 = vrot.lane.b32.xlu0 %v551, 64
      %v5700 = vpop.permute.xlu0 %5699
      %5701 = vrot.lane.b32.xlu0 %v557, 64
      %v5702 = vpop.permute.xlu0 %5701
      %5703 = vrot.lane.b32.xlu0 %v563, 64
      %v5704 = vpop.permute.xlu0 %5703
      %5721 = vmatprep.subr.mxu0 0.0
      %5722 = vmatpush1.msra.mxu0 %v5593
      %5723 = vmatprep.subr.mxu0 0.0
      %5724 = vmatpush1.msra.mxu0 %v5594
      %5725 = vmatprep.subr.mxu0 0.0
      %5726 = vmatpush1.msra.mxu0 %v5595
      %5727 = vmatprep.subr.mxu0 0.0
      %5728 = vmatpush1.msra.mxu0 %v5596
      %5729 = vmatprep.subr.mxu0 0.0
      %5730 = vmatpush1.msra.mxu0 %v5597
      %5731 = vmatprep.subr.mxu0 0.0
      %5732 = vmatpush1.msra.mxu0 %v5598
      %5733 = vmatprep.subr.mxu0 0.0
      %5734 = vmatpush1.msra.mxu0 %v5599
      %5735 = vmatprep.subr.mxu0 0.0
      %5736 = vmatpush1.msra.mxu0 %v5600
      %5737 = vmatprep.subr.mxu0 0.0
      %5738 = vmatpush1.msra.mxu0 %v5601
      %5739 = vmatprep.subr.mxu0 0.0
      %5740 = vmatpush1.msra.mxu0 %v5602
      %5741 = vmatprep.subr.mxu0 0.0
      %5742 = vmatpush1.msra.mxu0 %v5603
      %5743 = vmatprep.subr.mxu0 0.0
      %5744 = vmatpush1.msra.mxu0 %v5604
      %5745 = vmatprep.subr.mxu0 0.0
      %5746 = vmatpush1.msra.mxu0 %v5605
      %5747 = vmatprep.subr.mxu0 0.0
      %5748 = vmatpush1.msra.mxu0 %v5606
      %5749 = vmatprep.subr.mxu0 0.0
      %5750 = vmatpush1.msra.mxu0 %v5607
      %5751 = vmatprep.subr.mxu0 0.0
      %5752 = vmatpush1.msra.mxu0 %v5608
      %5753 = vmatprep.subr.mxu0 0.0
      %5754 = vmatpush1.msra.mxu0 %v5609
      %5755 = vmatprep.subr.mxu0 0.0
      %5756 = vmatpush1.msra.mxu0 %v5610
      %5757 = vmatprep.subr.mxu0 0.0
      %5758 = vmatpush1.msra.mxu0 %v5611
      %5759 = vmatprep.subr.mxu0 0.0
      %5760 = vmatpush1.msra.mxu0 %v5612
      %5761 = vmatprep.subr.mxu0 0.0
      %5762 = vmatpush1.msra.mxu0 %v5613
      %5763 = vmatprep.subr.mxu0 0.0
      %5764 = vmatpush1.msra.mxu0 %v5614
      %5765 = vmatprep.subr.mxu0 0.0
      %5766 = vmatpush1.msra.mxu0 %v5615
      %5767 = vmatprep.subr.mxu0 0.0
      %5768 = vmatpush1.msra.mxu0 %v5616
      %5769 = vmatprep.subr.mxu0 0.0
      %5770 = vmatpush1.msra.mxu0 %v5617
      %5771 = vmatprep.subr.mxu0 0.0
      %5772 = vmatpush1.msra.mxu0 %v5618
      %5773 = vmatprep.subr.mxu0 0.0
      %5774 = vmatpush1.msra.mxu0 %v5619
      %5775 = vmatprep.subr.mxu0 0.0
      %5776 = vmatpush1.msra.mxu0 %v5620
      %5777 = vmatprep.subr.mxu0 0.0
      %5778 = vmatpush1.msra.mxu0 %v5621
      %5779 = vmatprep.subr.mxu0 0.0
      %5780 = vmatpush1.msra.mxu0 %v5622
      %5781 = vmatprep.subr.mxu0 0.0
      %5782 = vmatpush1.msra.mxu0 %v5623
      %5783 = vmatprep.subr.mxu0 0.0
      %5784 = vmatpush1.msra.mxu0 %v5624
      %5785 = vmatprep.mubr.f32.mxu0 %v1612
      %5786 = vmatmul.mubr.f32.gmra.mrb[0].mxu0 %v1611
      %v5787 = vpop.f32.mrb[0].mxu0
      %v5788 = vadd.f32 %v5674, %v5787
      %v5789 = vpop.f32.mrb[0].mxu0
      %5790 = vmatprep.mubr.f32.mxu0 %v1616
      %5791 = vmatmul.mubr.f32.gmra.mrb[0].mxu0 %v1615
      %v5792 = vpop.f32.mrb[0].mxu0
      %v5793 = vadd.f32 %v5676, %v5792
      %v5794 = vpop.f32.mrb[0].mxu0
      %5795 = vmatprep.mubr.f32.mxu0 %v1620
      %5796 = vmatmul.mubr.f32.gmra.mrb[0].mxu0 %v1619
      %v5797 = vpop.f32.mrb[0].mxu0
      %v5798 = vadd.f32 %v5678, %v5797
      %v5799 = vpop.f32.mrb[0].mxu0
      %5800 = vmatprep.mubr.f32.mxu0 %v1624
      %5801 = vmatmul.mubr.f32.gmra.mrb[0].mxu0 %v1623
      %v5802 = vpop.f32.mrb[0].mxu0
      %v5803 = vadd.f32 %v5680, %v5802
      %v5804 = vpop.f32.mrb[0].mxu0
      %5805 = vmatprep.mubr.f32.mxu0 %v1628
      %5806 = vmatmul.mubr.f32.gmra.mrb[0].mxu0 %v1627
      %v5807 = vpop.f32.mrb[0].mxu0
      %v5808 = vadd.f32 %v5682, %v5807
      %v5809 = vpop.f32.mrb[0].mxu0
      %5810 = vmatprep.mubr.f32.mxu0 %v1632
      %5811 = vmatmul.mubr.f32.gmra.mrb[0].mxu0 %v1631
      %v5812 = vpop.f32.mrb[0].mxu0
      %v5813 = vadd.f32 %v5684, %v5812
      %v5814 = vpop.f32.mrb[0].mxu0
      %5815 = vmatprep.mubr.f32.mxu0 %v1636
      %5816 = vmatmul.mubr.f32.gmra.mrb[0].mxu0 %v1635
      %v5817 = vpop.f32.mrb[0].mxu0
      %v5818 = vadd.f32 %v5686, %v5817
      %v5819 = vpop.f32.mrb[0].mxu0
      %5820 = vmatprep.mubr.f32.mxu0 %v1640
      %5821 = vmatmul.mubr.f32.gmra.mrb[0].mxu0 %v1639
      %v5822 = vpop.f32.mrb[0].mxu0
      %v5823 = vadd.f32 %v5688, %v5822
      %v5824 = vpop.f32.mrb[0].mxu0
      %5825 = vmatprep.mubr.f32.mxu0 %v1644
      %5826 = vmatmul.mubr.f32.gmra.mrb[0].mxu0 %v1643
      %v5827 = vpop.f32.mrb[0].mxu0
      %v5828 = vadd.f32 %v5690, %v5827
      %v5829 = vpop.f32.mrb[0].mxu0
      %5830 = vmatprep.mubr.f32.mxu0 %v1648
      %5831 = vmatmul.mubr.f32.gmra.mrb[0].mxu0 %v1647
      %v5832 = vpop.f32.mrb[0].mxu0
      %v5833 = vadd.f32 %v5692, %v5832
      %v5834 = vpop.f32.mrb[0].mxu0
      %5835 = vmatprep.mubr.f32.mxu0 %v1652
      %5836 = vmatmul.mubr.f32.gmra.mrb[0].mxu0 %v1651
      %v5837 = vpop.f32.mrb[0].mxu0
      %v5838 = vadd.f32 %v5694, %v5837
      %v5839 = vpop.f32.mrb[0].mxu0
      %5840 = vmatprep.mubr.f32.mxu0 %v1656
      %5841 = vmatmul.mubr.f32.gmra.mrb[0].mxu0 %v1655
      %v5842 = vpop.f32.mrb[0].mxu0
      %v5843 = vadd.f32 %v5696, %v5842
      %v5844 = vpop.f32.mrb[0].mxu0
      %5845 = vmatprep.mubr.f32.mxu0 %v1660
      %5846 = vmatmul.mubr.f32.gmra.mrb[0].mxu0 %v1659
      %v5847 = vpop.f32.mrb[0].mxu0
      %v5848 = vadd.f32 %v5698, %v5847
      %v5849 = vpop.f32.mrb[0].mxu0
      %5850 = vmatprep.mubr.f32.mxu0 %v1664
      %5851 = vmatmul.mubr.f32.gmra.mrb[0].mxu0 %v1663
      %v5852 = vpop.f32.mrb[0].mxu0
      %v5853 = vadd.f32 %v5700, %v5852
      %v5854 = vpop.f32.mrb[0].mxu0
      %5855 = vmatprep.mubr.f32.mxu0 %v1668
      %5856 = vmatmul.mubr.f32.gmra.mrb[0].mxu0 %v1667
      %v5857 = vpop.f32.mrb[0].mxu0
      %v5858 = vadd.f32 %v5702, %v5857
      %v5859 = vpop.f32.mrb[0].mxu0
      %5860 = vmatprep.mubr.f32.mxu0 %v1672
      %5861 = vmatmul.mubr.f32.gmra.mrb[0].mxu0 %v1671
      %v5862 = vpop.f32.mrb[0].mxu0
      %v5863 = vadd.f32 %v5704, %v5862
      %v5864 = vpop.f32.mrb[0].mxu0
      %5865 = vdwg.mxu0
      %5866 = vmatprep.subr.mxu0 0.0
      %5867 = vmatpush1.msra.mxu0 %v5625
      %5868 = vmatprep.subr.mxu0 0.0
      %5869 = vmatpush1.msra.mxu0 %v5626
      %5870 = vmatprep.subr.mxu0 0.0
      %5871 = vmatpush1.msra.mxu0 %v5627
      %5872 = vmatprep.subr.mxu0 0.0
      %5873 = vmatpush1.msra.mxu0 %v5628
      %5874 = vmatprep.subr.mxu0 0.0
      %5875 = vmatpush1.msra.mxu0 %v5629
      %5876 = vmatprep.subr.mxu0 0.0
      %5877 = vmatpush1.msra.mxu0 %v5630
      %5878 = vmatprep.subr.mxu0 0.0
      %5879 = vmatpush1.msra.mxu0 %v5631
      %5880 = vmatprep.subr.mxu0 0.0
      %5881 = vmatpush1.msra.mxu0 %v5632
      %5882 = vmatprep.subr.mxu0 0.0
      %5883 = vmatpush1.msra.mxu0 %v5633
      %5884 = vmatprep.subr.mxu0 0.0
      %5885 = vmatpush1.msra.mxu0 %v5634
      %5886 = vmatprep.subr.mxu0 0.0
      %5887 = vmatpush1.msra.mxu0 %v5635
      %5888 = vmatprep.subr.mxu0 0.0
      %5889 = vmatpush1.msra.mxu0 %v5636
      %5890 = vmatprep.subr.mxu0 0.0
      %5891 = vmatpush1.msra.mxu0 %v5637
      %5892 = vmatprep.subr.mxu0 0.0
      %5893 = vmatpush1.msra.mxu0 %v5638
      %5894 = vmatprep.subr.mxu0 0.0
      %5895 = vmatpush1.msra.mxu0 %v5639
      %5896 = vmatprep.subr.mxu0 0.0
      %5897 = vmatpush1.msra.mxu0 %v5640
      %5898 = vmatprep.subr.mxu0 0.0
      %5899 = vmatpush1.msra.mxu0 %v5641
      %5900 = vmatprep.subr.mxu0 0.0
      %5901 = vmatpush1.msra.mxu0 %v5642
      %5902 = vmatprep.subr.mxu0 0.0
      %5903 = vmatpush1.msra.mxu0 %v5643
      %5904 = vmatprep.subr.mxu0 0.0
      %5905 = vmatpush1.msra.mxu0 %v5644
      %5906 = vmatprep.subr.mxu0 0.0
      %5907 = vmatpush1.msra.mxu0 %v5645
      %5908 = vmatprep.subr.mxu0 0.0
      %5909 = vmatpush1.msra.mxu0 %v5646
      %5910 = vmatprep.subr.mxu0 0.0
      %5911 = vmatpush1.msra.mxu0 %v5647
      %5912 = vmatprep.subr.mxu0 0.0
      %5913 = vmatpush1.msra.mxu0 %v5648
      %5914 = vmatprep.subr.mxu0 0.0
      %5915 = vmatpush1.msra.mxu0 %v5649
      %5916 = vmatprep.subr.mxu0 0.0
      %5917 = vmatpush1.msra.mxu0 %v5650
      %5918 = vmatprep.subr.mxu0 0.0
      %5919 = vmatpush1.msra.mxu0 %v5651
      %5920 = vmatprep.subr.mxu0 0.0
      %5921 = vmatpush1.msra.mxu0 %v5652
      %5922 = vmatprep.subr.mxu0 0.0
      %5923 = vmatpush1.msra.mxu0 %v5653
      %5924 = vmatprep.subr.mxu0 0.0
      %5925 = vmatpush1.msra.mxu0 %v5654
      %5926 = vmatprep.subr.mxu0 0.0
      %5927 = vmatpush1.msra.mxu0 %v5655
      %5928 = vmatprep.subr.mxu0 0.0
      %5929 = vmatpush1.msra.mxu0 %v5656
      %5930 = vmatprep.mubr.f32.mxu0 %v1614
      %5931 = vmatmul.mubr.f32.gmra.mrb[0].mxu0 %v1613
      %v5932 = vpop.f32.mrb[0].mxu0
      %v5933 = vadd.f32 %v5788, %v5932
      %v5934 = vpop.f32.mrb[0].mxu0
      %5935 = vmatprep.mubr.f32.mxu0 %v1618
      %5936 = vmatmul.mubr.f32.gmra.mrb[0].mxu0 %v1617
      %v5937 = vpop.f32.mrb[0].mxu0
      %v5938 = vadd.f32 %v5793, %v5937
      %v5939 = vpop.f32.mrb[0].mxu0
      %5940 = vmatprep.mubr.f32.mxu0 %v1622
      %5941 = vmatmul.mubr.f32.gmra.mrb[0].mxu0 %v1621
      %v5942 = vpop.f32.mrb[0].mxu0
      %v5943 = vadd.f32 %v5798, %v5942
      %v5944 = vpop.f32.mrb[0].mxu0
      %5945 = vmatprep.mubr.f32.mxu0 %v1626
      %5946 = vmatmul.mubr.f32.gmra.mrb[0].mxu0 %v1625
      %v5947 = vpop.f32.mrb[0].mxu0
      %v5948 = vadd.f32 %v5803, %v5947
      %v5949 = vpop.f32.mrb[0].mxu0
      %5950 = vmatprep.mubr.f32.mxu0 %v1630
      %5951 = vmatmul.mubr.f32.gmra.mrb[0].mxu0 %v1629
      %v5952 = vpop.f32.mrb[0].mxu0
      %v5953 = vadd.f32 %v5808, %v5952
      %v5954 = vpop.f32.mrb[0].mxu0
      %5955 = vmatprep.mubr.f32.mxu0 %v1634
      %5956 = vmatmul.mubr.f32.gmra.mrb[0].mxu0 %v1633
      %v5957 = vpop.f32.mrb[0].mxu0
      %v5958 = vadd.f32 %v5813, %v5957
      %v5959 = vpop.f32.mrb[0].mxu0
      %5960 = vmatprep.mubr.f32.mxu0 %v1638
      %5961 = vmatmul.mubr.f32.gmra.mrb[0].mxu0 %v1637
      %v5962 = vpop.f32.mrb[0].mxu0
      %v5963 = vadd.f32 %v5818, %v5962
      %v5964 = vpop.f32.mrb[0].mxu0
      %5965 = vmatprep.mubr.f32.mxu0 %v1642
      %5966 = vmatmul.mubr.f32.gmra.mrb[0].mxu0 %v1641
      %v5967 = vpop.f32.mrb[0].mxu0
      %v5968 = vadd.f32 %v5823, %v5967
      %v5969 = vpop.f32.mrb[0].mxu0
      %5970 = vmatprep.mubr.f32.mxu0 %v1646
      %5971 = vmatmul.mubr.f32.gmra.mrb[0].mxu0 %v1645
      %v5972 = vpop.f32.mrb[0].mxu0
      %v5973 = vadd.f32 %v5828, %v5972
      %v5974 = vpop.f32.mrb[0].mxu0
      %5975 = vmatprep.mubr.f32.mxu0 %v1650
      %5976 = vmatmul.mubr.f32.gmra.mrb[0].mxu0 %v1649
      %v5977 = vpop.f32.mrb[0].mxu0
      %v5978 = vadd.f32 %v5833, %v5977
      %v5979 = vpop.f32.mrb[0].mxu0
      %5980 = vmatprep.mubr.f32.mxu0 %v1654
      %5981 = vmatmul.mubr.f32.gmra.mrb[0].mxu0 %v1653
      %v5982 = vpop.f32.mrb[0].mxu0
      %v5983 = vadd.f32 %v5838, %v5982
      %v5984 = vpop.f32.mrb[0].mxu0
      %5985 = vmatprep.mubr.f32.mxu0 %v1658
      %5986 = vmatmul.mubr.f32.gmra.mrb[0].mxu0 %v1657
      %v5987 = vpop.f32.mrb[0].mxu0
      %v5988 = vadd.f32 %v5843, %v5987
      %v5989 = vpop.f32.mrb[0].mxu0
      %5990 = vmatprep.mubr.f32.mxu0 %v1662
      %5991 = vmatmul.mubr.f32.gmra.mrb[0].mxu0 %v1661
      %v5992 = vpop.f32.mrb[0].mxu0
      %v5993 = vadd.f32 %v5848, %v5992
      %v5994 = vpop.f32.mrb[0].mxu0
      %5995 = vmatprep.mubr.f32.mxu0 %v1666
      %5996 = vmatmul.mubr.f32.gmra.mrb[0].mxu0 %v1665
      %v5997 = vpop.f32.mrb[0].mxu0
      %v5998 = vadd.f32 %v5853, %v5997
      %v5999 = vpop.f32.mrb[0].mxu0
      %6000 = vmatprep.mubr.f32.mxu0 %v1670
      %6001 = vmatmul.mubr.f32.gmra.mrb[0].mxu0 %v1669
      %v6002 = vpop.f32.mrb[0].mxu0
      %v6003 = vadd.f32 %v5858, %v6002
      %v6004 = vpop.f32.mrb[0].mxu0
      %6005 = vmatprep.mubr.f32.mxu0 %v1674
      %6006 = vmatmul.mubr.f32.gmra.mrb[0].mxu0 %v1673
      %v6007 = vpop.f32.mrb[0].mxu0
      %v6008 = vadd.f32 %v5863, %v6007
      %v6009 = vpop.f32.mrb[0].mxu0
      %6010 = vdwg.mxu0
      %v6011 = vmax.f32 %v5933, 0.0
      %v6012 = vmax.f32 %v5938, 0.0
      %v6013 = vmax.f32 %v5943, 0.0
      %v6014 = vmax.f32 %v5948, 0.0
      %v6015 = vmax.f32 %v5953, 0.0
      %v6016 = vmax.f32 %v5958, 0.0
      %v6017 = vmax.f32 %v5963, 0.0
      %v6018 = vmax.f32 %v5968, 0.0
      %v6019 = vmax.f32 %v5973, 0.0
      %v6020 = vmax.f32 %v5978, 0.0
      %v6021 = vmax.f32 %v5983, 0.0
      %v6022 = vmax.f32 %v5988, 0.0
      %v6023 = vmax.f32 %v5993, 0.0
      %v6024 = vmax.f32 %v5998, 0.0
      %v6025 = vmax.f32 %v6003, 0.0
      %v6026 = vmax.f32 %v6008, 0.0
      %6027 = vst.msk [vmem:[%s318] sm:$0xff] %vm2773, %v6011
      %6028 = vst.msk [vmem:[%s318 + $0x8] sm:$0xff] %vm2773, %v6012
      %6029 = vst.msk [vmem:[%s318 + $0x10] sm:$0xff] %vm2773, %v6013
      %6030 = vst.msk [vmem:[%s318 + $0x18] sm:$0xff] %vm2773, %v6014
      %6031 = vst.msk [vmem:[%s318 + $0x20] sm:$0xff] %vm2773, %v6015
      %6032 = vst.msk [vmem:[%s318 + $0x28] sm:$0xff] %vm2773, %v6016
      %6033 = vst.msk [vmem:[%s318 + $0x30] sm:$0xff] %vm2773, %v6017
      %6034 = vst.msk [vmem:[%s318 + $0x38] sm:$0xff] %vm2773, %v6018
      %6035 = vst.msk [vmem:[%s318 + $0x40] sm:$0xff] %vm2773, %v6019
      %6036 = vst.msk [vmem:[%s318 + $0x48] sm:$0xff] %vm2773, %v6020
      %6037 = vst.msk [vmem:[%s318 + $0x50] sm:$0xff] %vm2773, %v6021
      %6038 = vst.msk [vmem:[%s318 + $0x58] sm:$0xff] %vm2773, %v6022
      %6039 = vst.msk [vmem:[%s318 + $0x60] sm:$0xff] %vm2773, %v6023
      %6040 = vst.msk [vmem:[%s318 + $0x68] sm:$0xff] %vm2773, %v6024
      %6041 = vst.msk [vmem:[%s318 + $0x70] sm:$0xff] %vm2773, %v6025
      %6042 = vst.msk [vmem:[%s318 + $0x78] sm:$0xff] %vm2773, %v6026
      %p6043 = scmp.lt.s32.totalorder %s18, 1
      %s6044 = scalar_select %p6043, %s18, 1
      %s6045 = smul.addr %s6044, 16
      %s6046 = smul.addr %s6045, 8
      %s6047 = scalar_lea.vmem %s7, %s6046
      // Predicated region
      $region49: #{tpu_custom_call.1} parent=47 // pred_check
        %p6048 = pneg %p198
      $region50: #{tpu_custom_call.1} parent=47 // pred_check_branch
        %6050 = sbr.rel (%p6048) target = $region52
      $region51: #{tpu_custom_call.1} parent=47 // pred_region
        _
      $region52: #{tpu_custom_call.1} parent=47 // pred_fallthru
        _
    $region48: #{tpu_custom_call.1} parent=5 // pred_fallthru
      _
    %p6051 = scmp.le.s32.totalorder 2, %s13
    // Predicated region
    $region53: #{tpu_custom_call.1} parent=5 // pred_check
      %p6052 = pneg %p6051
    $region54: #{tpu_custom_call.1} parent=5 // pred_check_branch
      %6054 = sbr.rel (%p6052) target = $region56
    $region55: #{tpu_custom_call.1} parent=5 // pred_region
      %s6055 = ssub.s32 %s13, 2
      // Predicated region
      $region57: #{tpu_custom_call.1} parent=55 // pred_check
        %p6056 = pneg %p204
      $region58: #{tpu_custom_call.1} parent=55 // pred_check_branch
        %6058 = sbr.rel (%p6056) target = $region60
      $region59: #{tpu_custom_call.1} parent=55 // pred_region
        %p6059 = scmp.lt.s32.totalorder %s19, 1
        %s6060 = scalar_select %p6059, %s19, 1
        %s6061 = smul.addr %s6060, 16
        %s6062 = smul.addr %s6061, 8
        %s6063 = scalar_lea.vmem %s7, %s6062
      $region60: #{tpu_custom_call.1} parent=55 // pred_fallthru
        _
    $region56: #{tpu_custom_call.1} parent=5 // pred_fallthru
      _
  $region6: #{tpu_custom_call.1} parent=0 // loop_footer
    %s17 = sadd.s32 1, %s13
  $region7: #{tpu_custom_call.1} parent=0 // loop_footer_branch
    %12 = sbr.rel target = $region3
  $region8: #{tpu_custom_call.1} parent=0 // loop_exit
    _

</llo_original>
